<compile_context>
chip_gen: v5e
topology: v5e:2x2
jax: 0.10.0
libtpu: 0.0.40
codegen_flags: <defaults>
</compile_context>

<pallas_src>
import functools

import jax
import jax.numpy as jnp
from jax import lax
from jax.experimental import pallas as pl
from jax.experimental.pallas import tpu as pltpu

LN_EPS = 1e-5


def _round_up(x, m):
    return ((x + m - 1) // m) * m


def _ln_onepass(x, gamma, beta, d):
    """LayerNorm over the last axis in one pass (sum & sum-of-squares).

    `d` is the number of *real* features.  Padded columns are exactly zero, so they
    do not perturb the sums, and zero gamma/beta keeps them exactly zero after LN.
    """
    inv_d = jnp.float32(1.0 / d)
    s = jnp.sum(x, axis=-1, keepdims=True)
    ss = jnp.sum(x * x, axis=-1, keepdims=True)
    mu = s * inv_d
    var = ss * inv_d - mu * mu
    return (x - mu) * lax.rsqrt(var + LN_EPS) * gamma + beta


# ----------------------------------------------------------------------------- kernel
def erfppk_kernel(
    d_real,                                              # static: real model dim
    # gridded activations
    esm_ref,                                             # (TB, TL, 1280) f32
    diff_ref, allv_ref,                                  # (TB, 1024)     f32
    rxn_ref,                                             # (TB, D_pad)    f32 (zero padded)
    # resident weights (bf16 matrices, f32 biases / LN params, all padded to D_pad)
    w_lin_ref, b_lin_ref, g_lin_ref, be_lin_ref,         # linear: Linear(1280,D)+LN
    w_rf1_ref, b_rf1_ref, w_rf2_ref, b_rf2_ref,          # reaction_feature linears
    g_rf_ref, be_rf_ref,                                 # reaction_feature LN
    w_diff_ref, b_diff_ref, w_all_ref, b_all_ref,        # fingerprint encodings
    g_sf_ref, be_sf_ref, g_df_ref, be_df_ref,            # diff/all layer norms
    w_i1_ref, b_i1_ref, w_i2_ref, b_i2_ref,              # interact head
    # CBAM channel-gate MLP (tiny -> SMEM scalars)
    w_c1_ref, b_c1_ref, w_c2_ref, b_c2_ref,
    # output + scratch
    out_ref,                                             # (TB, OUT_PAD=128) f32
    sv_acc_ref,                                          # (TB, D_pad) f32 running token max
):
    li = pl.program_id(1)
    nl = pl.num_programs(1)
    TB, TL, E = esm_ref.shape
    D_pad = sv_acc_ref.shape[-1]
    bf16 = jnp.bfloat16

    @pl.when(li == 0)
    def _init():
        sv_acc_ref[...] = jnp.full(sv_acc_ref.shape, -jnp.inf, jnp.float32)

    # ---- sequence branch (every L block): Linear(1280->D) + LN, running token max ----
    esm = esm_ref[...].reshape(TB * TL, E).astype(bf16)
    h = jnp.dot(esm, w_lin_ref[...], preferred_element_type=jnp.float32) + b_lin_ref[...]
    h = _ln_onepass(h, g_lin_ref[...], be_lin_ref[...], d_real)
    blk_max = jnp.max(h.reshape(TB, TL, D_pad), axis=1)
    sv_acc_ref[...] = jnp.maximum(sv_acc_ref[...], blk_max)

    # ---- everything else only once per batch tile, on the last L block ----
    @pl.when(li == nl - 1)
    def _finalize():
        sv = sv_acc_ref[...]

        # reaction branch: Linear -> ReLU -> Linear -> LayerNorm
        r = rxn_ref[...].astype(bf16)
        r1 = jnp.maximum(
            jnp.dot(r, w_rf1_ref[...], preferred_element_type=jnp.float32)
            + b_rf1_ref[...], 0.0)
        r2 = jnp.dot(r1.astype(bf16), w_rf2_ref[...],
                     preferred_element_type=jnp.float32) + b_rf2_ref[...]
        ev = _ln_onepass(r2, g_rf_ref[...], be_rf_ref[...], d_real)

        # fingerprint branches
        sub = jnp.dot(diff_ref[...].astype(bf16), w_diff_ref[...],
                      preferred_element_type=jnp.float32) + b_diff_ref[...]
        pro = jnp.dot(allv_ref[...].astype(bf16), w_all_ref[...],
                      preferred_element_type=jnp.float32) + b_all_ref[...]
        sf = _ln_onepass(sub + pro, g_sf_ref[...], be_sf_ref[...], d_real)
        df = _ln_onepass(sub - pro, g_df_ref[...], be_df_ref[...], d_real)

        # CBAM channel gate: avg+max pool over features -> shared 4->2->4 MLP -> sigmoid.
        # Pure VPU arithmetic with SMEM scalar weights (no 4-wide MXU matmuls).
        chans = (ev, sv, sf, df)                       # channel order = torch concat order
        lane = lax.broadcasted_iota(jnp.int32, (TB, D_pad), 1)
        valid = lane < d_real
        inv_d = jnp.float32(1.0 / d_real)
        avg_p = [jnp.sum(c, axis=-1, keepdims=True) * inv_d for c in chans]
        max_p = [jnp.max(jnp.where(valid, c, -jnp.inf), axis=-1, keepdims=True)
                 for c in chans]

        def gate_mlp(pooled):                          # pooled: 4 x (TB, 1)
            hidden = []
            for j in range(2):
                acc = pooled[0] * w_c1_ref[0, j]
                for i in range(1, 4):
                    acc = acc + pooled[i] * w_c1_ref[i, j]
                hidden.append(jnp.maximum(acc + b_c1_ref[j], 0.0))
            return [hidden[0] * w_c2_ref[0, k] + hidden[1] * w_c2_ref[1, k] + b_c2_ref[k]
                    for k in range(4)]

        g_avg = gate_mlp(avg_p)
        g_max = gate_mlp(max_p)
        scales = [jax.nn.sigmoid(g_avg[k] + g_max[k]) for k in range(4)]

        # interact head: Linear(4D -> 2D) -> ReLU -> Linear(2D -> 1).
        # flat is lane-dense (TB, 4*D_pad); w_i1 was scattered to matching row blocks.
        flat = jnp.concatenate([c * s for c, s in zip(chans, scales)], axis=-1)
        h1 = jnp.maximum(
            jnp.dot(flat.astype(bf16), w_i1_ref[...],
                    preferred_element_type=jnp.float32) + b_i1_ref[...], 0.0)
        out_ref[...] = jnp.dot(h1.astype(bf16), w_i2_ref[...],
                               preferred_element_type=jnp.float32) + b_i2_ref[...]


# ----------------------------------------------------------------------------- wrapper
@functools.partial(jax.jit, static_argnames=("dim", "tb", "tl"))
def erfppk_forward(kp, esm_reps, differ_vec, all_vec, reaction_vec, *, dim, tb, tl):
    B, L, E = esm_reps.shape
    FP = differ_vec.shape[1]
    D_pad = kp["g_lin"].shape[1]
    H2_pad = kp["w_i1"].shape[1]
    OUT_PAD = kp["w_i2"].shape[1]
    assert B % tb == 0 and L % tl == 0, "batch/seq must be divisible by the tile sizes"
    nb, nl = B // tb, L // tl

    rxn_pad = jnp.pad(reaction_vec, ((0, 0), (0, D_pad - reaction_vec.shape[1])))

    def _bi(bi, li):
        return (bi, 0)

    def _bli(bi, li):
        return (bi, li, 0)

    def _const(shape):
        nd = len(shape)
        return pl.BlockSpec(shape, lambda bi, li, _nd=nd: (0,) * _nd)

    smem = pl.BlockSpec(memory_space=pltpu.MemorySpace.SMEM)

    weight_order = ("w_lin", "b_lin", "g_lin", "be_lin",
                    "w_rf1", "b_rf1", "w_rf2", "b_rf2", "g_rf", "be_rf",
                    "w_diff", "b_diff", "w_all", "b_all",
                    "g_sf", "be_sf", "g_df", "be_df",
                    "w_i1", "b_i1", "w_i2", "b_i2")
    weight_args = tuple(kp[k] for k in weight_order)
    cbam_args = (kp["w_c1"], kp["b_c1"], kp["w_c2"], kp["b_c2"])

    in_specs = (
        [pl.BlockSpec((tb, tl, E), _bli),        # ESM token reps, tiled over (B, L)
         pl.BlockSpec((tb, FP), _bi),            # differ fingerprint
         pl.BlockSpec((tb, FP), _bi),            # all fingerprint
         pl.BlockSpec((tb, D_pad), _bi)]         # reaction vectors (padded)
        + [_const(w.shape) for w in weight_args]  # VMEM-resident weights
        + [smem] * len(cbam_args)                 # tiny CBAM gate params -> SMEM
    )

    out_padded = pl.pallas_call(
        functools.partial(erfppk_kernel, dim),
        out_shape=jax.ShapeDtypeStruct((B, OUT_PAD), jnp.float32),
        grid=(nb, nl),
        in_specs=in_specs,
        out_specs=pl.BlockSpec((tb, OUT_PAD), _bi),
        scratch_shapes=[pltpu.VMEM((tb, D_pad), jnp.float32)],
        compiler_params=pltpu.CompilerParams(
            dimension_semantics=("parallel", "arbitrary"),
            # resident bf16 weights (~1 MiB) + double-buffered activation blocks:
            # well under this on all of v5e/v6e/v7x.
            vmem_limit_bytes=32 * 1024 * 1024),
    )(esm_reps, differ_vec, all_vec, rxn_pad, *weight_args, *cbam_args)

    out = out_padded[:, :1]          # real logit lives in lane 0 of the 128-wide slab
    if out.shape[0] == 1:            # torch: out.squeeze(dim=0)
        out = jnp.squeeze(out, axis=0)
    return out


# ----------------------------------------------------------------------------- params
def _dense(key, fan_in, fan_out):
    kw, kb = jax.random.split(key)
    w = jax.random.normal(kw, (fan_in, fan_out), jnp.float32) / jnp.sqrt(float(fan_in))
    b = 0.01 * jax.random.normal(kb, (1, fan_out), jnp.float32)
    return w, b


def _ln_params(key, d):
    kg, kb = jax.random.split(key)
    g = 1.0 + 0.1 * jax.random.normal(kg, (1, d), jnp.float32)
    be = 0.1 * jax.random.normal(kb, (1, d), jnp.float32)
    return g, be


def init_params(key, dim):
    ks = jax.random.split(key, 13)
    p = {}
    p["w_lin"], p["b_lin"] = _dense(ks[0], 1280, dim)
    p["g_lin"], p["be_lin"] = _ln_params(ks[1], dim)
    p["w_rf1"], p["b_rf1"] = _dense(ks[2], dim, dim)
    p["w_rf2"], p["b_rf2"] = _dense(ks[3], dim, dim)
    p["g_rf"], p["be_rf"] = _ln_params(ks[4], dim)
    p["w_diff"], p["b_diff"] = _dense(ks[5], 1024, dim)
    p["w_all"], p["b_all"] = _dense(ks[6], 1024, dim)
    p["g_sf"], p["be_sf"] = _ln_params(ks[7], dim)
    p["g_df"], p["be_df"] = _ln_params(ks[8], dim)
    # CBAM channel gate: gate_channels=4, reduction_ratio=2
    w, b = _dense(ks[9], 4, 2)
    p["w_c1"], p["b_c1"] = w, b.reshape(-1)
    w, b = _dense(ks[10], 2, 4)
    p["w_c2"], p["b_c2"] = w, b.reshape(-1)
    # interact: Linear(4*dim, 2*dim) -> ReLU -> Linear(2*dim, 1)
    p["w_i1"], p["b_i1"] = _dense(ks[11], 4 * dim, 2 * dim)
    p["w_i2"], p["b_i2"] = _dense(ks[12], 2 * dim, 1)
    return p


def prepare_kernel_params(p, dim):
    """Pad the model width to 128 lanes and cast matmul weights to bf16.

    Padding invariants that keep the padded math exact:
      * weight pad rows/cols and bias pad entries are zero,
      * LN gamma/beta pad entries are zero (padded features stay exactly 0),
      * LN divides by the real `dim` inside the kernel.
    """
    bf16 = jnp.bfloat16
    d_pad = _round_up(dim, 128)
    h2 = 2 * dim
    h2_pad = _round_up(h2, 128)
    out_pad = 128

    def pad_cols(x, width):
        return jnp.pad(x, ((0, 0), (0, width - x.shape[1])))

    kp = {}
    kp["w_lin"] = pad_cols(p["w_lin"], d_pad).astype(bf16)
    kp["b_lin"] = pad_cols(p["b_lin"], d_pad)
    kp["g_lin"] = pad_cols(p["g_lin"], d_pad)
    kp["be_lin"] = pad_cols(p["be_lin"], d_pad)

    kp["w_rf1"] = jnp.pad(p["w_rf1"], ((0, d_pad - dim), (0, d_pad - dim))).astype(bf16)
    kp["b_rf1"] = pad_cols(p["b_rf1"], d_pad)
    kp["w_rf2"] = jnp.pad(p["w_rf2"], ((0, d_pad - dim), (0, d_pad - dim))).astype(bf16)
    kp["b_rf2"] = pad_cols(p["b_rf2"], d_pad)
    kp["g_rf"] = pad_cols(p["g_rf"], d_pad)
    kp["be_rf"] = pad_cols(p["be_rf"], d_pad)

    kp["w_diff"] = pad_cols(p["w_diff"], d_pad).astype(bf16)
    kp["b_diff"] = pad_cols(p["b_diff"], d_pad)
    kp["w_all"] = pad_cols(p["w_all"], d_pad).astype(bf16)
    kp["b_all"] = pad_cols(p["b_all"], d_pad)
    kp["g_sf"] = pad_cols(p["g_sf"], d_pad)
    kp["be_sf"] = pad_cols(p["be_sf"], d_pad)
    kp["g_df"] = pad_cols(p["g_df"], d_pad)
    kp["be_df"] = pad_cols(p["be_df"], d_pad)

    # interact Linear(4*dim -> 2*dim): scatter each channel's row block to the padded
    # per-channel stride (d_pad) so it lines up with the in-kernel lane-dense concat.
    w_i1 = jnp.zeros((4 * d_pad, h2_pad), jnp.float32)
    for c in range(4):
        w_i1 = w_i1.at[c * d_pad:c * d_pad + dim, :h2].set(
            p["w_i1"][c * dim:(c + 1) * dim, :])
    kp["w_i1"] = w_i1.astype(bf16)
    kp["b_i1"] = pad_cols(p["b_i1"], h2_pad)

    w_i2 = jnp.zeros((h2_pad, out_pad), jnp.float32).at[:h2, :1].set(p["w_i2"])
    kp["w_i2"] = w_i2.astype(bf16)
    kp["b_i2"] = pad_cols(p["b_i2"], out_pad)

    # CBAM gate MLP stays f32 and lives in SMEM inside the kernel.
    kp["w_c1"], kp["b_c1"] = p["w_c1"], p["b_c1"]
    kp["w_c2"], kp["b_c2"] = p["w_c2"], p["b_c2"]
    return kp


# ----------------------------------------------------------------------------- reference
def reference_forward(p, esm_reps, differ_vec, all_vec, reaction_vec):
    """Pure-JAX reference mirroring the kernel math (bf16 matmul inputs, f32 accumulate)."""
    bf16 = jnp.bfloat16

    def dot(x, w):
        return jnp.dot(x.astype(bf16), w.astype(bf16), preferred_element_type=jnp.float32)

    def ln(x, g, b):
        return _ln_onepass(x, g, b, x.shape[-1])

    B, L, E = esm_reps.shape
    h = dot(esm_reps.reshape(B * L, E), p["w_lin"]) + p["b_lin"]
    h = ln(h, p["g_lin"], p["be_lin"])
    sv = jnp.max(h.reshape(B, L, -1), axis=1)

    r1 = jnp.maximum(dot(reaction_vec, p["w_rf1"]) + p["b_rf1"], 0.0)
    r2 = dot(r1, p["w_rf2"]) + p["b_rf2"]
    ev = ln(r2, p["g_rf"], p["be_rf"])

    sub = dot(differ_vec, p["w_diff"]) + p["b_diff"]
    pro = dot(all_vec, p["w_all"]) + p["b_all"]
    sf = ln(sub + pro, p["g_sf"], p["be_sf"])
    df = ln(sub - pro, p["g_df"], p["be_df"])

    fv = jnp.stack([ev, sv, sf, df], axis=1)           # (B, 4, D)
    avg = jnp.mean(fv, axis=-1)
    mx = jnp.max(fv, axis=-1)

    def gate(x):
        hh = jnp.maximum(x @ p["w_c1"] + p["b_c1"], 0.0)
        return hh @ p["w_c2"] + p["b_c2"]

    scale = jax.nn.sigmoid(gate(avg) + gate(mx))
    fv = fv * scale[:, :, None]
    flat = fv.reshape(B, -1)
    h1 = jnp.maximum(dot(flat, p["w_i1"]) + p["b_i1"], 0.0)
    out = dot(h1, p["w_i2"]) + p["b_i2"]
    if out.shape[0] == 1:
        out = jnp.squeeze(out, axis=0)
    return out


# ----------------------------------------------------------------------------- main
if __name__ == "__main__":
    B, L, DIM = 2, 8, 32          # batch, ESM sequence length (tokens), model dim
    ESM_DIM, FP_DIM = 1280, 1024  # fixed by the module (ESM-2 650M, fingerprint width)

    key = jax.random.PRNGKey(0)
    k_par, k_esm, k_diff, k_all, k_rxn = jax.random.split(key, 5)

    params = init_params(k_par, DIM)
    kparams = prepare_kernel_params(params, DIM)

    esm_reps = jax.random.normal(k_esm, (B, L, ESM_DIM), jnp.float32)  # stands in for ESM_2 output
    differ_reaction_vector = (jax.random.uniform(k_diff, (B, FP_DIM)) > 0.5).astype(jnp.float32)
    all_reaction_vector = (jax.random.uniform(k_all, (B, FP_DIM)) > 0.5).astype(jnp.float32)
    reaction_vectors = jax.random.normal(k_rxn, (B, DIM), jnp.float32)

    tb = B if B <= 8 else 8       # batch tile (parallel axis)
    tl = L if L <= 128 else 128   # token tile (arbitrary/reduction axis)

    out = erfppk_forward(kparams, esm_reps, differ_reaction_vector,
                         all_reaction_vector, reaction_vectors,
                         dim=DIM, tb=tb, tl=tl)
    out = jax.block_until_ready(out)

    ref = reference_forward(params, esm_reps, differ_reaction_vector,
                            all_reaction_vector, reaction_vectors)
    assert out.shape == (B, 1), out.shape
    assert jnp.allclose(out, ref, atol=2e-2, rtol=2e-2), jnp.max(jnp.abs(out - ref))
    print("KERNEL_OK")
</pallas_src>

<mosaic_0001>
module attributes {stable_mosaic.version = 11 : i64} {
  func.func @erfppk_kernel(%arg0: i32, %arg1: i32, %arg2: memref<2x8x1280xf32, #tpu.memory_space<vmem>>, %arg3: memref<2x1024xf32, #tpu.memory_space<vmem>>, %arg4: memref<2x1024xf32, #tpu.memory_space<vmem>>, %arg5: memref<2x128xf32, #tpu.memory_space<vmem>>, %arg6: memref<1280x128xbf16, #tpu.memory_space<vmem>>, %arg7: memref<1x128xf32, #tpu.memory_space<vmem>>, %arg8: memref<1x128xf32, #tpu.memory_space<vmem>>, %arg9: memref<1x128xf32, #tpu.memory_space<vmem>>, %arg10: memref<128x128xbf16, #tpu.memory_space<vmem>>, %arg11: memref<1x128xf32, #tpu.memory_space<vmem>>, %arg12: memref<128x128xbf16, #tpu.memory_space<vmem>>, %arg13: memref<1x128xf32, #tpu.memory_space<vmem>>, %arg14: memref<1x128xf32, #tpu.memory_space<vmem>>, %arg15: memref<1x128xf32, #tpu.memory_space<vmem>>, %arg16: memref<1024x128xbf16, #tpu.memory_space<vmem>>, %arg17: memref<1x128xf32, #tpu.memory_space<vmem>>, %arg18: memref<1024x128xbf16, #tpu.memory_space<vmem>>, %arg19: memref<1x128xf32, #tpu.memory_space<vmem>>, %arg20: memref<1x128xf32, #tpu.memory_space<vmem>>, %arg21: memref<1x128xf32, #tpu.memory_space<vmem>>, %arg22: memref<1x128xf32, #tpu.memory_space<vmem>>, %arg23: memref<1x128xf32, #tpu.memory_space<vmem>>, %arg24: memref<512x128xbf16, #tpu.memory_space<vmem>>, %arg25: memref<1x128xf32, #tpu.memory_space<vmem>>, %arg26: memref<128x128xbf16, #tpu.memory_space<vmem>>, %arg27: memref<1x128xf32, #tpu.memory_space<vmem>>, %arg28: memref<4x2xf32, #tpu.memory_space<smem>>, %arg29: memref<2xf32, #tpu.memory_space<smem>>, %arg30: memref<2x4xf32, #tpu.memory_space<smem>>, %arg31: memref<4xf32, #tpu.memory_space<smem>>, %arg32: memref<2x128xf32, #tpu.memory_space<vmem>>, %arg33: memref<2x128xf32, #tpu.memory_space<vmem>>) attributes {dimension_semantics = [#tpu.dimension_semantics<parallel>, #tpu.dimension_semantics<arbitrary>], iteration_bounds = array<i64: 1, 1>, scalar_prefetch = 0 : i64, scratch_operands = 1 : i64, tpu.core_type = #tpu.core_type<tc>, window_params = [{transform_indices = @transform_0, window_bounds = array<i64: 2, 8, 1280>}, {transform_indices = @transform_1, window_bounds = array<i64: 2, 1024>}, {transform_indices = @transform_2, window_bounds = array<i64: 2, 1024>}, {transform_indices = @transform_3, window_bounds = array<i64: 2, 128>}, {pipeline_mode = #tpu.pipeline_mode<synchronous>, transform_indices = @transform_4, window_bounds = array<i64: 1280, 128>}, {pipeline_mode = #tpu.pipeline_mode<synchronous>, transform_indices = @transform_5, window_bounds = array<i64: 1, 128>}, {pipeline_mode = #tpu.pipeline_mode<synchronous>, transform_indices = @transform_6, window_bounds = array<i64: 1, 128>}, {pipeline_mode = #tpu.pipeline_mode<synchronous>, transform_indices = @transform_7, window_bounds = array<i64: 1, 128>}, {pipeline_mode = #tpu.pipeline_mode<synchronous>, transform_indices = @transform_8, window_bounds = array<i64: 128, 128>}, {pipeline_mode = #tpu.pipeline_mode<synchronous>, transform_indices = @transform_9, window_bounds = array<i64: 1, 128>}, {pipeline_mode = #tpu.pipeline_mode<synchronous>, transform_indices = @transform_10, window_bounds = array<i64: 128, 128>}, {pipeline_mode = #tpu.pipeline_mode<synchronous>, transform_indices = @transform_11, window_bounds = array<i64: 1, 128>}, {pipeline_mode = #tpu.pipeline_mode<synchronous>, transform_indices = @transform_12, window_bounds = array<i64: 1, 128>}, {pipeline_mode = #tpu.pipeline_mode<synchronous>, transform_indices = @transform_13, window_bounds = array<i64: 1, 128>}, {pipeline_mode = #tpu.pipeline_mode<synchronous>, transform_indices = @transform_14, window_bounds = array<i64: 1024, 128>}, {pipeline_mode = #tpu.pipeline_mode<synchronous>, transform_indices = @transform_15, window_bounds = array<i64: 1, 128>}, {pipeline_mode = #tpu.pipeline_mode<synchronous>, transform_indices = @transform_16, window_bounds = array<i64: 1024, 128>}, {pipeline_mode = #tpu.pipeline_mode<synchronous>, transform_indices = @transform_17, window_bounds = array<i64: 1, 128>}, {pipeline_mode = #tpu.pipeline_mode<synchronous>, transform_indices = @transform_18, window_bounds = array<i64: 1, 128>}, {pipeline_mode = #tpu.pipeline_mode<synchronous>, transform_indices = @transform_19, window_bounds = array<i64: 1, 128>}, {pipeline_mode = #tpu.pipeline_mode<synchronous>, transform_indices = @transform_20, window_bounds = array<i64: 1, 128>}, {pipeline_mode = #tpu.pipeline_mode<synchronous>, transform_indices = @transform_21, window_bounds = array<i64: 1, 128>}, {pipeline_mode = #tpu.pipeline_mode<synchronous>, transform_indices = @transform_22, window_bounds = array<i64: 512, 128>}, {pipeline_mode = #tpu.pipeline_mode<synchronous>, transform_indices = @transform_23, window_bounds = array<i64: 1, 128>}, {pipeline_mode = #tpu.pipeline_mode<synchronous>, transform_indices = @transform_24, window_bounds = array<i64: 128, 128>}, {pipeline_mode = #tpu.pipeline_mode<synchronous>, transform_indices = @transform_25, window_bounds = array<i64: 1, 128>}, {transform_indices = @transform_26, window_bounds = array<i64: 4, 2>}, {transform_indices = @transform_27, window_bounds = array<i64: 2>}, {transform_indices = @transform_28, window_bounds = array<i64: 2, 4>}, {transform_indices = @transform_29, window_bounds = array<i64: 4>}, {transform_indices = @transform_30, window_bounds = array<i64: 2, 128>}]} {
    %c0_i32 = arith.constant 0 : i32
    %0 = arith.cmpi eq, %arg1, %c0_i32 : i32
    %1 = arith.extui %0 : i1 to i32
    %c0_i32_0 = arith.constant 0 : i32
    %2 = arith.cmpi ne, %1, %c0_i32_0 : i32
    scf.if %2 {
      %cst_23 = arith.constant 0xFF800000 : f32
      %43 = vector.broadcast %cst_23 : f32 to vector<2x128xf32>
      %c0_24 = arith.constant 0 : index
      %c0_25 = arith.constant 0 : index
      %44 = vector.load %arg33[%c0_24, %c0_25] : memref<2x128xf32, #tpu.memory_space<vmem>>, vector<2x128xf32>
      tpu.vector_store %arg33[%c0_24, %c0_25], %43 {strides = array<i32>} : memref<2x128xf32, #tpu.memory_space<vmem>>, vector<2x128xf32>,
    } else {
    }
    %c0 = arith.constant 0 : index
    %c0_1 = arith.constant 0 : index
    %c0_2 = arith.constant 0 : index
    %3 = vector.load %arg2[%c0, %c0_1, %c0_2] : memref<2x8x1280xf32, #tpu.memory_space<vmem>>, vector<2x8x1280xf32>
    %4 = vector.shape_cast %3 : vector<2x8x1280xf32> to vector<16x1280xf32>
    %5 = arith.truncf %4 : vector<16x1280xf32> to vector<16x1280xbf16>
    %c0_3 = arith.constant 0 : index
    %c0_4 = arith.constant 0 : index
    %6 = vector.load %arg6[%c0_3, %c0_4] : memref<1280x128xbf16, #tpu.memory_space<vmem>>, vector<1280x128xbf16>
    %cst = arith.constant dense<0.000000e+00> : vector<16x128xf32>
    %7 = tpu.matmul %5, %6, %cst {dimension_numbers = #tpu.dot_dimension_numbers<[1], [0], [0], [1], [0, 0, 1, 1], [], []>} : vector<16x1280xbf16>, vector<1280x128xbf16>, vector<16x128xf32> -> vector<16x128xf32>
    %c0_5 = arith.constant 0 : index
    %c0_6 = arith.constant 0 : index
    %8 = vector.load %arg7[%c0_5, %c0_6] : memref<1x128xf32, #tpu.memory_space<vmem>>, vector<1x128xf32>
    %9 = vector.broadcast %8 : vector<1x128xf32> to vector<16x128xf32>
    %10 = arith.addf %7, %9 : vector<16x128xf32>
    %c0_7 = arith.constant 0 : index
    %c0_8 = arith.constant 0 : index
    %11 = vector.load %arg8[%c0_7, %c0_8] : memref<1x128xf32, #tpu.memory_space<vmem>>, vector<1x128xf32>
    %c0_9 = arith.constant 0 : index
    %c0_10 = arith.constant 0 : index
    %12 = vector.load %arg9[%c0_9, %c0_10] : memref<1x128xf32, #tpu.memory_space<vmem>>, vector<1x128xf32>
    %cst_11 = arith.constant dense<0.000000e+00> : vector<16xf32>
    %13 = vector.multi_reduction <add>, %10, %cst_11 [1] : vector<16x128xf32> to vector<16xf32>
    %14 = vector.shape_cast %13 : vector<16xf32> to vector<16x1xf32>
    %15 = arith.mulf %10, %10 : vector<16x128xf32>
    %cst_12 = arith.constant dense<0.000000e+00> : vector<16xf32>
    %16 = vector.multi_reduction <add>, %15, %cst_12 [1] : vector<16x128xf32> to vector<16xf32>
    %17 = vector.shape_cast %16 : vector<16xf32> to vector<16x1xf32>
    %cst_13 = arith.constant 3.125000e-02 : f32
    %18 = vector.broadcast %cst_13 : f32 to vector<16x1xf32>
    %19 = arith.mulf %14, %18 : vector<16x1xf32>
    %cst_14 = arith.constant 3.125000e-02 : f32
    %20 = vector.broadcast %cst_14 : f32 to vector<16x1xf32>
    %21 = arith.mulf %17, %20 : vector<16x1xf32>
    %22 = arith.mulf %19, %19 : vector<16x1xf32>
    %23 = arith.subf %21, %22 : vector<16x1xf32>
    %24 = vector.broadcast %19 : vector<16x1xf32> to vector<16x128xf32>
    %25 = arith.subf %10, %24 : vector<16x128xf32>
    %cst_15 = arith.constant 9.99999974E-6 : f32
    %26 = vector.broadcast %cst_15 : f32 to vector<16x1xf32>
    %27 = arith.addf %23, %26 : vector<16x1xf32>
    %28 = math.rsqrt %27 : vector<16x1xf32>
    %29 = vector.broadcast %28 : vector<16x1xf32> to vector<16x128xf32>
    %30 = arith.mulf %25, %29 : vector<16x128xf32>
    %31 = vector.broadcast %11 : vector<1x128xf32> to vector<16x128xf32>
    %32 = arith.mulf %30, %31 : vector<16x128xf32>
    %33 = vector.broadcast %12 : vector<1x128xf32> to vector<16x128xf32>
    %34 = arith.addf %32, %33 : vector<16x128xf32>
    %35 = vector.shape_cast %34 : vector<16x128xf32> to vector<2x8x128xf32>
    %cst_16 = arith.constant dense<0xFF800000> : vector<2x128xf32>
    %36 = vector.multi_reduction <maximumf>, %35, %cst_16 [1] : vector<2x8x128xf32> to vector<2x128xf32>
    %c0_17 = arith.constant 0 : index
    %c0_18 = arith.constant 0 : index
    %37 = vector.load %arg33[%c0_17, %c0_18] : memref<2x128xf32, #tpu.memory_space<vmem>>, vector<2x128xf32>
    %38 = arith.maximumf %37, %36 : vector<2x128xf32>
    %c0_19 = arith.constant 0 : index
    %c0_20 = arith.constant 0 : index
    %39 = vector.load %arg33[%c0_19, %c0_20] : memref<2x128xf32, #tpu.memory_space<vmem>>, vector<2x128xf32>
    tpu.vector_store %arg33[%c0_19, %c0_20], %38 {strides = array<i32>} : memref<2x128xf32, #tpu.memory_space<vmem>>, vector<2x128xf32>,
    %c0_i32_21 = arith.constant 0 : i32
    %40 = arith.cmpi eq, %arg1, %c0_i32_21 : i32
    %41 = arith.extui %40 : i1 to i32
    %c0_i32_22 = arith.constant 0 : i32
    %42 = arith.cmpi ne, %41, %c0_i32_22 : i32
    scf.if %42 {
      %c0_23 = arith.constant 0 : index
      %c0_24 = arith.constant 0 : index
      %43 = vector.load %arg33[%c0_23, %c0_24] : memref<2x128xf32, #tpu.memory_space<vmem>>, vector<2x128xf32>
      %c0_25 = arith.constant 0 : index
      %c0_26 = arith.constant 0 : index
      %44 = vector.load %arg5[%c0_25, %c0_26] : memref<2x128xf32, #tpu.memory_space<vmem>>, vector<2x128xf32>
      %45 = arith.truncf %44 : vector<2x128xf32> to vector<2x128xbf16>
      %c0_27 = arith.constant 0 : index
      %c0_28 = arith.constant 0 : index
      %46 = vector.load %arg10[%c0_27, %c0_28] : memref<128x128xbf16, #tpu.memory_space<vmem>>, vector<128x128xbf16>
      %cst_29 = arith.constant dense<0.000000e+00> : vector<2x128xf32>
      %47 = tpu.matmul %45, %46, %cst_29 {dimension_numbers = #tpu.dot_dimension_numbers<[1], [0], [0], [1], [0, 0, 1, 1], [], []>} : vector<2x128xbf16>, vector<128x128xbf16>, vector<2x128xf32> -> vector<2x128xf32>
      %c0_30 = arith.constant 0 : index
      %c0_31 = arith.constant 0 : index
      %48 = vector.load %arg11[%c0_30, %c0_31] : memref<1x128xf32, #tpu.memory_space<vmem>>, vector<1x128xf32>
      %49 = vector.broadcast %48 : vector<1x128xf32> to vector<2x128xf32>
      %50 = arith.addf %47, %49 : vector<2x128xf32>
      %cst_32 = arith.constant 0.000000e+00 : f32
      %51 = vector.broadcast %cst_32 : f32 to vector<2x128xf32>
      %52 = arith.maximumf %50, %51 : vector<2x128xf32>
      %53 = arith.truncf %52 : vector<2x128xf32> to vector<2x128xbf16>
      %c0_33 = arith.constant 0 : index
      %c0_34 = arith.constant 0 : index
      %54 = vector.load %arg12[%c0_33, %c0_34] : memref<128x128xbf16, #tpu.memory_space<vmem>>, vector<128x128xbf16>
      %cst_35 = arith.constant dense<0.000000e+00> : vector<2x128xf32>
      %55 = tpu.matmul %53, %54, %cst_35 {dimension_numbers = #tpu.dot_dimension_numbers<[1], [0], [0], [1], [0, 0, 1, 1], [], []>} : vector<2x128xbf16>, vector<128x128xbf16>, vector<2x128xf32> -> vector<2x128xf32>
      %c0_36 = arith.constant 0 : index
      %c0_37 = arith.constant 0 : index
      %56 = vector.load %arg13[%c0_36, %c0_37] : memref<1x128xf32, #tpu.memory_space<vmem>>, vector<1x128xf32>
      %57 = vector.broadcast %56 : vector<1x128xf32> to vector<2x128xf32>
      %58 = arith.addf %55, %57 : vector<2x128xf32>
      %c0_38 = arith.constant 0 : index
      %c0_39 = arith.constant 0 : index
      %59 = vector.load %arg14[%c0_38, %c0_39] : memref<1x128xf32, #tpu.memory_space<vmem>>, vector<1x128xf32>
      %c0_40 = arith.constant 0 : index
      %c0_41 = arith.constant 0 : index
      %60 = vector.load %arg15[%c0_40, %c0_41] : memref<1x128xf32, #tpu.memory_space<vmem>>, vector<1x128xf32>
      %cst_42 = arith.constant dense<0.000000e+00> : vector<2xf32>
      %61 = vector.multi_reduction <add>, %58, %cst_42 [1] : vector<2x128xf32> to vector<2xf32>
      %62 = vector.shape_cast %61 : vector<2xf32> to vector<2x1xf32>
      %63 = arith.mulf %58, %58 : vector<2x128xf32>
      %cst_43 = arith.constant dense<0.000000e+00> : vector<2xf32>
      %64 = vector.multi_reduction <add>, %63, %cst_43 [1] : vector<2x128xf32> to vector<2xf32>
      %65 = vector.shape_cast %64 : vector<2xf32> to vector<2x1xf32>
      %cst_44 = arith.constant 3.125000e-02 : f32
      %66 = vector.broadcast %cst_44 : f32 to vector<2x1xf32>
      %67 = arith.mulf %62, %66 : vector<2x1xf32>
      %cst_45 = arith.constant 3.125000e-02 : f32
      %68 = vector.broadcast %cst_45 : f32 to vector<2x1xf32>
      %69 = arith.mulf %65, %68 : vector<2x1xf32>
      %70 = arith.mulf %67, %67 : vector<2x1xf32>
      %71 = arith.subf %69, %70 : vector<2x1xf32>
      %72 = vector.broadcast %67 : vector<2x1xf32> to vector<2x128xf32>
      %73 = arith.subf %58, %72 : vector<2x128xf32>
      %cst_46 = arith.constant 9.99999974E-6 : f32
      %74 = vector.broadcast %cst_46 : f32 to vector<2x1xf32>
      %75 = arith.addf %71, %74 : vector<2x1xf32>
      %76 = math.rsqrt %75 : vector<2x1xf32>
      %77 = vector.broadcast %76 : vector<2x1xf32> to vector<2x128xf32>
      %78 = arith.mulf %73, %77 : vector<2x128xf32>
      %79 = vector.broadcast %59 : vector<1x128xf32> to vector<2x128xf32>
      %80 = arith.mulf %78, %79 : vector<2x128xf32>
      %81 = vector.broadcast %60 : vector<1x128xf32> to vector<2x128xf32>
      %82 = arith.addf %80, %81 : vector<2x128xf32>
      %c0_47 = arith.constant 0 : index
      %c0_48 = arith.constant 0 : index
      %83 = vector.load %arg3[%c0_47, %c0_48] : memref<2x1024xf32, #tpu.memory_space<vmem>>, vector<2x1024xf32>
      %84 = arith.truncf %83 : vector<2x1024xf32> to vector<2x1024xbf16>
      %c0_49 = arith.constant 0 : index
      %c0_50 = arith.constant 0 : index
      %85 = vector.load %arg16[%c0_49, %c0_50] : memref<1024x128xbf16, #tpu.memory_space<vmem>>, vector<1024x128xbf16>
      %cst_51 = arith.constant dense<0.000000e+00> : vector<2x128xf32>
      %86 = tpu.matmul %84, %85, %cst_51 {dimension_numbers = #tpu.dot_dimension_numbers<[1], [0], [0], [1], [0, 0, 1, 1], [], []>} : vector<2x1024xbf16>, vector<1024x128xbf16>, vector<2x128xf32> -> vector<2x128xf32>
      %c0_52 = arith.constant 0 : index
      %c0_53 = arith.constant 0 : index
      %87 = vector.load %arg17[%c0_52, %c0_53] : memref<1x128xf32, #tpu.memory_space<vmem>>, vector<1x128xf32>
      %88 = vector.broadcast %87 : vector<1x128xf32> to vector<2x128xf32>
      %89 = arith.addf %86, %88 : vector<2x128xf32>
      %c0_54 = arith.constant 0 : index
      %c0_55 = arith.constant 0 : index
      %90 = vector.load %arg4[%c0_54, %c0_55] : memref<2x1024xf32, #tpu.memory_space<vmem>>, vector<2x1024xf32>
      %91 = arith.truncf %90 : vector<2x1024xf32> to vector<2x1024xbf16>
      %c0_56 = arith.constant 0 : index
      %c0_57 = arith.constant 0 : index
      %92 = vector.load %arg18[%c0_56, %c0_57] : memref<1024x128xbf16, #tpu.memory_space<vmem>>, vector<1024x128xbf16>
      %cst_58 = arith.constant dense<0.000000e+00> : vector<2x128xf32>
      %93 = tpu.matmul %91, %92, %cst_58 {dimension_numbers = #tpu.dot_dimension_numbers<[1], [0], [0], [1], [0, 0, 1, 1], [], []>} : vector<2x1024xbf16>, vector<1024x128xbf16>, vector<2x128xf32> -> vector<2x128xf32>
      %c0_59 = arith.constant 0 : index
      %c0_60 = arith.constant 0 : index
      %94 = vector.load %arg19[%c0_59, %c0_60] : memref<1x128xf32, #tpu.memory_space<vmem>>, vector<1x128xf32>
      %95 = vector.broadcast %94 : vector<1x128xf32> to vector<2x128xf32>
      %96 = arith.addf %93, %95 : vector<2x128xf32>
      %97 = arith.addf %89, %96 : vector<2x128xf32>
      %c0_61 = arith.constant 0 : index
      %c0_62 = arith.constant 0 : index
      %98 = vector.load %arg20[%c0_61, %c0_62] : memref<1x128xf32, #tpu.memory_space<vmem>>, vector<1x128xf32>
      %c0_63 = arith.constant 0 : index
      %c0_64 = arith.constant 0 : index
      %99 = vector.load %arg21[%c0_63, %c0_64] : memref<1x128xf32, #tpu.memory_space<vmem>>, vector<1x128xf32>
      %cst_65 = arith.constant dense<0.000000e+00> : vector<2xf32>
      %100 = vector.multi_reduction <add>, %97, %cst_65 [1] : vector<2x128xf32> to vector<2xf32>
      %101 = vector.shape_cast %100 : vector<2xf32> to vector<2x1xf32>
      %102 = arith.mulf %97, %97 : vector<2x128xf32>
      %cst_66 = arith.constant dense<0.000000e+00> : vector<2xf32>
      %103 = vector.multi_reduction <add>, %102, %cst_66 [1] : vector<2x128xf32> to vector<2xf32>
      %104 = vector.shape_cast %103 : vector<2xf32> to vector<2x1xf32>
      %cst_67 = arith.constant 3.125000e-02 : f32
      %105 = vector.broadcast %cst_67 : f32 to vector<2x1xf32>
      %106 = arith.mulf %101, %105 : vector<2x1xf32>
      %cst_68 = arith.constant 3.125000e-02 : f32
      %107 = vector.broadcast %cst_68 : f32 to vector<2x1xf32>
      %108 = arith.mulf %104, %107 : vector<2x1xf32>
      %109 = arith.mulf %106, %106 : vector<2x1xf32>
      %110 = arith.subf %108, %109 : vector<2x1xf32>
      %111 = vector.broadcast %106 : vector<2x1xf32> to vector<2x128xf32>
      %112 = arith.subf %97, %111 : vector<2x128xf32>
      %cst_69 = arith.constant 9.99999974E-6 : f32
      %113 = vector.broadcast %cst_69 : f32 to vector<2x1xf32>
      %114 = arith.addf %110, %113 : vector<2x1xf32>
      %115 = math.rsqrt %114 : vector<2x1xf32>
      %116 = vector.broadcast %115 : vector<2x1xf32> to vector<2x128xf32>
      %117 = arith.mulf %112, %116 : vector<2x128xf32>
      %118 = vector.broadcast %98 : vector<1x128xf32> to vector<2x128xf32>
      %119 = arith.mulf %117, %118 : vector<2x128xf32>
      %120 = vector.broadcast %99 : vector<1x128xf32> to vector<2x128xf32>
      %121 = arith.addf %119, %120 : vector<2x128xf32>
      %122 = arith.subf %89, %96 : vector<2x128xf32>
      %c0_70 = arith.constant 0 : index
      %c0_71 = arith.constant 0 : index
      %123 = vector.load %arg22[%c0_70, %c0_71] : memref<1x128xf32, #tpu.memory_space<vmem>>, vector<1x128xf32>
      %c0_72 = arith.constant 0 : index
      %c0_73 = arith.constant 0 : index
      %124 = vector.load %arg23[%c0_72, %c0_73] : memref<1x128xf32, #tpu.memory_space<vmem>>, vector<1x128xf32>
      %cst_74 = arith.constant dense<0.000000e+00> : vector<2xf32>
      %125 = vector.multi_reduction <add>, %122, %cst_74 [1] : vector<2x128xf32> to vector<2xf32>
      %126 = vector.shape_cast %125 : vector<2xf32> to vector<2x1xf32>
      %127 = arith.mulf %122, %122 : vector<2x128xf32>
      %cst_75 = arith.constant dense<0.000000e+00> : vector<2xf32>
      %128 = vector.multi_reduction <add>, %127, %cst_75 [1] : vector<2x128xf32> to vector<2xf32>
      %129 = vector.shape_cast %128 : vector<2xf32> to vector<2x1xf32>
      %cst_76 = arith.constant 3.125000e-02 : f32
      %130 = vector.broadcast %cst_76 : f32 to vector<2x1xf32>
      %131 = arith.mulf %126, %130 : vector<2x1xf32>
      %cst_77 = arith.constant 3.125000e-02 : f32
      %132 = vector.broadcast %cst_77 : f32 to vector<2x1xf32>
      %133 = arith.mulf %129, %132 : vector<2x1xf32>
      %134 = arith.mulf %131, %131 : vector<2x1xf32>
      %135 = arith.subf %133, %134 : vector<2x1xf32>
      %136 = vector.broadcast %131 : vector<2x1xf32> to vector<2x128xf32>
      %137 = arith.subf %122, %136 : vector<2x128xf32>
      %cst_78 = arith.constant 9.99999974E-6 : f32
      %138 = vector.broadcast %cst_78 : f32 to vector<2x1xf32>
      %139 = arith.addf %135, %138 : vector<2x1xf32>
      %140 = math.rsqrt %139 : vector<2x1xf32>
      %141 = vector.broadcast %140 : vector<2x1xf32> to vector<2x128xf32>
      %142 = arith.mulf %137, %141 : vector<2x128xf32>
      %143 = vector.broadcast %123 : vector<1x128xf32> to vector<2x128xf32>
      %144 = arith.mulf %142, %143 : vector<2x128xf32>
      %145 = vector.broadcast %124 : vector<1x128xf32> to vector<2x128xf32>
      %146 = arith.addf %144, %145 : vector<2x128xf32>
      %147 = tpu.iota {dimensions = array<i32: 1>} : vector<2x128xi32>
      %c32_i32 = arith.constant 32 : i32
      %148 = vector.broadcast %c32_i32 : i32 to vector<2x128xi32>
      %149 = arith.cmpi slt, %147, %148 : vector<2x128xi32>
      %cst_79 = arith.constant dense<0.000000e+00> : vector<2xf32>
      %150 = vector.multi_reduction <add>, %82, %cst_79 [1] : vector<2x128xf32> to vector<2xf32>
      %151 = vector.shape_cast %150 : vector<2xf32> to vector<2x1xf32>
      %cst_80 = arith.constant 3.125000e-02 : f32
      %152 = vector.broadcast %cst_80 : f32 to vector<2x1xf32>
      %153 = arith.mulf %151, %152 : vector<2x1xf32>
      %cst_81 = arith.constant dense<0.000000e+00> : vector<2xf32>
      %154 = vector.multi_reduction <add>, %43, %cst_81 [1] : vector<2x128xf32> to vector<2xf32>
      %155 = vector.shape_cast %154 : vector<2xf32> to vector<2x1xf32>
      %cst_82 = arith.constant 3.125000e-02 : f32
      %156 = vector.broadcast %cst_82 : f32 to vector<2x1xf32>
      %157 = arith.mulf %155, %156 : vector<2x1xf32>
      %cst_83 = arith.constant dense<0.000000e+00> : vector<2xf32>
      %158 = vector.multi_reduction <add>, %121, %cst_83 [1] : vector<2x128xf32> to vector<2xf32>
      %159 = vector.shape_cast %158 : vector<2xf32> to vector<2x1xf32>
      %cst_84 = arith.constant 3.125000e-02 : f32
      %160 = vector.broadcast %cst_84 : f32 to vector<2x1xf32>
      %161 = arith.mulf %159, %160 : vector<2x1xf32>
      %cst_85 = arith.constant dense<0.000000e+00> : vector<2xf32>
      %162 = vector.multi_reduction <add>, %146, %cst_85 [1] : vector<2x128xf32> to vector<2xf32>
      %163 = vector.shape_cast %162 : vector<2xf32> to vector<2x1xf32>
      %cst_86 = arith.constant 3.125000e-02 : f32
      %164 = vector.broadcast %cst_86 : f32 to vector<2x1xf32>
      %165 = arith.mulf %163, %164 : vector<2x1xf32>
      %cst_87 = arith.constant 0xFF800000 : f32
      %166 = vector.broadcast %cst_87 : f32 to vector<2x128xf32>
      %167 = arith.select %149, %82, %166 : vector<2x128xi1>, vector<2x128xf32>
      %cst_88 = arith.constant dense<0xFF800000> : vector<2xf32>
      %168 = vector.multi_reduction <maximumf>, %167, %cst_88 [1] : vector<2x128xf32> to vector<2xf32>
      %169 = vector.shape_cast %168 : vector<2xf32> to vector<2x1xf32>
      %cst_89 = arith.constant 0xFF800000 : f32
      %170 = vector.broadcast %cst_89 : f32 to vector<2x128xf32>
      %171 = arith.select %149, %43, %170 : vector<2x128xi1>, vector<2x128xf32>
      %cst_90 = arith.constant dense<0xFF800000> : vector<2xf32>
      %172 = vector.multi_reduction <maximumf>, %171, %cst_90 [1] : vector<2x128xf32> to vector<2xf32>
      %173 = vector.shape_cast %172 : vector<2xf32> to vector<2x1xf32>
      %cst_91 = arith.constant 0xFF800000 : f32
      %174 = vector.broadcast %cst_91 : f32 to vector<2x128xf32>
      %175 = arith.select %149, %121, %174 : vector<2x128xi1>, vector<2x128xf32>
      %cst_92 = arith.constant dense<0xFF800000> : vector<2xf32>
      %176 = vector.multi_reduction <maximumf>, %175, %cst_92 [1] : vector<2x128xf32> to vector<2xf32>
      %177 = vector.shape_cast %176 : vector<2xf32> to vector<2x1xf32>
      %cst_93 = arith.constant 0xFF800000 : f32
      %178 = vector.broadcast %cst_93 : f32 to vector<2x128xf32>
      %179 = arith.select %149, %146, %178 : vector<2x128xi1>, vector<2x128xf32>
      %cst_94 = arith.constant dense<0xFF800000> : vector<2xf32>
      %180 = vector.multi_reduction <maximumf>, %179, %cst_94 [1] : vector<2x128xf32> to vector<2xf32>
      %181 = vector.shape_cast %180 : vector<2xf32> to vector<2x1xf32>
      %c0_95 = arith.constant 0 : index
      %c0_96 = arith.constant 0 : index
      %182 = memref.load %arg28[%c0_95, %c0_96] : memref<4x2xf32, #tpu.memory_space<smem>>
      %183 = vector.broadcast %182 : f32 to vector<2x1xf32>
      %184 = arith.mulf %153, %183 : vector<2x1xf32>
      %c1 = arith.constant 1 : index
      %c0_97 = arith.constant 0 : index
      %185 = memref.load %arg28[%c1, %c0_97] : memref<4x2xf32, #tpu.memory_space<smem>>
      %186 = vector.broadcast %185 : f32 to vector<2x1xf32>
      %187 = arith.mulf %157, %186 : vector<2x1xf32>
      %188 = arith.addf %184, %187 : vector<2x1xf32>
      %c2 = arith.constant 2 : index
      %c0_98 = arith.constant 0 : index
      %189 = memref.load %arg28[%c2, %c0_98] : memref<4x2xf32, #tpu.memory_space<smem>>
      %190 = vector.broadcast %189 : f32 to vector<2x1xf32>
      %191 = arith.mulf %161, %190 : vector<2x1xf32>
      %192 = arith.addf %188, %191 : vector<2x1xf32>
      %c3 = arith.constant 3 : index
      %c0_99 = arith.constant 0 : index
      %193 = memref.load %arg28[%c3, %c0_99] : memref<4x2xf32, #tpu.memory_space<smem>>
      %194 = vector.broadcast %193 : f32 to vector<2x1xf32>
      %195 = arith.mulf %165, %194 : vector<2x1xf32>
      %196 = arith.addf %192, %195 : vector<2x1xf32>
      %c0_100 = arith.constant 0 : index
      %197 = memref.load %arg29[%c0_100] : memref<2xf32, #tpu.memory_space<smem>>
      %198 = vector.broadcast %197 : f32 to vector<2x1xf32>
      %199 = arith.addf %196, %198 : vector<2x1xf32>
      %cst_101 = arith.constant 0.000000e+00 : f32
      %200 = vector.broadcast %cst_101 : f32 to vector<2x1xf32>
      %201 = arith.maximumf %199, %200 : vector<2x1xf32>
      %c0_102 = arith.constant 0 : index
      %c1_103 = arith.constant 1 : index
      %202 = memref.load %arg28[%c0_102, %c1_103] : memref<4x2xf32, #tpu.memory_space<smem>>
      %203 = vector.broadcast %202 : f32 to vector<2x1xf32>
      %204 = arith.mulf %153, %203 : vector<2x1xf32>
      %c1_104 = arith.constant 1 : index
      %c1_105 = arith.constant 1 : index
      %205 = memref.load %arg28[%c1_104, %c1_105] : memref<4x2xf32, #tpu.memory_space<smem>>
      %206 = vector.broadcast %205 : f32 to vector<2x1xf32>
      %207 = arith.mulf %157, %206 : vector<2x1xf32>
      %208 = arith.addf %204, %207 : vector<2x1xf32>
      %c2_106 = arith.constant 2 : index
      %c1_107 = arith.constant 1 : index
      %209 = memref.load %arg28[%c2_106, %c1_107] : memref<4x2xf32, #tpu.memory_space<smem>>
      %210 = vector.broadcast %209 : f32 to vector<2x1xf32>
      %211 = arith.mulf %161, %210 : vector<2x1xf32>
      %212 = arith.addf %208, %211 : vector<2x1xf32>
      %c3_108 = arith.constant 3 : index
      %c1_109 = arith.constant 1 : index
      %213 = memref.load %arg28[%c3_108, %c1_109] : memref<4x2xf32, #tpu.memory_space<smem>>
      %214 = vector.broadcast %213 : f32 to vector<2x1xf32>
      %215 = arith.mulf %165, %214 : vector<2x1xf32>
      %216 = arith.addf %212, %215 : vector<2x1xf32>
      %c1_110 = arith.constant 1 : index
      %217 = memref.load %arg29[%c1_110] : memref<2xf32, #tpu.memory_space<smem>>
      %218 = vector.broadcast %217 : f32 to vector<2x1xf32>
      %219 = arith.addf %216, %218 : vector<2x1xf32>
      %cst_111 = arith.constant 0.000000e+00 : f32
      %220 = vector.broadcast %cst_111 : f32 to vector<2x1xf32>
      %221 = arith.maximumf %219, %220 : vector<2x1xf32>
      %c0_112 = arith.constant 0 : index
      %c0_113 = arith.constant 0 : index
      %222 = memref.load %arg30[%c0_112, %c0_113] : memref<2x4xf32, #tpu.memory_space<smem>>
      %223 = vector.broadcast %222 : f32 to vector<2x1xf32>
      %224 = arith.mulf %201, %223 : vector<2x1xf32>
      %c1_114 = arith.constant 1 : index
      %c0_115 = arith.constant 0 : index
      %225 = memref.load %arg30[%c1_114, %c0_115] : memref<2x4xf32, #tpu.memory_space<smem>>
      %226 = vector.broadcast %225 : f32 to vector<2x1xf32>
      %227 = arith.mulf %221, %226 : vector<2x1xf32>
      %228 = arith.addf %224, %227 : vector<2x1xf32>
      %c0_116 = arith.constant 0 : index
      %229 = memref.load %arg31[%c0_116] : memref<4xf32, #tpu.memory_space<smem>>
      %230 = vector.broadcast %229 : f32 to vector<2x1xf32>
      %231 = arith.addf %228, %230 : vector<2x1xf32>
      %c0_117 = arith.constant 0 : index
      %c1_118 = arith.constant 1 : index
      %232 = memref.load %arg30[%c0_117, %c1_118] : memref<2x4xf32, #tpu.memory_space<smem>>
      %233 = vector.broadcast %232 : f32 to vector<2x1xf32>
      %234 = arith.mulf %201, %233 : vector<2x1xf32>
      %c1_119 = arith.constant 1 : index
      %c1_120 = arith.constant 1 : index
      %235 = memref.load %arg30[%c1_119, %c1_120] : memref<2x4xf32, #tpu.memory_space<smem>>
      %236 = vector.broadcast %235 : f32 to vector<2x1xf32>
      %237 = arith.mulf %221, %236 : vector<2x1xf32>
      %238 = arith.addf %234, %237 : vector<2x1xf32>
      %c1_121 = arith.constant 1 : index
      %239 = memref.load %arg31[%c1_121] : memref<4xf32, #tpu.memory_space<smem>>
      %240 = vector.broadcast %239 : f32 to vector<2x1xf32>
      %241 = arith.addf %238, %240 : vector<2x1xf32>
      %c0_122 = arith.constant 0 : index
      %c2_123 = arith.constant 2 : index
      %242 = memref.load %arg30[%c0_122, %c2_123] : memref<2x4xf32, #tpu.memory_space<smem>>
      %243 = vector.broadcast %242 : f32 to vector<2x1xf32>
      %244 = arith.mulf %201, %243 : vector<2x1xf32>
      %c1_124 = arith.constant 1 : index
      %c2_125 = arith.constant 2 : index
      %245 = memref.load %arg30[%c1_124, %c2_125] : memref<2x4xf32, #tpu.memory_space<smem>>
      %246 = vector.broadcast %245 : f32 to vector<2x1xf32>
      %247 = arith.mulf %221, %246 : vector<2x1xf32>
      %248 = arith.addf %244, %247 : vector<2x1xf32>
      %c2_126 = arith.constant 2 : index
      %249 = memref.load %arg31[%c2_126] : memref<4xf32, #tpu.memory_space<smem>>
      %250 = vector.broadcast %249 : f32 to vector<2x1xf32>
      %251 = arith.addf %248, %250 : vector<2x1xf32>
      %c0_127 = arith.constant 0 : index
      %c3_128 = arith.constant 3 : index
      %252 = memref.load %arg30[%c0_127, %c3_128] : memref<2x4xf32, #tpu.memory_space<smem>>
      %253 = vector.broadcast %252 : f32 to vector<2x1xf32>
      %254 = arith.mulf %201, %253 : vector<2x1xf32>
      %c1_129 = arith.constant 1 : index
      %c3_130 = arith.constant 3 : index
      %255 = memref.load %arg30[%c1_129, %c3_130] : memref<2x4xf32, #tpu.memory_space<smem>>
      %256 = vector.broadcast %255 : f32 to vector<2x1xf32>
      %257 = arith.mulf %221, %256 : vector<2x1xf32>
      %258 = arith.addf %254, %257 : vector<2x1xf32>
      %c3_131 = arith.constant 3 : index
      %259 = memref.load %arg31[%c3_131] : memref<4xf32, #tpu.memory_space<smem>>
      %260 = vector.broadcast %259 : f32 to vector<2x1xf32>
      %261 = arith.addf %258, %260 : vector<2x1xf32>
      %c0_132 = arith.constant 0 : index
      %c0_133 = arith.constant 0 : index
      %262 = memref.load %arg28[%c0_132, %c0_133] : memref<4x2xf32, #tpu.memory_space<smem>>
      %263 = vector.broadcast %262 : f32 to vector<2x1xf32>
      %264 = arith.mulf %169, %263 : vector<2x1xf32>
      %c1_134 = arith.constant 1 : index
      %c0_135 = arith.constant 0 : index
      %265 = memref.load %arg28[%c1_134, %c0_135] : memref<4x2xf32, #tpu.memory_space<smem>>
      %266 = vector.broadcast %265 : f32 to vector<2x1xf32>
      %267 = arith.mulf %173, %266 : vector<2x1xf32>
      %268 = arith.addf %264, %267 : vector<2x1xf32>
      %c2_136 = arith.constant 2 : index
      %c0_137 = arith.constant 0 : index
      %269 = memref.load %arg28[%c2_136, %c0_137] : memref<4x2xf32, #tpu.memory_space<smem>>
      %270 = vector.broadcast %269 : f32 to vector<2x1xf32>
      %271 = arith.mulf %177, %270 : vector<2x1xf32>
      %272 = arith.addf %268, %271 : vector<2x1xf32>
      %c3_138 = arith.constant 3 : index
      %c0_139 = arith.constant 0 : index
      %273 = memref.load %arg28[%c3_138, %c0_139] : memref<4x2xf32, #tpu.memory_space<smem>>
      %274 = vector.broadcast %273 : f32 to vector<2x1xf32>
      %275 = arith.mulf %181, %274 : vector<2x1xf32>
      %276 = arith.addf %272, %275 : vector<2x1xf32>
      %c0_140 = arith.constant 0 : index
      %277 = memref.load %arg29[%c0_140] : memref<2xf32, #tpu.memory_space<smem>>
      %278 = vector.broadcast %277 : f32 to vector<2x1xf32>
      %279 = arith.addf %276, %278 : vector<2x1xf32>
      %cst_141 = arith.constant 0.000000e+00 : f32
      %280 = vector.broadcast %cst_141 : f32 to vector<2x1xf32>
      %281 = arith.maximumf %279, %280 : vector<2x1xf32>
      %c0_142 = arith.constant 0 : index
      %c1_143 = arith.constant 1 : index
      %282 = memref.load %arg28[%c0_142, %c1_143] : memref<4x2xf32, #tpu.memory_space<smem>>
      %283 = vector.broadcast %282 : f32 to vector<2x1xf32>
      %284 = arith.mulf %169, %283 : vector<2x1xf32>
      %c1_144 = arith.constant 1 : index
      %c1_145 = arith.constant 1 : index
      %285 = memref.load %arg28[%c1_144, %c1_145] : memref<4x2xf32, #tpu.memory_space<smem>>
      %286 = vector.broadcast %285 : f32 to vector<2x1xf32>
      %287 = arith.mulf %173, %286 : vector<2x1xf32>
      %288 = arith.addf %284, %287 : vector<2x1xf32>
      %c2_146 = arith.constant 2 : index
      %c1_147 = arith.constant 1 : index
      %289 = memref.load %arg28[%c2_146, %c1_147] : memref<4x2xf32, #tpu.memory_space<smem>>
      %290 = vector.broadcast %289 : f32 to vector<2x1xf32>
      %291 = arith.mulf %177, %290 : vector<2x1xf32>
      %292 = arith.addf %288, %291 : vector<2x1xf32>
      %c3_148 = arith.constant 3 : index
      %c1_149 = arith.constant 1 : index
      %293 = memref.load %arg28[%c3_148, %c1_149] : memref<4x2xf32, #tpu.memory_space<smem>>
      %294 = vector.broadcast %293 : f32 to vector<2x1xf32>
      %295 = arith.mulf %181, %294 : vector<2x1xf32>
      %296 = arith.addf %292, %295 : vector<2x1xf32>
      %c1_150 = arith.constant 1 : index
      %297 = memref.load %arg29[%c1_150] : memref<2xf32, #tpu.memory_space<smem>>
      %298 = vector.broadcast %297 : f32 to vector<2x1xf32>
      %299 = arith.addf %296, %298 : vector<2x1xf32>
      %cst_151 = arith.constant 0.000000e+00 : f32
      %300 = vector.broadcast %cst_151 : f32 to vector<2x1xf32>
      %301 = arith.maximumf %299, %300 : vector<2x1xf32>
      %c0_152 = arith.constant 0 : index
      %c0_153 = arith.constant 0 : index
      %302 = memref.load %arg30[%c0_152, %c0_153] : memref<2x4xf32, #tpu.memory_space<smem>>
      %303 = vector.broadcast %302 : f32 to vector<2x1xf32>
      %304 = arith.mulf %281, %303 : vector<2x1xf32>
      %c1_154 = arith.constant 1 : index
      %c0_155 = arith.constant 0 : index
      %305 = memref.load %arg30[%c1_154, %c0_155] : memref<2x4xf32, #tpu.memory_space<smem>>
      %306 = vector.broadcast %305 : f32 to vector<2x1xf32>
      %307 = arith.mulf %301, %306 : vector<2x1xf32>
      %308 = arith.addf %304, %307 : vector<2x1xf32>
      %c0_156 = arith.constant 0 : index
      %309 = memref.load %arg31[%c0_156] : memref<4xf32, #tpu.memory_space<smem>>
      %310 = vector.broadcast %309 : f32 to vector<2x1xf32>
      %311 = arith.addf %308, %310 : vector<2x1xf32>
      %c0_157 = arith.constant 0 : index
      %c1_158 = arith.constant 1 : index
      %312 = memref.load %arg30[%c0_157, %c1_158] : memref<2x4xf32, #tpu.memory_space<smem>>
      %313 = vector.broadcast %312 : f32 to vector<2x1xf32>
      %314 = arith.mulf %281, %313 : vector<2x1xf32>
      %c1_159 = arith.constant 1 : index
      %c1_160 = arith.constant 1 : index
      %315 = memref.load %arg30[%c1_159, %c1_160] : memref<2x4xf32, #tpu.memory_space<smem>>
      %316 = vector.broadcast %315 : f32 to vector<2x1xf32>
      %317 = arith.mulf %301, %316 : vector<2x1xf32>
      %318 = arith.addf %314, %317 : vector<2x1xf32>
      %c1_161 = arith.constant 1 : index
      %319 = memref.load %arg31[%c1_161] : memref<4xf32, #tpu.memory_space<smem>>
      %320 = vector.broadcast %319 : f32 to vector<2x1xf32>
      %321 = arith.addf %318, %320 : vector<2x1xf32>
      %c0_162 = arith.constant 0 : index
      %c2_163 = arith.constant 2 : index
      %322 = memref.load %arg30[%c0_162, %c2_163] : memref<2x4xf32, #tpu.memory_space<smem>>
      %323 = vector.broadcast %322 : f32 to vector<2x1xf32>
      %324 = arith.mulf %281, %323 : vector<2x1xf32>
      %c1_164 = arith.constant 1 : index
      %c2_165 = arith.constant 2 : index
      %325 = memref.load %arg30[%c1_164, %c2_165] : memref<2x4xf32, #tpu.memory_space<smem>>
      %326 = vector.broadcast %325 : f32 to vector<2x1xf32>
      %327 = arith.mulf %301, %326 : vector<2x1xf32>
      %328 = arith.addf %324, %327 : vector<2x1xf32>
      %c2_166 = arith.constant 2 : index
      %329 = memref.load %arg31[%c2_166] : memref<4xf32, #tpu.memory_space<smem>>
      %330 = vector.broadcast %329 : f32 to vector<2x1xf32>
      %331 = arith.addf %328, %330 : vector<2x1xf32>
      %c0_167 = arith.constant 0 : index
      %c3_168 = arith.constant 3 : index
      %332 = memref.load %arg30[%c0_167, %c3_168] : memref<2x4xf32, #tpu.memory_space<smem>>
      %333 = vector.broadcast %332 : f32 to vector<2x1xf32>
      %334 = arith.mulf %281, %333 : vector<2x1xf32>
      %c1_169 = arith.constant 1 : index
      %c3_170 = arith.constant 3 : index
      %335 = memref.load %arg30[%c1_169, %c3_170] : memref<2x4xf32, #tpu.memory_space<smem>>
      %336 = vector.broadcast %335 : f32 to vector<2x1xf32>
      %337 = arith.mulf %301, %336 : vector<2x1xf32>
      %338 = arith.addf %334, %337 : vector<2x1xf32>
      %c3_171 = arith.constant 3 : index
      %339 = memref.load %arg31[%c3_171] : memref<4xf32, #tpu.memory_space<smem>>
      %340 = vector.broadcast %339 : f32 to vector<2x1xf32>
      %341 = arith.addf %338, %340 : vector<2x1xf32>
      %342 = arith.addf %231, %311 : vector<2x1xf32>
      %343 = arith.negf %342 : vector<2x1xf32>
      %344 = math.exp %343 : vector<2x1xf32>
      %cst_172 = arith.constant 1.000000e+00 : f32
      %345 = vector.broadcast %cst_172 : f32 to vector<2x1xf32>
      %346 = arith.addf %345, %344 : vector<2x1xf32>
      %347 = arith.divf %345, %346 : vector<2x1xf32>
      %348 = arith.addf %241, %321 : vector<2x1xf32>
      %349 = arith.negf %348 : vector<2x1xf32>
      %350 = math.exp %349 : vector<2x1xf32>
      %cst_173 = arith.constant 1.000000e+00 : f32
      %351 = vector.broadcast %cst_173 : f32 to vector<2x1xf32>
      %352 = arith.addf %351, %350 : vector<2x1xf32>
      %353 = arith.divf %351, %352 : vector<2x1xf32>
      %354 = arith.addf %251, %331 : vector<2x1xf32>
      %355 = arith.negf %354 : vector<2x1xf32>
      %356 = math.exp %355 : vector<2x1xf32>
      %cst_174 = arith.constant 1.000000e+00 : f32
      %357 = vector.broadcast %cst_174 : f32 to vector<2x1xf32>
      %358 = arith.addf %357, %356 : vector<2x1xf32>
      %359 = arith.divf %357, %358 : vector<2x1xf32>
      %360 = arith.addf %261, %341 : vector<2x1xf32>
      %361 = arith.negf %360 : vector<2x1xf32>
      %362 = math.exp %361 : vector<2x1xf32>
      %cst_175 = arith.constant 1.000000e+00 : f32
      %363 = vector.broadcast %cst_175 : f32 to vector<2x1xf32>
      %364 = arith.addf %363, %362 : vector<2x1xf32>
      %365 = arith.divf %363, %364 : vector<2x1xf32>
      %366 = vector.broadcast %347 : vector<2x1xf32> to vector<2x128xf32>
      %367 = arith.mulf %82, %366 : vector<2x128xf32>
      %368 = vector.broadcast %353 : vector<2x1xf32> to vector<2x128xf32>
      %369 = arith.mulf %43, %368 : vector<2x128xf32>
      %370 = vector.broadcast %359 : vector<2x1xf32> to vector<2x128xf32>
      %371 = arith.mulf %121, %370 : vector<2x128xf32>
      %372 = vector.broadcast %365 : vector<2x1xf32> to vector<2x128xf32>
      %373 = arith.mulf %146, %372 : vector<2x128xf32>
      %374 = tpu.concatenate %367, %369, %371, %373 in 1 : vector<2x128xf32>, vector<2x128xf32>, vector<2x128xf32>, vector<2x128xf32> -> vector<2x512xf32>
      %375 = arith.truncf %374 : vector<2x512xf32> to vector<2x512xbf16>
      %c0_176 = arith.constant 0 : index
      %c0_177 = arith.constant 0 : index
      %376 = vector.load %arg24[%c0_176, %c0_177] : memref<512x128xbf16, #tpu.memory_space<vmem>>, vector<512x128xbf16>
      %cst_178 = arith.constant dense<0.000000e+00> : vector<2x128xf32>
      %377 = tpu.matmul %375, %376, %cst_178 {dimension_numbers = #tpu.dot_dimension_numbers<[1], [0], [0], [1], [0, 0, 1, 1], [], []>} : vector<2x512xbf16>, vector<512x128xbf16>, vector<2x128xf32> -> vector<2x128xf32>
      %c0_179 = arith.constant 0 : index
      %c0_180 = arith.constant 0 : index
      %378 = vector.load %arg25[%c0_179, %c0_180] : memref<1x128xf32, #tpu.memory_space<vmem>>, vector<1x128xf32>
      %379 = vector.broadcast %378 : vector<1x128xf32> to vector<2x128xf32>
      %380 = arith.addf %377, %379 : vector<2x128xf32>
      %cst_181 = arith.constant 0.000000e+00 : f32
      %381 = vector.broadcast %cst_181 : f32 to vector<2x128xf32>
      %382 = arith.maximumf %380, %381 : vector<2x128xf32>
      %383 = arith.truncf %382 : vector<2x128xf32> to vector<2x128xbf16>
      %c0_182 = arith.constant 0 : index
      %c0_183 = arith.constant 0 : index
      %384 = vector.load %arg26[%c0_182, %c0_183] : memref<128x128xbf16, #tpu.memory_space<vmem>>, vector<128x128xbf16>
      %cst_184 = arith.constant dense<0.000000e+00> : vector<2x128xf32>
      %385 = tpu.matmul %383, %384, %cst_184 {dimension_numbers = #tpu.dot_dimension_numbers<[1], [0], [0], [1], [0, 0, 1, 1], [], []>} : vector<2x128xbf16>, vector<128x128xbf16>, vector<2x128xf32> -> vector<2x128xf32>
      %c0_185 = arith.constant 0 : index
      %c0_186 = arith.constant 0 : index
      %386 = vector.load %arg27[%c0_185, %c0_186] : memref<1x128xf32, #tpu.memory_space<vmem>>, vector<1x128xf32>
      %387 = vector.broadcast %386 : vector<1x128xf32> to vector<2x128xf32>
      %388 = arith.addf %385, %387 : vector<2x128xf32>
      %c0_187 = arith.constant 0 : index
      %c0_188 = arith.constant 0 : index
      %389 = vector.load %arg32[%c0_187, %c0_188] : memref<2x128xf32, #tpu.memory_space<vmem>>, vector<2x128xf32>
      tpu.vector_store %arg32[%c0_187, %c0_188], %388 {strides = array<i32>} : memref<2x128xf32, #tpu.memory_space<vmem>>, vector<2x128xf32>,
    } else {
    }
    return
  }
  func.func @transform_0(%arg0: i32, %arg1: i32) -> (i32, i32, i32) {
    %c0_i32 = arith.constant 0 : i32
    %c0_i32_0 = arith.constant 0 : i32
    return %arg0, %arg1, %c0_i32 : i32, i32, i32
  }
  func.func @transform_1(%arg0: i32, %arg1: i32) -> (i32, i32) {
    %c0_i32 = arith.constant 0 : i32
    %c0_i32_0 = arith.constant 0 : i32
    return %arg0, %c0_i32 : i32, i32
  }
  func.func @transform_2(%arg0: i32, %arg1: i32) -> (i32, i32) {
    %c0_i32 = arith.constant 0 : i32
    %c0_i32_0 = arith.constant 0 : i32
    return %arg0, %c0_i32 : i32, i32
  }
  func.func @transform_3(%arg0: i32, %arg1: i32) -> (i32, i32) {
    %c0_i32 = arith.constant 0 : i32
    %c0_i32_0 = arith.constant 0 : i32
    return %arg0, %c0_i32 : i32, i32
  }
  func.func @transform_4(%arg0: i32, %arg1: i32) -> (i32, i32) {
    %c0_i32 = arith.constant 0 : i32
    %c0_i32_0 = arith.constant 0 : i32
    %c0_i32_1 = arith.constant 0 : i32
    return %c0_i32, %c0_i32_0 : i32, i32
  }
  func.func @transform_5(%arg0: i32, %arg1: i32) -> (i32, i32) {
    %c0_i32 = arith.constant 0 : i32
    %c0_i32_0 = arith.constant 0 : i32
    %c0_i32_1 = arith.constant 0 : i32
    return %c0_i32, %c0_i32_0 : i32, i32
  }
  func.func @transform_6(%arg0: i32, %arg1: i32) -> (i32, i32) {
    %c0_i32 = arith.constant 0 : i32
    %c0_i32_0 = arith.constant 0 : i32
    %c0_i32_1 = arith.constant 0 : i32
    return %c0_i32, %c0_i32_0 : i32, i32
  }
  func.func @transform_7(%arg0: i32, %arg1: i32) -> (i32, i32) {
    %c0_i32 = arith.constant 0 : i32
    %c0_i32_0 = arith.constant 0 : i32
    %c0_i32_1 = arith.constant 0 : i32
    return %c0_i32, %c0_i32_0 : i32, i32
  }
  func.func @transform_8(%arg0: i32, %arg1: i32) -> (i32, i32) {
    %c0_i32 = arith.constant 0 : i32
    %c0_i32_0 = arith.constant 0 : i32
    %c0_i32_1 = arith.constant 0 : i32
    return %c0_i32, %c0_i32_0 : i32, i32
  }
  func.func @transform_9(%arg0: i32, %arg1: i32) -> (i32, i32) {
    %c0_i32 = arith.constant 0 : i32
    %c0_i32_0 = arith.constant 0 : i32
    %c0_i32_1 = arith.constant 0 : i32
    return %c0_i32, %c0_i32_0 : i32, i32
  }
  func.func @transform_10(%arg0: i32, %arg1: i32) -> (i32, i32) {
    %c0_i32 = arith.constant 0 : i32
    %c0_i32_0 = arith.constant 0 : i32
    %c0_i32_1 = arith.constant 0 : i32
    return %c0_i32, %c0_i32_0 : i32, i32
  }
  func.func @transform_11(%arg0: i32, %arg1: i32) -> (i32, i32) {
    %c0_i32 = arith.constant 0 : i32
    %c0_i32_0 = arith.constant 0 : i32
    %c0_i32_1 = arith.constant 0 : i32
    return %c0_i32, %c0_i32_0 : i32, i32
  }
  func.func @transform_12(%arg0: i32, %arg1: i32) -> (i32, i32) {
    %c0_i32 = arith.constant 0 : i32
    %c0_i32_0 = arith.constant 0 : i32
    %c0_i32_1 = arith.constant 0 : i32
    return %c0_i32, %c0_i32_0 : i32, i32
  }
  func.func @transform_13(%arg0: i32, %arg1: i32) -> (i32, i32) {
    %c0_i32 = arith.constant 0 : i32
    %c0_i32_0 = arith.constant 0 : i32
    %c0_i32_1 = arith.constant 0 : i32
    return %c0_i32, %c0_i32_0 : i32, i32
  }
  func.func @transform_14(%arg0: i32, %arg1: i32) -> (i32, i32) {
    %c0_i32 = arith.constant 0 : i32
    %c0_i32_0 = arith.constant 0 : i32
    %c0_i32_1 = arith.constant 0 : i32
    return %c0_i32, %c0_i32_0 : i32, i32
  }
  func.func @transform_15(%arg0: i32, %arg1: i32) -> (i32, i32) {
    %c0_i32 = arith.constant 0 : i32
    %c0_i32_0 = arith.constant 0 : i32
    %c0_i32_1 = arith.constant 0 : i32
    return %c0_i32, %c0_i32_0 : i32, i32
  }
  func.func @transform_16(%arg0: i32, %arg1: i32) -> (i32, i32) {
    %c0_i32 = arith.constant 0 : i32
    %c0_i32_0 = arith.constant 0 : i32
    %c0_i32_1 = arith.constant 0 : i32
    return %c0_i32, %c0_i32_0 : i32, i32
  }
  func.func @transform_17(%arg0: i32, %arg1: i32) -> (i32, i32) {
    %c0_i32 = arith.constant 0 : i32
    %c0_i32_0 = arith.constant 0 : i32
    %c0_i32_1 = arith.constant 0 : i32
    return %c0_i32, %c0_i32_0 : i32, i32
  }
  func.func @transform_18(%arg0: i32, %arg1: i32) -> (i32, i32) {
    %c0_i32 = arith.constant 0 : i32
    %c0_i32_0 = arith.constant 0 : i32
    %c0_i32_1 = arith.constant 0 : i32
    return %c0_i32, %c0_i32_0 : i32, i32
  }
  func.func @transform_19(%arg0: i32, %arg1: i32) -> (i32, i32) {
    %c0_i32 = arith.constant 0 : i32
    %c0_i32_0 = arith.constant 0 : i32
    %c0_i32_1 = arith.constant 0 : i32
    return %c0_i32, %c0_i32_0 : i32, i32
  }
  func.func @transform_20(%arg0: i32, %arg1: i32) -> (i32, i32) {
    %c0_i32 = arith.constant 0 : i32
    %c0_i32_0 = arith.constant 0 : i32
    %c0_i32_1 = arith.constant 0 : i32
    return %c0_i32, %c0_i32_0 : i32, i32
  }
  func.func @transform_21(%arg0: i32, %arg1: i32) -> (i32, i32) {
    %c0_i32 = arith.constant 0 : i32
    %c0_i32_0 = arith.constant 0 : i32
    %c0_i32_1 = arith.constant 0 : i32
    return %c0_i32, %c0_i32_0 : i32, i32
  }
  func.func @transform_22(%arg0: i32, %arg1: i32) -> (i32, i32) {
    %c0_i32 = arith.constant 0 : i32
    %c0_i32_0 = arith.constant 0 : i32
    %c0_i32_1 = arith.constant 0 : i32
    return %c0_i32, %c0_i32_0 : i32, i32
  }
  func.func @transform_23(%arg0: i32, %arg1: i32) -> (i32, i32) {
    %c0_i32 = arith.constant 0 : i32
    %c0_i32_0 = arith.constant 0 : i32
    %c0_i32_1 = arith.constant 0 : i32
    return %c0_i32, %c0_i32_0 : i32, i32
  }
  func.func @transform_24(%arg0: i32, %arg1: i32) -> (i32, i32) {
    %c0_i32 = arith.constant 0 : i32
    %c0_i32_0 = arith.constant 0 : i32
    %c0_i32_1 = arith.constant 0 : i32
    return %c0_i32, %c0_i32_0 : i32, i32
  }
  func.func @transform_25(%arg0: i32, %arg1: i32) -> (i32, i32) {
    %c0_i32 = arith.constant 0 : i32
    %c0_i32_0 = arith.constant 0 : i32
    %c0_i32_1 = arith.constant 0 : i32
    return %c0_i32, %c0_i32_0 : i32, i32
  }
  func.func @transform_26(%arg0: i32, %arg1: i32) -> (i32, i32) {
    %c0_i32 = arith.constant 0 : i32
    %c0_i32_0 = arith.constant 0 : i32
    %c0_i32_1 = arith.constant 0 : i32
    return %c0_i32, %c0_i32_0 : i32, i32
  }
  func.func @transform_27(%arg0: i32, %arg1: i32) -> i32 {
    %c0_i32 = arith.constant 0 : i32
    %c0_i32_0 = arith.constant 0 : i32
    return %c0_i32 : i32
  }
  func.func @transform_28(%arg0: i32, %arg1: i32) -> (i32, i32) {
    %c0_i32 = arith.constant 0 : i32
    %c0_i32_0 = arith.constant 0 : i32
    %c0_i32_1 = arith.constant 0 : i32
    return %c0_i32, %c0_i32_0 : i32, i32
  }
  func.func @transform_29(%arg0: i32, %arg1: i32) -> i32 {
    %c0_i32 = arith.constant 0 : i32
    %c0_i32_0 = arith.constant 0 : i32
    return %c0_i32 : i32
  }
  func.func @transform_30(%arg0: i32, %arg1: i32) -> (i32, i32) {
    %c0_i32 = arith.constant 0 : i32
    %c0_i32_0 = arith.constant 0 : i32
    return %arg0, %c0_i32 : i32, i32
  }
}

</mosaic_0001>

<llo_original>
// kernel: erfppk_forward.1
$region0: #{erfppk_forward.1}
  #allocation0 [shape = 'u32[]', space=smem, size = 0x4, offset = 0x4, fixed_abs, tag = 'smem constant byte address 0x4 - core index']
  #allocation1 [shape = 'u32[72,128]{1,0:T(1,128)}', space=vmem, size = 0x9000, scoped, tag = 'internal scratch']
  #allocation2 [shape = 'f32[2,128]{1,0:T(2,128)}', space=vmem, size = 0x400, scoped, tag = 'scratch operand']
  %s0 = inlined_call_operand.smem [shape: u32[31], index: -1, kind: input, shape index: {}]
  %s1 = sld [smem:[%s0]]
  %s2 = scalar_lea.smem %s0, 1
  %s3 = sld [smem:[%s2]]
  %s4 = scalar_lea.smem %s0, 2
  %s5 = sld [smem:[%s4]]
  %s6 = scalar_lea.smem %s0, 3
  %s7 = sld [smem:[%s6]]
  %s8 = scalar_lea.smem %s0, 4
  %s9 = sld [smem:[%s8]]
  %s10 = scalar_lea.smem %s0, 5
  %s11 = sld [smem:[%s10]]
  %s12 = scalar_lea.smem %s0, 6
  %s13 = sld [smem:[%s12]]
  %s14 = scalar_lea.smem %s0, 7
  %s15 = sld [smem:[%s14]]
  %s16 = scalar_lea.smem %s0, 8
  %s17 = sld [smem:[%s16]]
  %s18 = scalar_lea.smem %s0, 9
  %s19 = sld [smem:[%s18]]
  %s20 = scalar_lea.smem %s0, 10
  %s21 = sld [smem:[%s20]]
  %s22 = scalar_lea.smem %s0, 11
  %s23 = sld [smem:[%s22]]
  %s24 = scalar_lea.smem %s0, 12
  %s25 = sld [smem:[%s24]]
  %s26 = scalar_lea.smem %s0, 13
  %s27 = sld [smem:[%s26]]
  %s28 = scalar_lea.smem %s0, 14
  %s29 = sld [smem:[%s28]]
  %s30 = scalar_lea.smem %s0, 15
  %s31 = sld [smem:[%s30]]
  %s32 = scalar_lea.smem %s0, 16
  %s33 = sld [smem:[%s32]]
  %s34 = scalar_lea.smem %s0, 17
  %s35 = sld [smem:[%s34]]
  %s36 = scalar_lea.smem %s0, 18
  %s37 = sld [smem:[%s36]]
  %s38 = scalar_lea.smem %s0, 19
  %s39 = sld [smem:[%s38]]
  %s40 = scalar_lea.smem %s0, 20
  %s41 = sld [smem:[%s40]]
  %s42 = scalar_lea.smem %s0, 21
  %s43 = sld [smem:[%s42]]
  %s44 = scalar_lea.smem %s0, 22
  %s45 = sld [smem:[%s44]]
  %s46 = scalar_lea.smem %s0, 23
  %s47 = sld [smem:[%s46]]
  %s48 = scalar_lea.smem %s0, 24
  %s49 = sld [smem:[%s48]]
  %s50 = scalar_lea.smem %s0, 25
  %s51 = sld [smem:[%s50]]
  %s52 = scalar_lea.smem %s0, 26
  %s53 = sld [smem:[%s52]]
  %s54 = scalar_lea.smem %s0, 27
  %s55 = sld [smem:[%s54]]
  %s56 = scalar_lea.smem %s0, 28
  %s57 = sld [smem:[%s56]]
  %s58 = scalar_lea.smem %s0, 29
  %s59 = sld [smem:[%s58]]
  %s60 = scalar_lea.smem %s0, 30
  %s61 = sld [smem:[%s60]]
  %s62 = sld [smem:[#allocation0]]
  $region210: #{erfppk_forward.1} parent=0
    _
  %s64 = ssub.s32 1, %s62
  %s65 = scalar_select 0, %s64, %s62
  $region1: #{erfppk_forward.1} parent=0
    #allocation3 [shape = 'u8[81920]{0}', space=vmem, size = 0x14000, scoped, tag = 'input window, operand 0, single buffered']
    #allocation4 [shape = 's32[1]{0}', space=sflag, size = 0x4, scoped, tag = 'scoped memory for erfppk_forward.1']
    #allocation5 [shape = 's32[1]{0}', space=sflag, size = 0x4, scoped, tag = 'scoped memory for erfppk_forward.1']
    #allocation6 [shape = 's32[1]{0}', space=sflag, size = 0x4, scoped, tag = 'scoped memory for erfppk_forward.1']
    #allocation7 [shape = 'u8[8192]{0}', space=vmem, size = 0x2000, scoped, tag = 'input window, operand 2, single buffered']
    #allocation8 [shape = 's32[1]{0}', space=sflag, size = 0x4, scoped, tag = 'scoped memory for erfppk_forward.1']
    #allocation9 [shape = 'u8[327680]{0}', space=vmem, size = 0x50000, scoped, tag = 'input window, operand 4, single buffered']
    #allocation10 [shape = 'u8[32768]{0}', space=vmem, size = 0x8000, scoped, tag = 'input window, operand 8, single buffered']
    #allocation11 [shape = 's32[1]{0}', space=sflag, size = 0x4, scoped, tag = 'scoped memory for erfppk_forward.1']
    #allocation12 [shape = 'u8[32768]{0}', space=vmem, size = 0x8000, scoped, tag = 'input window, operand 10, single buffered']
    #allocation13 [shape = 'u8[262144]{0}', space=vmem, size = 0x40000, scoped, tag = 'input window, operand 14, single buffered']
    #allocation14 [shape = 's32[1]{0}', space=sflag, size = 0x4, scoped, tag = 'scoped memory for erfppk_forward.1']
    #allocation15 [shape = 'u8[262144]{0}', space=vmem, size = 0x40000, scoped, tag = 'input window, operand 16, single buffered']
    #allocation16 [shape = 'u8[512]{0}', space=vmem, size = 0x400, scoped, tag = 'input window, operand 17, single buffered']
    #allocation17 [shape = 's32[1]{0}', space=sflag, size = 0x4, scoped, tag = 'scoped memory for erfppk_forward.1']
    #allocation18 [shape = 'u8[512]{0}', space=vmem, size = 0x400, scoped, tag = 'input window, operand 20, single buffered']
    #allocation19 [shape = 'u8[512]{0}', space=vmem, size = 0x400, scoped, tag = 'input window, operand 21, single buffered']
    #allocation20 [shape = 's32[1]{0}', space=sflag, size = 0x4, scoped, tag = 'scoped memory for erfppk_forward.1']
    #allocation21 [shape = 'u8[131072]{0}', space=vmem, size = 0x20000, scoped, tag = 'input window, operand 22, single buffered']
    #allocation22 [shape = 'u8[512]{0}', space=vmem, size = 0x400, scoped, tag = 'input window, operand 23, single buffered']
    #allocation23 [shape = 's32[1]{0}', space=sflag, size = 0x4, scoped, tag = 'scoped memory for erfppk_forward.1']
    #allocation24 [shape = 'u8[32768]{0}', space=vmem, size = 0x8000, scoped, tag = 'input window, operand 24, single buffered']
    #allocation25 [shape = 'u8[512]{0}', space=vmem, size = 0x400, scoped, tag = 'input window, operand 25, single buffered']
    #allocation26 [shape = 's32[1]{0}', space=sflag, size = 0x4, scoped, tag = 'scoped memory for erfppk_forward.1']
    #allocation27 [shape = 'u8[2048]{0}', space=smem, size = 0x800, scoped, tag = 'input window, operand 26, single buffered']
    #allocation28 [shape = 'u8[512]{0}', space=smem, size = 0x200, scoped, tag = 'input window, operand 27, single buffered']
    #allocation29 [shape = 'u8[1024]{0}', space=smem, size = 0x400, scoped, tag = 'input window, operand 28, single buffered']
    #allocation30 [shape = 's32[1]{0}', space=sflag, size = 0x4, scoped, tag = 'scoped memory for erfppk_forward.1']
    #allocation31 [shape = 'u8[512]{0}', space=smem, size = 0x200, scoped, tag = 'input window, operand 29, single buffered']
    #allocation32 [shape = 's32[1]{0}', space=sflag, size = 0x4, scoped, tag = 'scoped memory for erfppk_forward.1']
    %66 = vsyncpa [#allocation4], 0
    %67 = vsyncpa [#allocation8], 0
    %68 = vsyncpa [#allocation11], 0
    %69 = vsyncpa [#allocation14], 0
    %70 = vsyncpa [#allocation17], 0
    %71 = vsyncpa [#allocation20], 0
    %72 = vsyncpa [#allocation23], 0
    %73 = vsyncpa [#allocation26], 0
    %74 = vsyncpa [#allocation6], 0
    %75 = vsyncpa [#allocation5], 0
    %76 = vsyncpa [#allocation30], 0
    %77 = vsyncpa [#allocation32], 0
    // Predicated region
    $region2: #{erfppk_forward.1} parent=1 // pred_check
      _
    $region3: #{erfppk_forward.1} parent=1 // pred_check_branch
      %79 = sbr.rel (0) target = $region5
    $region4: #{erfppk_forward.1} parent=1 // pred_region
      %81 = vsyncadd [#allocation4], 0
      %s82 = sshll.u32 %s1, 4
      %s83 = int_to_ptr.hbm [resolvable:$true] %s82
      %s84 = sshll.u32 [#allocation3], 4
      %s85 = int_to_ptr.vmem [resolvable:$true] %s84
      %90 = dma.hbm_to_vmem [thread:$0]  %s83, 2560, %s85, [#allocation4], 1280, 1280, 80
    $region5: #{erfppk_forward.1} parent=1 // pred_fallthru
      _
    // Predicated region
    $region6: #{erfppk_forward.1} parent=1 // pred_check
      _
    $region7: #{erfppk_forward.1} parent=1 // pred_check_branch
      %92 = sbr.rel (0) target = $region9
    $region8: #{erfppk_forward.1} parent=1 // pred_region
      _
    $region9: #{erfppk_forward.1} parent=1 // pred_fallthru
      _
    // Predicated region
    $region10: #{erfppk_forward.1} parent=1 // pred_check
      _
    $region11: #{erfppk_forward.1} parent=1 // pred_check_branch
      %94 = sbr.rel (0) target = $region13
    $region12: #{erfppk_forward.1} parent=1 // pred_region
      %96 = vsyncadd [#allocation8], 0
      %s98 = sshll.u32 %s5, 4
      %s99 = int_to_ptr.hbm [resolvable:$true] %s98
      %s100 = sshll.u32 [#allocation7], 4
      %s101 = int_to_ptr.vmem [resolvable:$true] %s100
      %103 = dma.hbm_to_vmem [thread:$0]  %s99, 256, %s101, [#allocation8]
    $region13: #{erfppk_forward.1} parent=1 // pred_fallthru
      _
    // Predicated region
    $region14: #{erfppk_forward.1} parent=1 // pred_check
      _
    $region15: #{erfppk_forward.1} parent=1 // pred_check_branch
      %105 = sbr.rel (0) target = $region17
    $region16: #{erfppk_forward.1} parent=1 // pred_region
      _
    $region17: #{erfppk_forward.1} parent=1 // pred_fallthru
      _
    // Predicated region
    $region18: #{erfppk_forward.1} parent=1 // pred_check
      _
    $region19: #{erfppk_forward.1} parent=1 // pred_check_branch
      %107 = sbr.rel (0) target = $region21
    $region20: #{erfppk_forward.1} parent=1 // pred_region
      %109 = vsyncadd [#allocation8], 0
      %s110 = sshll.u32 %s9, 4
      %s111 = int_to_ptr.hbm [resolvable:$true] %s110
      %s112 = sshll.u32 [#allocation9], 4
      %s113 = int_to_ptr.vmem [resolvable:$true] %s112
      %118 = dma.hbm_to_vmem [thread:$0]  %s111, 10240, %s113, [#allocation8], 64, 64, 4
    $region21: #{erfppk_forward.1} parent=1 // pred_fallthru
      _
    // Predicated region
    $region22: #{erfppk_forward.1} parent=1 // pred_check
      _
    $region23: #{erfppk_forward.1} parent=1 // pred_check_branch
      %120 = sbr.rel (0) target = $region25
    $region24: #{erfppk_forward.1} parent=1 // pred_region
      _
    $region25: #{erfppk_forward.1} parent=1 // pred_fallthru
      _
    // Predicated region
    $region26: #{erfppk_forward.1} parent=1 // pred_check
      _
    $region27: #{erfppk_forward.1} parent=1 // pred_check_branch
      %122 = sbr.rel (0) target = $region29
    $region28: #{erfppk_forward.1} parent=1 // pred_region
      _
    $region29: #{erfppk_forward.1} parent=1 // pred_fallthru
      _
    // Predicated region
    $region30: #{erfppk_forward.1} parent=1 // pred_check
      _
    $region31: #{erfppk_forward.1} parent=1 // pred_check_branch
      %124 = sbr.rel (0) target = $region33
    $region32: #{erfppk_forward.1} parent=1 // pred_region
      _
    $region33: #{erfppk_forward.1} parent=1 // pred_fallthru
      _
    // Predicated region
    $region34: #{erfppk_forward.1} parent=1 // pred_check
      _
    $region35: #{erfppk_forward.1} parent=1 // pred_check_branch
      %126 = sbr.rel (0) target = $region37
    $region36: #{erfppk_forward.1} parent=1 // pred_region
      %128 = vsyncadd [#allocation11], 0
      %s129 = sshll.u32 %s17, 4
      %s130 = int_to_ptr.hbm [resolvable:$true] %s129
      %s131 = sshll.u32 [#allocation10], 4
      %s132 = int_to_ptr.vmem [resolvable:$true] %s131
      %137 = dma.hbm_to_vmem [thread:$0]  %s130, 1024, %s132, [#allocation11], 64, 64, 4
    $region37: #{erfppk_forward.1} parent=1 // pred_fallthru
      _
    // Predicated region
    $region38: #{erfppk_forward.1} parent=1 // pred_check
      _
    $region39: #{erfppk_forward.1} parent=1 // pred_check_branch
      %139 = sbr.rel (0) target = $region41
    $region40: #{erfppk_forward.1} parent=1 // pred_region
      _
    $region41: #{erfppk_forward.1} parent=1 // pred_fallthru
      _
    // Predicated region
    $region42: #{erfppk_forward.1} parent=1 // pred_check
      _
    $region43: #{erfppk_forward.1} parent=1 // pred_check_branch
      %141 = sbr.rel (0) target = $region45
    $region44: #{erfppk_forward.1} parent=1 // pred_region
      %143 = vsyncadd [#allocation11], 0
      %s144 = sshll.u32 %s21, 4
      %s145 = int_to_ptr.hbm [resolvable:$true] %s144
      %s146 = sshll.u32 [#allocation12], 4
      %s147 = int_to_ptr.vmem [resolvable:$true] %s146
      %152 = dma.hbm_to_vmem [thread:$0]  %s145, 1024, %s147, [#allocation11], 64, 64, 4
    $region45: #{erfppk_forward.1} parent=1 // pred_fallthru
      _
    // Predicated region
    $region46: #{erfppk_forward.1} parent=1 // pred_check
      _
    $region47: #{erfppk_forward.1} parent=1 // pred_check_branch
      %154 = sbr.rel (0) target = $region49
    $region48: #{erfppk_forward.1} parent=1 // pred_region
      _
    $region49: #{erfppk_forward.1} parent=1 // pred_fallthru
      _
    // Predicated region
    $region50: #{erfppk_forward.1} parent=1 // pred_check
      _
    $region51: #{erfppk_forward.1} parent=1 // pred_check_branch
      %156 = sbr.rel (0) target = $region53
    $region52: #{erfppk_forward.1} parent=1 // pred_region
      _
    $region53: #{erfppk_forward.1} parent=1 // pred_fallthru
      _
    // Predicated region
    $region54: #{erfppk_forward.1} parent=1 // pred_check
      _
    $region55: #{erfppk_forward.1} parent=1 // pred_check_branch
      %158 = sbr.rel (0) target = $region57
    $region56: #{erfppk_forward.1} parent=1 // pred_region
      _
    $region57: #{erfppk_forward.1} parent=1 // pred_fallthru
      _
    // Predicated region
    $region58: #{erfppk_forward.1} parent=1 // pred_check
      _
    $region59: #{erfppk_forward.1} parent=1 // pred_check_branch
      %160 = sbr.rel (0) target = $region61
    $region60: #{erfppk_forward.1} parent=1 // pred_region
      %162 = vsyncadd [#allocation14], 0
      %s163 = sshll.u32 %s29, 4
      %s164 = int_to_ptr.hbm [resolvable:$true] %s163
      %s165 = sshll.u32 [#allocation13], 4
      %s166 = int_to_ptr.vmem [resolvable:$true] %s165
      %171 = dma.hbm_to_vmem [thread:$0]  %s164, 8192, %s166, [#allocation14], 64, 64, 4
    $region61: #{erfppk_forward.1} parent=1 // pred_fallthru
      _
    // Predicated region
    $region62: #{erfppk_forward.1} parent=1 // pred_check
      _
    $region63: #{erfppk_forward.1} parent=1 // pred_check_branch
      %173 = sbr.rel (0) target = $region65
    $region64: #{erfppk_forward.1} parent=1 // pred_region
      _
    $region65: #{erfppk_forward.1} parent=1 // pred_fallthru
      _
    // Predicated region
    $region66: #{erfppk_forward.1} parent=1 // pred_check
      _
    $region67: #{erfppk_forward.1} parent=1 // pred_check_branch
      %175 = sbr.rel (0) target = $region69
    $region68: #{erfppk_forward.1} parent=1 // pred_region
      %177 = vsyncadd [#allocation14], 0
      %s178 = sshll.u32 %s33, 4
      %s179 = int_to_ptr.hbm [resolvable:$true] %s178
      %s180 = sshll.u32 [#allocation15], 4
      %s181 = int_to_ptr.vmem [resolvable:$true] %s180
      %186 = dma.hbm_to_vmem [thread:$0]  %s179, 8192, %s181, [#allocation14], 64, 64, 4
    $region69: #{erfppk_forward.1} parent=1 // pred_fallthru
      _
    // Predicated region
    $region70: #{erfppk_forward.1} parent=1 // pred_check
      _
    $region71: #{erfppk_forward.1} parent=1 // pred_check_branch
      %188 = sbr.rel (0) target = $region73
    $region72: #{erfppk_forward.1} parent=1 // pred_region
      %190 = vsyncadd [#allocation17], 0
      %s192 = sshll.u32 %s35, 4
      %s193 = int_to_ptr.hbm [resolvable:$true] %s192
      %s194 = sshll.u32 [#allocation16], 4
      %s195 = int_to_ptr.vmem [resolvable:$true] %s194
      %197 = dma.hbm_to_vmem [thread:$0]  %s193, 16, %s195, [#allocation17]
    $region73: #{erfppk_forward.1} parent=1 // pred_fallthru
      _
    // Predicated region
    $region74: #{erfppk_forward.1} parent=1 // pred_check
      _
    $region75: #{erfppk_forward.1} parent=1 // pred_check_branch
      %199 = sbr.rel (0) target = $region77
    $region76: #{erfppk_forward.1} parent=1 // pred_region
      _
    $region77: #{erfppk_forward.1} parent=1 // pred_fallthru
      _
    // Predicated region
    $region78: #{erfppk_forward.1} parent=1 // pred_check
      _
    $region79: #{erfppk_forward.1} parent=1 // pred_check_branch
      %201 = sbr.rel (0) target = $region81
    $region80: #{erfppk_forward.1} parent=1 // pred_region
      _
    $region81: #{erfppk_forward.1} parent=1 // pred_fallthru
      _
    // Predicated region
    $region82: #{erfppk_forward.1} parent=1 // pred_check
      _
    $region83: #{erfppk_forward.1} parent=1 // pred_check_branch
      %203 = sbr.rel (0) target = $region85
    $region84: #{erfppk_forward.1} parent=1 // pred_region
      %205 = vsyncadd [#allocation17], 0
      %s207 = sshll.u32 %s41, 4
      %s208 = int_to_ptr.hbm [resolvable:$true] %s207
      %s209 = sshll.u32 [#allocation18], 4
      %s210 = int_to_ptr.vmem [resolvable:$true] %s209
      %212 = dma.hbm_to_vmem [thread:$0]  %s208, 16, %s210, [#allocation17]
    $region85: #{erfppk_forward.1} parent=1 // pred_fallthru
      _
    // Predicated region
    $region86: #{erfppk_forward.1} parent=1 // pred_check
      _
    $region87: #{erfppk_forward.1} parent=1 // pred_check_branch
      %214 = sbr.rel (0) target = $region89
    $region88: #{erfppk_forward.1} parent=1 // pred_region
      %216 = vsyncadd [#allocation20], 0
      %s218 = sshll.u32 %s43, 4
      %s219 = int_to_ptr.hbm [resolvable:$true] %s218
      %s220 = sshll.u32 [#allocation19], 4
      %s221 = int_to_ptr.vmem [resolvable:$true] %s220
      %223 = dma.hbm_to_vmem [thread:$0]  %s219, 16, %s221, [#allocation20]
    $region89: #{erfppk_forward.1} parent=1 // pred_fallthru
      _
    // Predicated region
    $region90: #{erfppk_forward.1} parent=1 // pred_check
      _
    $region91: #{erfppk_forward.1} parent=1 // pred_check_branch
      %225 = sbr.rel (0) target = $region93
    $region92: #{erfppk_forward.1} parent=1 // pred_region
      %227 = vsyncadd [#allocation20], 0
      %s228 = sshll.u32 %s45, 4
      %s229 = int_to_ptr.hbm [resolvable:$true] %s228
      %s230 = sshll.u32 [#allocation21], 4
      %s231 = int_to_ptr.vmem [resolvable:$true] %s230
      %236 = dma.hbm_to_vmem [thread:$0]  %s229, 4096, %s231, [#allocation20], 64, 64, 4
    $region93: #{erfppk_forward.1} parent=1 // pred_fallthru
      _
    // Predicated region
    $region94: #{erfppk_forward.1} parent=1 // pred_check
      _
    $region95: #{erfppk_forward.1} parent=1 // pred_check_branch
      %238 = sbr.rel (0) target = $region97
    $region96: #{erfppk_forward.1} parent=1 // pred_region
      %240 = vsyncadd [#allocation23], 0
      %s242 = sshll.u32 %s47, 4
      %s243 = int_to_ptr.hbm [resolvable:$true] %s242
      %s244 = sshll.u32 [#allocation22], 4
      %s245 = int_to_ptr.vmem [resolvable:$true] %s244
      %247 = dma.hbm_to_vmem [thread:$0]  %s243, 16, %s245, [#allocation23]
    $region97: #{erfppk_forward.1} parent=1 // pred_fallthru
      _
    // Predicated region
    $region98: #{erfppk_forward.1} parent=1 // pred_check
      _
    $region99: #{erfppk_forward.1} parent=1 // pred_check_branch
      %249 = sbr.rel (0) target = $region101
    $region100: #{erfppk_forward.1} parent=1 // pred_region
      %251 = vsyncadd [#allocation23], 0
      %s252 = sshll.u32 %s49, 4
      %s253 = int_to_ptr.hbm [resolvable:$true] %s252
      %s254 = sshll.u32 [#allocation24], 4
      %s255 = int_to_ptr.vmem [resolvable:$true] %s254
      %260 = dma.hbm_to_vmem [thread:$0]  %s253, 1024, %s255, [#allocation23], 64, 64, 4
    $region101: #{erfppk_forward.1} parent=1 // pred_fallthru
      _
    // Predicated region
    $region102: #{erfppk_forward.1} parent=1 // pred_check
      _
    $region103: #{erfppk_forward.1} parent=1 // pred_check_branch
      %262 = sbr.rel (0) target = $region105
    $region104: #{erfppk_forward.1} parent=1 // pred_region
      %264 = vsyncadd [#allocation26], 0
      %s266 = sshll.u32 %s51, 4
      %s267 = int_to_ptr.hbm [resolvable:$true] %s266
      %s268 = sshll.u32 [#allocation25], 4
      %s269 = int_to_ptr.vmem [resolvable:$true] %s268
      %271 = dma.hbm_to_vmem [thread:$0]  %s267, 16, %s269, [#allocation26]
    $region105: #{erfppk_forward.1} parent=1 // pred_fallthru
      _
    // Predicated region
    $region106: #{erfppk_forward.1} parent=1 // pred_check
      _
    $region107: #{erfppk_forward.1} parent=1 // pred_check_branch
      %273 = sbr.rel (0) target = $region109
    $region108: #{erfppk_forward.1} parent=1 // pred_region
      %275 = vsyncadd [#allocation6], 0
      %s277 = sshll.u32 %s53, 4
      %s278 = int_to_ptr.vmem [resolvable:$true] %s277
      %280 = dma.vmem_to_smem %s278, 64, [#allocation27], [#allocation6]
    $region109: #{erfppk_forward.1} parent=1 // pred_fallthru
      _
    // Predicated region
    $region110: #{erfppk_forward.1} parent=1 // pred_check
      _
    $region111: #{erfppk_forward.1} parent=1 // pred_check_branch
      %282 = sbr.rel (0) target = $region113
    $region112: #{erfppk_forward.1} parent=1 // pred_region
      %284 = vsyncadd [#allocation5], 0
      %s286 = sshll.u32 %s55, 4
      %s287 = int_to_ptr.hbm [resolvable:$true] %s286
      %289 = dma.hbm_to_smem %s287, 16, [#allocation28], [#allocation5]
    $region113: #{erfppk_forward.1} parent=1 // pred_fallthru
      _
    // Predicated region
    $region114: #{erfppk_forward.1} parent=1 // pred_check
      _
    $region115: #{erfppk_forward.1} parent=1 // pred_check_branch
      %291 = sbr.rel (0) target = $region117
    $region116: #{erfppk_forward.1} parent=1 // pred_region
      %293 = vsyncadd [#allocation30], 0
      %s295 = sshll.u32 %s57, 4
      %s296 = int_to_ptr.vmem [resolvable:$true] %s295
      %298 = dma.vmem_to_smem %s296, 32, [#allocation29], [#allocation30]
    $region117: #{erfppk_forward.1} parent=1 // pred_fallthru
      _
    // Predicated region
    $region118: #{erfppk_forward.1} parent=1 // pred_check
      _
    $region119: #{erfppk_forward.1} parent=1 // pred_check_branch
      %300 = sbr.rel (0) target = $region121
    $region120: #{erfppk_forward.1} parent=1 // pred_region
      %302 = vsyncadd [#allocation32], 0
      %s304 = sshll.u32 %s59, 4
      %s305 = int_to_ptr.hbm [resolvable:$true] %s304
      %307 = dma.hbm_to_smem %s305, 16, [#allocation31], [#allocation32]
    $region121: #{erfppk_forward.1} parent=1 // pred_fallthru
      _
    // Predicated region
    $region122: #{erfppk_forward.1} parent=1 // pred_check
      _
    $region123: #{erfppk_forward.1} parent=1 // pred_check_branch
      %309 = sbr.rel (0) target = $region125
    $region124: #{erfppk_forward.1} parent=1 // pred_region
      %311 = dma.done [#allocation4], 2560
    $region125: #{erfppk_forward.1} parent=1 // pred_fallthru
      _
    // Predicated region
    $region126: #{erfppk_forward.1} parent=1 // pred_check
      _
    $region127: #{erfppk_forward.1} parent=1 // pred_check_branch
      %313 = sbr.rel (0) target = $region129
    $region128: #{erfppk_forward.1} parent=1 // pred_region
      %315 = dma.done [#allocation8], 256
    $region129: #{erfppk_forward.1} parent=1 // pred_fallthru
      _
    // Predicated region
    $region130: #{erfppk_forward.1} parent=1 // pred_check
      _
    $region131: #{erfppk_forward.1} parent=1 // pred_check_branch
      %317 = sbr.rel (0) target = $region133
    $region132: #{erfppk_forward.1} parent=1 // pred_region
      %319 = dma.done [#allocation8], 10240
    $region133: #{erfppk_forward.1} parent=1 // pred_fallthru
      _
    // Predicated region
    $region134: #{erfppk_forward.1} parent=1 // pred_check
      _
    $region135: #{erfppk_forward.1} parent=1 // pred_check_branch
      %321 = sbr.rel (0) target = $region137
    $region136: #{erfppk_forward.1} parent=1 // pred_region
      %323 = dma.done [#allocation11], 1024
    $region137: #{erfppk_forward.1} parent=1 // pred_fallthru
      _
    // Predicated region
    $region138: #{erfppk_forward.1} parent=1 // pred_check
      _
    $region139: #{erfppk_forward.1} parent=1 // pred_check_branch
      %325 = sbr.rel (0) target = $region141
    $region140: #{erfppk_forward.1} parent=1 // pred_region
      %327 = dma.done [#allocation11], 1024
    $region141: #{erfppk_forward.1} parent=1 // pred_fallthru
      _
    // Predicated region
    $region142: #{erfppk_forward.1} parent=1 // pred_check
      _
    $region143: #{erfppk_forward.1} parent=1 // pred_check_branch
      %329 = sbr.rel (0) target = $region145
    $region144: #{erfppk_forward.1} parent=1 // pred_region
      %331 = dma.done [#allocation14], 8192
    $region145: #{erfppk_forward.1} parent=1 // pred_fallthru
      _
    // Predicated region
    $region146: #{erfppk_forward.1} parent=1 // pred_check
      _
    $region147: #{erfppk_forward.1} parent=1 // pred_check_branch
      %333 = sbr.rel (0) target = $region149
    $region148: #{erfppk_forward.1} parent=1 // pred_region
      %335 = dma.done [#allocation14], 8192
    $region149: #{erfppk_forward.1} parent=1 // pred_fallthru
      _
    // Predicated region
    $region150: #{erfppk_forward.1} parent=1 // pred_check
      _
    $region151: #{erfppk_forward.1} parent=1 // pred_check_branch
      %337 = sbr.rel (0) target = $region153
    $region152: #{erfppk_forward.1} parent=1 // pred_region
      %339 = dma.done [#allocation17], 16
    $region153: #{erfppk_forward.1} parent=1 // pred_fallthru
      _
    // Predicated region
    $region154: #{erfppk_forward.1} parent=1 // pred_check
      _
    $region155: #{erfppk_forward.1} parent=1 // pred_check_branch
      %341 = sbr.rel (0) target = $region157
    $region156: #{erfppk_forward.1} parent=1 // pred_region
      %343 = dma.done [#allocation17], 16
    $region157: #{erfppk_forward.1} parent=1 // pred_fallthru
      _
    // Predicated region
    $region158: #{erfppk_forward.1} parent=1 // pred_check
      _
    $region159: #{erfppk_forward.1} parent=1 // pred_check_branch
      %345 = sbr.rel (0) target = $region161
    $region160: #{erfppk_forward.1} parent=1 // pred_region
      %347 = dma.done [#allocation20], 16
    $region161: #{erfppk_forward.1} parent=1 // pred_fallthru
      _
    // Predicated region
    $region162: #{erfppk_forward.1} parent=1 // pred_check
      _
    $region163: #{erfppk_forward.1} parent=1 // pred_check_branch
      %349 = sbr.rel (0) target = $region165
    $region164: #{erfppk_forward.1} parent=1 // pred_region
      %351 = dma.done [#allocation20], 4096
    $region165: #{erfppk_forward.1} parent=1 // pred_fallthru
      _
    // Predicated region
    $region166: #{erfppk_forward.1} parent=1 // pred_check
      _
    $region167: #{erfppk_forward.1} parent=1 // pred_check_branch
      %353 = sbr.rel (0) target = $region169
    $region168: #{erfppk_forward.1} parent=1 // pred_region
      %355 = dma.done [#allocation23], 16
    $region169: #{erfppk_forward.1} parent=1 // pred_fallthru
      _
    // Predicated region
    $region170: #{erfppk_forward.1} parent=1 // pred_check
      _
    $region171: #{erfppk_forward.1} parent=1 // pred_check_branch
      %357 = sbr.rel (0) target = $region173
    $region172: #{erfppk_forward.1} parent=1 // pred_region
      %359 = dma.done [#allocation23], 1024
    $region173: #{erfppk_forward.1} parent=1 // pred_fallthru
      _
    // Predicated region
    $region174: #{erfppk_forward.1} parent=1 // pred_check
      _
    $region175: #{erfppk_forward.1} parent=1 // pred_check_branch
      %361 = sbr.rel (0) target = $region177
    $region176: #{erfppk_forward.1} parent=1 // pred_region
      %363 = dma.done [#allocation26], 16
    $region177: #{erfppk_forward.1} parent=1 // pred_fallthru
      _
    // Predicated region
    $region178: #{erfppk_forward.1} parent=1 // pred_check
      _
    $region179: #{erfppk_forward.1} parent=1 // pred_check_branch
      %365 = sbr.rel (0) target = $region181
    $region180: #{erfppk_forward.1} parent=1 // pred_region
      %367 = dma.done [#allocation6], 64
    $region181: #{erfppk_forward.1} parent=1 // pred_fallthru
      _
    // Predicated region
    $region182: #{erfppk_forward.1} parent=1 // pred_check
      _
    $region183: #{erfppk_forward.1} parent=1 // pred_check_branch
      %369 = sbr.rel (0) target = $region185
    $region184: #{erfppk_forward.1} parent=1 // pred_region
      %371 = dma.done [#allocation5], 16
    $region185: #{erfppk_forward.1} parent=1 // pred_fallthru
      _
    // Predicated region
    $region186: #{erfppk_forward.1} parent=1 // pred_check
      _
    $region187: #{erfppk_forward.1} parent=1 // pred_check_branch
      %373 = sbr.rel (0) target = $region189
    $region188: #{erfppk_forward.1} parent=1 // pred_region
      %375 = dma.done [#allocation30], 32
    $region189: #{erfppk_forward.1} parent=1 // pred_fallthru
      _
    // Predicated region
    $region190: #{erfppk_forward.1} parent=1 // pred_check
      _
    $region191: #{erfppk_forward.1} parent=1 // pred_check_branch
      %377 = sbr.rel (0) target = $region193
    $region192: #{erfppk_forward.1} parent=1 // pred_region
      %379 = dma.done [#allocation32], 16
    $region193: #{erfppk_forward.1} parent=1 // pred_fallthru
      _
    %380 = sfence
    %p381 = scmp.eq.s32.totalorder 0, 0
    // Predicated region
    $region194: #{erfppk_forward.1} parent=1 // pred_check
      %p382 = pneg %p381
    $region195: #{erfppk_forward.1} parent=1 // pred_check_branch
      %384 = sbr.rel (%p382) target = $region197
    $region196: #{erfppk_forward.1} parent=1 // pred_region
      %385 = vst [vmem:[#allocation2] sm:$0x3] -inf
    $region197: #{erfppk_forward.1} parent=1 // pred_fallthru
      _
    %v386 = vld [vmem:[#allocation3] sm:$0xff]
    %v387 = vld [vmem:[#allocation3 + $0x8] sm:$0xff]
    %v388 = vld [vmem:[#allocation3 + $0x10] sm:$0xff]
    %v389 = vld [vmem:[#allocation3 + $0x18] sm:$0xff]
    %v390 = vld [vmem:[#allocation3 + $0x20] sm:$0xff]
    %v391 = vld [vmem:[#allocation3 + $0x28] sm:$0xff]
    %v392 = vld [vmem:[#allocation3 + $0x30] sm:$0xff]
    %v393 = vld [vmem:[#allocation3 + $0x38] sm:$0xff]
    %v394 = vld [vmem:[#allocation3 + $0x40] sm:$0xff]
    %v395 = vld [vmem:[#allocation3 + $0x48] sm:$0xff]
    %v396 = vld [vmem:[#allocation3 + $0x50] sm:$0xff]
    %v397 = vld [vmem:[#allocation3 + $0x58] sm:$0xff]
    %v398 = vld [vmem:[#allocation3 + $0x60] sm:$0xff]
    %v399 = vld [vmem:[#allocation3 + $0x68] sm:$0xff]
    %v400 = vld [vmem:[#allocation3 + $0x70] sm:$0xff]
    %v401 = vld [vmem:[#allocation3 + $0x78] sm:$0xff]
    %v402 = vld [vmem:[#allocation3 + $0x80] sm:$0xff]
    %v403 = vld [vmem:[#allocation3 + $0x88] sm:$0xff]
    %v404 = vld [vmem:[#allocation3 + $0x90] sm:$0xff]
    %v405 = vld [vmem:[#allocation3 + $0x98] sm:$0xff]
    %v406 = vpack.c.bf16 %v396, %v386
    %v407 = vpack.c.bf16 %v397, %v387
    %v408 = vpack.c.bf16 %v398, %v388
    %v409 = vpack.c.bf16 %v399, %v389
    %v410 = vpack.c.bf16 %v400, %v390
    %v411 = vpack.c.bf16 %v401, %v391
    %v412 = vpack.c.bf16 %v402, %v392
    %v413 = vpack.c.bf16 %v403, %v393
    %v414 = vpack.c.bf16 %v404, %v394
    %v415 = vpack.c.bf16 %v405, %v395
    %v416 = vld [vmem:[#allocation9] sm:$0xf]
    %v417 = vld [vmem:[#allocation9 + $0x4] sm:$0xf]
    %v418 = vld [vmem:[#allocation9 + $0x8] sm:$0xf]
    %v419 = vld [vmem:[#allocation9 + $0xc] sm:$0xf]
    %v420 = vld [vmem:[#allocation9 + $0x10] sm:$0xf]
    %v421 = vld [vmem:[#allocation9 + $0x14] sm:$0xf]
    %v422 = vld [vmem:[#allocation9 + $0x18] sm:$0xf]
    %v423 = vld [vmem:[#allocation9 + $0x1c] sm:$0xf]
    %v424 = vld [vmem:[#allocation9 + $0x20] sm:$0xf]
    %v425 = vld [vmem:[#allocation9 + $0x24] sm:$0xf]
    %v426 = vld [vmem:[#allocation9 + $0x28] sm:$0xf]
    %v427 = vld [vmem:[#allocation9 + $0x2c] sm:$0xf]
    %v428 = vld [vmem:[#allocation9 + $0x30] sm:$0xf]
    %v429 = vld [vmem:[#allocation9 + $0x34] sm:$0xf]
    %v430 = vld [vmem:[#allocation9 + $0x38] sm:$0xf]
    %v431 = vld [vmem:[#allocation9 + $0x3c] sm:$0xf]
    %v432 = vld [vmem:[#allocation9 + $0x40] sm:$0xf]
    %v433 = vld [vmem:[#allocation9 + $0x44] sm:$0xf]
    %v434 = vld [vmem:[#allocation9 + $0x48] sm:$0xf]
    %v435 = vld [vmem:[#allocation9 + $0x4c] sm:$0xf]
    %v436 = vld [vmem:[#allocation9 + $0x50] sm:$0xf]
    %v437 = vld [vmem:[#allocation9 + $0x54] sm:$0xf]
    %v438 = vld [vmem:[#allocation9 + $0x58] sm:$0xf]
    %v439 = vld [vmem:[#allocation9 + $0x5c] sm:$0xf]
    %v440 = vld [vmem:[#allocation9 + $0x60] sm:$0xf]
    %v441 = vld [vmem:[#allocation9 + $0x64] sm:$0xf]
    %v442 = vld [vmem:[#allocation9 + $0x68] sm:$0xf]
    %v443 = vld [vmem:[#allocation9 + $0x6c] sm:$0xf]
    %v444 = vld [vmem:[#allocation9 + $0x70] sm:$0xf]
    %v445 = vld [vmem:[#allocation9 + $0x74] sm:$0xf]
    %v446 = vld [vmem:[#allocation9 + $0x78] sm:$0xf]
    %v447 = vld [vmem:[#allocation9 + $0x7c] sm:$0xf]
    %v448 = vld [vmem:[#allocation9 + $0x80] sm:$0xf]
    %v449 = vld [vmem:[#allocation9 + $0x84] sm:$0xf]
    %v450 = vld [vmem:[#allocation9 + $0x88] sm:$0xf]
    %v451 = vld [vmem:[#allocation9 + $0x8c] sm:$0xf]
    %v452 = vld [vmem:[#allocation9 + $0x90] sm:$0xf]
    %v453 = vld [vmem:[#allocation9 + $0x94] sm:$0xf]
    %v454 = vld [vmem:[#allocation9 + $0x98] sm:$0xf]
    %v455 = vld [vmem:[#allocation9 + $0x9c] sm:$0xf]
    %v456 = vld [vmem:[#allocation9 + $0xa0] sm:$0xf]
    %v457 = vld [vmem:[#allocation9 + $0xa4] sm:$0xf]
    %v458 = vld [vmem:[#allocation9 + $0xa8] sm:$0xf]
    %v459 = vld [vmem:[#allocation9 + $0xac] sm:$0xf]
    %v460 = vld [vmem:[#allocation9 + $0xb0] sm:$0xf]
    %v461 = vld [vmem:[#allocation9 + $0xb4] sm:$0xf]
    %v462 = vld [vmem:[#allocation9 + $0xb8] sm:$0xf]
    %v463 = vld [vmem:[#allocation9 + $0xbc] sm:$0xf]
    %v464 = vld [vmem:[#allocation9 + $0xc0] sm:$0xf]
    %v465 = vld [vmem:[#allocation9 + $0xc4] sm:$0xf]
    %v466 = vld [vmem:[#allocation9 + $0xc8] sm:$0xf]
    %v467 = vld [vmem:[#allocation9 + $0xcc] sm:$0xf]
    %v468 = vld [vmem:[#allocation9 + $0xd0] sm:$0xf]
    %v469 = vld [vmem:[#allocation9 + $0xd4] sm:$0xf]
    %v470 = vld [vmem:[#allocation9 + $0xd8] sm:$0xf]
    %v471 = vld [vmem:[#allocation9 + $0xdc] sm:$0xf]
    %v472 = vld [vmem:[#allocation9 + $0xe0] sm:$0xf]
    %v473 = vld [vmem:[#allocation9 + $0xe4] sm:$0xf]
    %v474 = vld [vmem:[#allocation9 + $0xe8] sm:$0xf]
    %v475 = vld [vmem:[#allocation9 + $0xec] sm:$0xf]
    %v476 = vld [vmem:[#allocation9 + $0xf0] sm:$0xf]
    %v477 = vld [vmem:[#allocation9 + $0xf4] sm:$0xf]
    %v478 = vld [vmem:[#allocation9 + $0xf8] sm:$0xf]
    %v479 = vld [vmem:[#allocation9 + $0xfc] sm:$0xf]
    %v480 = vld [vmem:[#allocation9 + $0x100] sm:$0xf]
    %v481 = vld [vmem:[#allocation9 + $0x104] sm:$0xf]
    %v482 = vld [vmem:[#allocation9 + $0x108] sm:$0xf]
    %v483 = vld [vmem:[#allocation9 + $0x10c] sm:$0xf]
    %v484 = vld [vmem:[#allocation9 + $0x110] sm:$0xf]
    %v485 = vld [vmem:[#allocation9 + $0x114] sm:$0xf]
    %v486 = vld [vmem:[#allocation9 + $0x118] sm:$0xf]
    %v487 = vld [vmem:[#allocation9 + $0x11c] sm:$0xf]
    %v488 = vld [vmem:[#allocation9 + $0x120] sm:$0xf]
    %v489 = vld [vmem:[#allocation9 + $0x124] sm:$0xf]
    %v490 = vld [vmem:[#allocation9 + $0x128] sm:$0xf]
    %v491 = vld [vmem:[#allocation9 + $0x12c] sm:$0xf]
    %v492 = vld [vmem:[#allocation9 + $0x130] sm:$0xf]
    %v493 = vld [vmem:[#allocation9 + $0x134] sm:$0xf]
    %v494 = vld [vmem:[#allocation9 + $0x138] sm:$0xf]
    %v495 = vld [vmem:[#allocation9 + $0x13c] sm:$0xf]
    %v496 = vld [vmem:[#allocation9 + $0x140] sm:$0xf]
    %v497 = vld [vmem:[#allocation9 + $0x144] sm:$0xf]
    %v498 = vld [vmem:[#allocation9 + $0x148] sm:$0xf]
    %v499 = vld [vmem:[#allocation9 + $0x14c] sm:$0xf]
    %v500 = vld [vmem:[#allocation9 + $0x150] sm:$0xf]
    %v501 = vld [vmem:[#allocation9 + $0x154] sm:$0xf]
    %v502 = vld [vmem:[#allocation9 + $0x158] sm:$0xf]
    %v503 = vld [vmem:[#allocation9 + $0x15c] sm:$0xf]
    %v504 = vld [vmem:[#allocation9 + $0x160] sm:$0xf]
    %v505 = vld [vmem:[#allocation9 + $0x164] sm:$0xf]
    %v506 = vld [vmem:[#allocation9 + $0x168] sm:$0xf]
    %v507 = vld [vmem:[#allocation9 + $0x16c] sm:$0xf]
    %v508 = vld [vmem:[#allocation9 + $0x170] sm:$0xf]
    %v509 = vld [vmem:[#allocation9 + $0x174] sm:$0xf]
    %v510 = vld [vmem:[#allocation9 + $0x178] sm:$0xf]
    %v511 = vld [vmem:[#allocation9 + $0x17c] sm:$0xf]
    %v512 = vld [vmem:[#allocation9 + $0x180] sm:$0xf]
    %v513 = vld [vmem:[#allocation9 + $0x184] sm:$0xf]
    %v514 = vld [vmem:[#allocation9 + $0x188] sm:$0xf]
    %v515 = vld [vmem:[#allocation9 + $0x18c] sm:$0xf]
    %v516 = vld [vmem:[#allocation9 + $0x190] sm:$0xf]
    %v517 = vld [vmem:[#allocation9 + $0x194] sm:$0xf]
    %v518 = vld [vmem:[#allocation9 + $0x198] sm:$0xf]
    %v519 = vld [vmem:[#allocation9 + $0x19c] sm:$0xf]
    %v520 = vld [vmem:[#allocation9 + $0x1a0] sm:$0xf]
    %v521 = vld [vmem:[#allocation9 + $0x1a4] sm:$0xf]
    %v522 = vld [vmem:[#allocation9 + $0x1a8] sm:$0xf]
    %v523 = vld [vmem:[#allocation9 + $0x1ac] sm:$0xf]
    %v524 = vld [vmem:[#allocation9 + $0x1b0] sm:$0xf]
    %v525 = vld [vmem:[#allocation9 + $0x1b4] sm:$0xf]
    %v526 = vld [vmem:[#allocation9 + $0x1b8] sm:$0xf]
    %v527 = vld [vmem:[#allocation9 + $0x1bc] sm:$0xf]
    %v528 = vld [vmem:[#allocation9 + $0x1c0] sm:$0xf]
    %v529 = vld [vmem:[#allocation9 + $0x1c4] sm:$0xf]
    %v530 = vld [vmem:[#allocation9 + $0x1c8] sm:$0xf]
    %v531 = vld [vmem:[#allocation9 + $0x1cc] sm:$0xf]
    %v532 = vld [vmem:[#allocation9 + $0x1d0] sm:$0xf]
    %v533 = vld [vmem:[#allocation9 + $0x1d4] sm:$0xf]
    %v534 = vld [vmem:[#allocation9 + $0x1d8] sm:$0xf]
    %v535 = vld [vmem:[#allocation9 + $0x1dc] sm:$0xf]
    %v536 = vld [vmem:[#allocation9 + $0x1e0] sm:$0xf]
    %v537 = vld [vmem:[#allocation9 + $0x1e4] sm:$0xf]
    %v538 = vld [vmem:[#allocation9 + $0x1e8] sm:$0xf]
    %v539 = vld [vmem:[#allocation9 + $0x1ec] sm:$0xf]
    %v540 = vld [vmem:[#allocation9 + $0x1f0] sm:$0xf]
    %v541 = vld [vmem:[#allocation9 + $0x1f4] sm:$0xf]
    %v542 = vld [vmem:[#allocation9 + $0x1f8] sm:$0xf]
    %v543 = vld [vmem:[#allocation9 + $0x1fc] sm:$0xf]
    %v544 = vld [vmem:[#allocation9 + $0x200] sm:$0xf]
    %v545 = vld [vmem:[#allocation9 + $0x204] sm:$0xf]
    %v546 = vld [vmem:[#allocation9 + $0x208] sm:$0xf]
    %v547 = vld [vmem:[#allocation9 + $0x20c] sm:$0xf]
    %v548 = vld [vmem:[#allocation9 + $0x210] sm:$0xf]
    %v549 = vld [vmem:[#allocation9 + $0x214] sm:$0xf]
    %v550 = vld [vmem:[#allocation9 + $0x218] sm:$0xf]
    %v551 = vld [vmem:[#allocation9 + $0x21c] sm:$0xf]
    %v552 = vld [vmem:[#allocation9 + $0x220] sm:$0xf]
    %v553 = vld [vmem:[#allocation9 + $0x224] sm:$0xf]
    %v554 = vld [vmem:[#allocation9 + $0x228] sm:$0xf]
    %v555 = vld [vmem:[#allocation9 + $0x22c] sm:$0xf]
    %v556 = vld [vmem:[#allocation9 + $0x230] sm:$0xf]
    %v557 = vld [vmem:[#allocation9 + $0x234] sm:$0xf]
    %v558 = vld [vmem:[#allocation9 + $0x238] sm:$0xf]
    %v559 = vld [vmem:[#allocation9 + $0x23c] sm:$0xf]
    %v560 = vld [vmem:[#allocation9 + $0x240] sm:$0xf]
    %v561 = vld [vmem:[#allocation9 + $0x244] sm:$0xf]
    %v562 = vld [vmem:[#allocation9 + $0x248] sm:$0xf]
    %v563 = vld [vmem:[#allocation9 + $0x24c] sm:$0xf]
    %v564 = vld [vmem:[#allocation9 + $0x250] sm:$0xf]
    %v565 = vld [vmem:[#allocation9 + $0x254] sm:$0xf]
    %v566 = vld [vmem:[#allocation9 + $0x258] sm:$0xf]
    %v567 = vld [vmem:[#allocation9 + $0x25c] sm:$0xf]
    %v568 = vld [vmem:[#allocation9 + $0x260] sm:$0xf]
    %v569 = vld [vmem:[#allocation9 + $0x264] sm:$0xf]
    %v570 = vld [vmem:[#allocation9 + $0x268] sm:$0xf]
    %v571 = vld [vmem:[#allocation9 + $0x26c] sm:$0xf]
    %v572 = vld [vmem:[#allocation9 + $0x270] sm:$0xf]
    %v573 = vld [vmem:[#allocation9 + $0x274] sm:$0xf]
    %v574 = vld [vmem:[#allocation9 + $0x278] sm:$0xf]
    %v575 = vld [vmem:[#allocation9 + $0x27c] sm:$0xf]
    %v576 = vld [vmem:[%s11] sm:$0x1]
    %v578 = vperm.slane %v576, 0
    %v740 = vunpack.c.l.b16 %v416
    %v741 = vunpack.c.l.b16 %v417
    %v742 = vunpack.c.l.b16 %v418
    %v743 = vunpack.c.l.b16 %v419
    %v744 = vunpack.c.l.b16 %v420
    %v745 = vunpack.c.l.b16 %v421
    %v746 = vunpack.c.l.b16 %v422
    %v747 = vunpack.c.l.b16 %v423
    %v748 = vunpack.c.l.b16 %v424
    %v749 = vunpack.c.l.b16 %v425
    %v750 = vunpack.c.l.b16 %v426
    %v751 = vunpack.c.l.b16 %v427
    %v752 = vunpack.c.l.b16 %v428
    %v753 = vunpack.c.l.b16 %v429
    %v754 = vunpack.c.l.b16 %v430
    %v755 = vunpack.c.l.b16 %v431
    %v756 = vunpack.c.l.b16 %v432
    %v757 = vunpack.c.l.b16 %v433
    %v758 = vunpack.c.l.b16 %v434
    %v759 = vunpack.c.l.b16 %v435
    %v760 = vunpack.c.l.b16 %v436
    %v761 = vunpack.c.l.b16 %v437
    %v762 = vunpack.c.l.b16 %v438
    %v763 = vunpack.c.l.b16 %v439
    %v764 = vunpack.c.l.b16 %v440
    %v765 = vunpack.c.l.b16 %v441
    %v766 = vunpack.c.l.b16 %v442
    %v767 = vunpack.c.l.b16 %v443
    %v768 = vunpack.c.l.b16 %v444
    %v769 = vunpack.c.l.b16 %v445
    %v770 = vunpack.c.l.b16 %v446
    %v771 = vunpack.c.l.b16 %v447
    %v772 = vunpack.c.l.b16 %v448
    %v773 = vunpack.c.l.b16 %v449
    %v774 = vunpack.c.l.b16 %v450
    %v775 = vunpack.c.l.b16 %v451
    %v776 = vunpack.c.l.b16 %v452
    %v777 = vunpack.c.l.b16 %v453
    %v778 = vunpack.c.l.b16 %v454
    %v779 = vunpack.c.l.b16 %v455
    %v780 = vunpack.c.l.b16 %v456
    %v781 = vunpack.c.l.b16 %v457
    %v782 = vunpack.c.l.b16 %v458
    %v783 = vunpack.c.l.b16 %v459
    %v784 = vunpack.c.l.b16 %v460
    %v785 = vunpack.c.l.b16 %v461
    %v786 = vunpack.c.l.b16 %v462
    %v787 = vunpack.c.l.b16 %v463
    %v788 = vunpack.c.l.b16 %v464
    %v789 = vunpack.c.l.b16 %v465
    %v790 = vunpack.c.l.b16 %v466
    %v791 = vunpack.c.l.b16 %v467
    %v792 = vunpack.c.l.b16 %v468
    %v793 = vunpack.c.l.b16 %v469
    %v794 = vunpack.c.l.b16 %v470
    %v795 = vunpack.c.l.b16 %v471
    %v796 = vunpack.c.l.b16 %v472
    %v797 = vunpack.c.l.b16 %v473
    %v798 = vunpack.c.l.b16 %v474
    %v799 = vunpack.c.l.b16 %v475
    %v800 = vunpack.c.l.b16 %v476
    %v801 = vunpack.c.l.b16 %v477
    %v802 = vunpack.c.l.b16 %v478
    %v803 = vunpack.c.l.b16 %v479
    %v804 = vunpack.c.l.b16 %v480
    %v805 = vunpack.c.l.b16 %v481
    %v806 = vunpack.c.l.b16 %v482
    %v807 = vunpack.c.l.b16 %v483
    %v808 = vunpack.c.l.b16 %v484
    %v809 = vunpack.c.l.b16 %v485
    %v810 = vunpack.c.l.b16 %v486
    %v811 = vunpack.c.l.b16 %v487
    %v812 = vunpack.c.l.b16 %v488
    %v813 = vunpack.c.l.b16 %v489
    %v814 = vunpack.c.l.b16 %v490
    %v815 = vunpack.c.l.b16 %v491
    %v816 = vunpack.c.l.b16 %v492
    %v817 = vunpack.c.l.b16 %v493
    %v818 = vunpack.c.l.b16 %v494
    %v819 = vunpack.c.l.b16 %v495
    %v820 = vunpack.c.l.b16 %v496
    %v821 = vunpack.c.l.b16 %v497
    %v822 = vunpack.c.l.b16 %v498
    %v823 = vunpack.c.l.b16 %v499
    %v824 = vunpack.c.l.b16 %v500
    %v825 = vunpack.c.l.b16 %v501
    %v826 = vunpack.c.l.b16 %v502
    %v827 = vunpack.c.l.b16 %v503
    %v828 = vunpack.c.l.b16 %v504
    %v829 = vunpack.c.l.b16 %v505
    %v830 = vunpack.c.l.b16 %v506
    %v831 = vunpack.c.l.b16 %v507
    %v832 = vunpack.c.l.b16 %v508
    %v833 = vunpack.c.l.b16 %v509
    %v834 = vunpack.c.l.b16 %v510
    %v835 = vunpack.c.l.b16 %v511
    %v836 = vunpack.c.l.b16 %v512
    %v837 = vunpack.c.l.b16 %v513
    %v838 = vunpack.c.l.b16 %v514
    %v839 = vunpack.c.l.b16 %v515
    %v840 = vunpack.c.l.b16 %v516
    %v841 = vunpack.c.l.b16 %v517
    %v842 = vunpack.c.l.b16 %v518
    %v843 = vunpack.c.l.b16 %v519
    %v844 = vunpack.c.l.b16 %v520
    %v845 = vunpack.c.l.b16 %v521
    %v846 = vunpack.c.l.b16 %v522
    %v847 = vunpack.c.l.b16 %v523
    %v848 = vunpack.c.l.b16 %v524
    %v849 = vunpack.c.l.b16 %v525
    %v850 = vunpack.c.l.b16 %v526
    %v851 = vunpack.c.l.b16 %v527
    %v852 = vunpack.c.l.b16 %v528
    %v853 = vunpack.c.l.b16 %v529
    %v854 = vunpack.c.l.b16 %v530
    %v855 = vunpack.c.l.b16 %v531
    %v856 = vunpack.c.l.b16 %v532
    %v857 = vunpack.c.l.b16 %v533
    %v858 = vunpack.c.l.b16 %v534
    %v859 = vunpack.c.l.b16 %v535
    %v860 = vunpack.c.l.b16 %v536
    %v861 = vunpack.c.l.b16 %v537
    %v862 = vunpack.c.l.b16 %v538
    %v863 = vunpack.c.l.b16 %v539
    %v864 = vunpack.c.l.b16 %v540
    %v865 = vunpack.c.l.b16 %v541
    %v866 = vunpack.c.l.b16 %v542
    %v867 = vunpack.c.l.b16 %v543
    %v868 = vunpack.c.l.b16 %v544
    %v869 = vunpack.c.l.b16 %v545
    %v870 = vunpack.c.l.b16 %v546
    %v871 = vunpack.c.l.b16 %v547
    %v872 = vunpack.c.l.b16 %v548
    %v873 = vunpack.c.l.b16 %v549
    %v874 = vunpack.c.l.b16 %v550
    %v875 = vunpack.c.l.b16 %v551
    %v876 = vunpack.c.l.b16 %v552
    %v877 = vunpack.c.l.b16 %v553
    %v878 = vunpack.c.l.b16 %v554
    %v879 = vunpack.c.l.b16 %v555
    %v880 = vunpack.c.l.b16 %v556
    %v881 = vunpack.c.l.b16 %v557
    %v882 = vunpack.c.l.b16 %v558
    %v883 = vunpack.c.l.b16 %v559
    %v884 = vunpack.c.l.b16 %v560
    %v885 = vunpack.c.l.b16 %v561
    %v886 = vunpack.c.l.b16 %v562
    %v887 = vunpack.c.l.b16 %v563
    %v888 = vunpack.c.l.b16 %v564
    %v889 = vunpack.c.l.b16 %v565
    %v890 = vunpack.c.l.b16 %v566
    %v891 = vunpack.c.l.b16 %v567
    %v892 = vunpack.c.l.b16 %v568
    %v893 = vunpack.c.l.b16 %v569
    %v894 = vunpack.c.l.b16 %v570
    %v895 = vunpack.c.l.b16 %v571
    %v896 = vunpack.c.l.b16 %v572
    %v897 = vunpack.c.l.b16 %v573
    %v898 = vunpack.c.l.b16 %v574
    %v899 = vunpack.c.l.b16 %v575
    %v900 = vpack.c.b16 %v741, %v740
    %v901 = vpack.c.b16 %v743, %v742
    %v902 = vpack.c.b16 %v745, %v744
    %v903 = vpack.c.b16 %v747, %v746
    %v904 = vpack.c.b16 %v749, %v748
    %v905 = vpack.c.b16 %v751, %v750
    %v906 = vpack.c.b16 %v753, %v752
    %v907 = vpack.c.b16 %v755, %v754
    %v908 = vpack.c.b16 %v757, %v756
    %v909 = vpack.c.b16 %v759, %v758
    %v910 = vpack.c.b16 %v761, %v760
    %v911 = vpack.c.b16 %v763, %v762
    %v912 = vpack.c.b16 %v765, %v764
    %v913 = vpack.c.b16 %v767, %v766
    %v914 = vpack.c.b16 %v769, %v768
    %v915 = vpack.c.b16 %v771, %v770
    %v916 = vpack.c.b16 %v773, %v772
    %v917 = vpack.c.b16 %v775, %v774
    %v918 = vpack.c.b16 %v777, %v776
    %v919 = vpack.c.b16 %v779, %v778
    %v920 = vpack.c.b16 %v781, %v780
    %v921 = vpack.c.b16 %v783, %v782
    %v922 = vpack.c.b16 %v785, %v784
    %v923 = vpack.c.b16 %v787, %v786
    %v924 = vpack.c.b16 %v789, %v788
    %v925 = vpack.c.b16 %v791, %v790
    %v926 = vpack.c.b16 %v793, %v792
    %v927 = vpack.c.b16 %v795, %v794
    %v928 = vpack.c.b16 %v797, %v796
    %v929 = vpack.c.b16 %v799, %v798
    %v930 = vpack.c.b16 %v801, %v800
    %v931 = vpack.c.b16 %v803, %v802
    %v932 = vpack.c.b16 %v805, %v804
    %v933 = vpack.c.b16 %v807, %v806
    %v934 = vpack.c.b16 %v809, %v808
    %v935 = vpack.c.b16 %v811, %v810
    %v936 = vpack.c.b16 %v813, %v812
    %v937 = vpack.c.b16 %v815, %v814
    %v938 = vpack.c.b16 %v817, %v816
    %v939 = vpack.c.b16 %v819, %v818
    %v940 = vpack.c.b16 %v821, %v820
    %v941 = vpack.c.b16 %v823, %v822
    %v942 = vpack.c.b16 %v825, %v824
    %v943 = vpack.c.b16 %v827, %v826
    %v944 = vpack.c.b16 %v829, %v828
    %v945 = vpack.c.b16 %v831, %v830
    %v946 = vpack.c.b16 %v833, %v832
    %v947 = vpack.c.b16 %v835, %v834
    %v948 = vpack.c.b16 %v837, %v836
    %v949 = vpack.c.b16 %v839, %v838
    %v950 = vpack.c.b16 %v841, %v840
    %v951 = vpack.c.b16 %v843, %v842
    %v952 = vpack.c.b16 %v845, %v844
    %v953 = vpack.c.b16 %v847, %v846
    %v954 = vpack.c.b16 %v849, %v848
    %v955 = vpack.c.b16 %v851, %v850
    %v956 = vpack.c.b16 %v853, %v852
    %v957 = vpack.c.b16 %v855, %v854
    %v958 = vpack.c.b16 %v857, %v856
    %v959 = vpack.c.b16 %v859, %v858
    %v960 = vpack.c.b16 %v861, %v860
    %v961 = vpack.c.b16 %v863, %v862
    %v962 = vpack.c.b16 %v865, %v864
    %v963 = vpack.c.b16 %v867, %v866
    %v964 = vpack.c.b16 %v869, %v868
    %v965 = vpack.c.b16 %v871, %v870
    %v966 = vpack.c.b16 %v873, %v872
    %v967 = vpack.c.b16 %v875, %v874
    %v968 = vpack.c.b16 %v877, %v876
    %v969 = vpack.c.b16 %v879, %v878
    %v970 = vpack.c.b16 %v881, %v880
    %v971 = vpack.c.b16 %v883, %v882
    %v972 = vpack.c.b16 %v885, %v884
    %v973 = vpack.c.b16 %v887, %v886
    %v974 = vpack.c.b16 %v889, %v888
    %v975 = vpack.c.b16 %v891, %v890
    %v976 = vpack.c.b16 %v893, %v892
    %v977 = vpack.c.b16 %v895, %v894
    %v978 = vpack.c.b16 %v897, %v896
    %v979 = vpack.c.b16 %v899, %v898
    %1060 = vmatpush.bf16.msra.mxu0 %v907
    %1061 = vmatpush.bf16.msra.mxu0 %v906
    %1062 = vmatpush.bf16.msra.mxu0 %v905
    %1063 = vmatpush.bf16.msra.mxu0 %v904
    %1064 = vmatpush.bf16.msra.mxu0 %v903
    %1065 = vmatpush.bf16.msra.mxu0 %v902
    %1066 = vmatpush.bf16.msra.mxu0 %v901
    %1067 = vmatpush.bf16.msra.mxu0 %v900
    %1068 = vmatmul.bf16.gmra.mxu0 %v406
    %v1069 = vpop.f32.mrf.mxu0
    %v1070 = vadd.f32 %v578, %v1069
    %v1071 = vpop.f32.mrf.mxu0
    %v1072 = vadd.f32 %v578, %v1071
    %1073 = vdwg.mxu0
    %1074 = vmatpush.bf16.msra.mxu0 %v915
    %1075 = vmatpush.bf16.msra.mxu0 %v914
    %1076 = vmatpush.bf16.msra.mxu0 %v913
    %1077 = vmatpush.bf16.msra.mxu0 %v912
    %1078 = vmatpush.bf16.msra.mxu0 %v911
    %1079 = vmatpush.bf16.msra.mxu0 %v910
    %1080 = vmatpush.bf16.msra.mxu0 %v909
    %1081 = vmatpush.bf16.msra.mxu0 %v908
    %1082 = vmatmul.bf16.gmra.mxu0 %v407
    %v1083 = vpop.f32.mrf.mxu0
    %v1084 = vadd.f32 %v1070, %v1083
    %v1085 = vpop.f32.mrf.mxu0
    %v1086 = vadd.f32 %v1072, %v1085
    %1087 = vdwg.mxu0
    %1088 = vmatpush.bf16.msra.mxu0 %v923
    %1089 = vmatpush.bf16.msra.mxu0 %v922
    %1090 = vmatpush.bf16.msra.mxu0 %v921
    %1091 = vmatpush.bf16.msra.mxu0 %v920
    %1092 = vmatpush.bf16.msra.mxu0 %v919
    %1093 = vmatpush.bf16.msra.mxu0 %v918
    %1094 = vmatpush.bf16.msra.mxu0 %v917
    %1095 = vmatpush.bf16.msra.mxu0 %v916
    %1096 = vmatmul.bf16.gmra.mxu0 %v408
    %v1097 = vpop.f32.mrf.mxu0
    %v1098 = vadd.f32 %v1084, %v1097
    %v1099 = vpop.f32.mrf.mxu0
    %v1100 = vadd.f32 %v1086, %v1099
    %1101 = vdwg.mxu0
    %1102 = vmatpush.bf16.msra.mxu0 %v931
    %1103 = vmatpush.bf16.msra.mxu0 %v930
    %1104 = vmatpush.bf16.msra.mxu0 %v929
    %1105 = vmatpush.bf16.msra.mxu0 %v928
    %1106 = vmatpush.bf16.msra.mxu0 %v927
    %1107 = vmatpush.bf16.msra.mxu0 %v926
    %1108 = vmatpush.bf16.msra.mxu0 %v925
    %1109 = vmatpush.bf16.msra.mxu0 %v924
    %1110 = vmatmul.bf16.gmra.mxu0 %v409
    %v1111 = vpop.f32.mrf.mxu0
    %v1112 = vadd.f32 %v1098, %v1111
    %v1113 = vpop.f32.mrf.mxu0
    %v1114 = vadd.f32 %v1100, %v1113
    %1115 = vdwg.mxu0
    %1116 = vmatpush.bf16.msra.mxu0 %v939
    %1117 = vmatpush.bf16.msra.mxu0 %v938
    %1118 = vmatpush.bf16.msra.mxu0 %v937
    %1119 = vmatpush.bf16.msra.mxu0 %v936
    %1120 = vmatpush.bf16.msra.mxu0 %v935
    %1121 = vmatpush.bf16.msra.mxu0 %v934
    %1122 = vmatpush.bf16.msra.mxu0 %v933
    %1123 = vmatpush.bf16.msra.mxu0 %v932
    %1124 = vmatmul.bf16.gmra.mxu0 %v410
    %v1125 = vpop.f32.mrf.mxu0
    %v1126 = vadd.f32 %v1112, %v1125
    %v1127 = vpop.f32.mrf.mxu0
    %v1128 = vadd.f32 %v1114, %v1127
    %1129 = vdwg.mxu0
    %1130 = vmatpush.bf16.msra.mxu0 %v947
    %1131 = vmatpush.bf16.msra.mxu0 %v946
    %1132 = vmatpush.bf16.msra.mxu0 %v945
    %1133 = vmatpush.bf16.msra.mxu0 %v944
    %1134 = vmatpush.bf16.msra.mxu0 %v943
    %1135 = vmatpush.bf16.msra.mxu0 %v942
    %1136 = vmatpush.bf16.msra.mxu0 %v941
    %1137 = vmatpush.bf16.msra.mxu0 %v940
    %1138 = vmatmul.bf16.gmra.mxu0 %v411
    %v1139 = vpop.f32.mrf.mxu0
    %v1140 = vadd.f32 %v1126, %v1139
    %v1141 = vpop.f32.mrf.mxu0
    %v1142 = vadd.f32 %v1128, %v1141
    %1143 = vdwg.mxu0
    %1144 = vmatpush.bf16.msra.mxu0 %v955
    %1145 = vmatpush.bf16.msra.mxu0 %v954
    %1146 = vmatpush.bf16.msra.mxu0 %v953
    %1147 = vmatpush.bf16.msra.mxu0 %v952
    %1148 = vmatpush.bf16.msra.mxu0 %v951
    %1149 = vmatpush.bf16.msra.mxu0 %v950
    %1150 = vmatpush.bf16.msra.mxu0 %v949
    %1151 = vmatpush.bf16.msra.mxu0 %v948
    %1152 = vmatmul.bf16.gmra.mxu0 %v412
    %v1153 = vpop.f32.mrf.mxu0
    %v1154 = vadd.f32 %v1140, %v1153
    %v1155 = vpop.f32.mrf.mxu0
    %v1156 = vadd.f32 %v1142, %v1155
    %1157 = vdwg.mxu0
    %1158 = vmatpush.bf16.msra.mxu0 %v963
    %1159 = vmatpush.bf16.msra.mxu0 %v962
    %1160 = vmatpush.bf16.msra.mxu0 %v961
    %1161 = vmatpush.bf16.msra.mxu0 %v960
    %1162 = vmatpush.bf16.msra.mxu0 %v959
    %1163 = vmatpush.bf16.msra.mxu0 %v958
    %1164 = vmatpush.bf16.msra.mxu0 %v957
    %1165 = vmatpush.bf16.msra.mxu0 %v956
    %1166 = vmatmul.bf16.gmra.mxu0 %v413
    %v1167 = vpop.f32.mrf.mxu0
    %v1168 = vadd.f32 %v1154, %v1167
    %v1169 = vpop.f32.mrf.mxu0
    %v1170 = vadd.f32 %v1156, %v1169
    %1171 = vdwg.mxu0
    %1172 = vmatpush.bf16.msra.mxu0 %v971
    %1173 = vmatpush.bf16.msra.mxu0 %v970
    %1174 = vmatpush.bf16.msra.mxu0 %v969
    %1175 = vmatpush.bf16.msra.mxu0 %v968
    %1176 = vmatpush.bf16.msra.mxu0 %v967
    %1177 = vmatpush.bf16.msra.mxu0 %v966
    %1178 = vmatpush.bf16.msra.mxu0 %v965
    %1179 = vmatpush.bf16.msra.mxu0 %v964
    %1180 = vmatmul.bf16.gmra.mxu0 %v414
    %v1181 = vpop.f32.mrf.mxu0
    %v1182 = vadd.f32 %v1168, %v1181
    %v1183 = vpop.f32.mrf.mxu0
    %v1184 = vadd.f32 %v1170, %v1183
    %1185 = vdwg.mxu0
    %1186 = vmatpush.bf16.msra.mxu0 %v979
    %1187 = vmatpush.bf16.msra.mxu0 %v978
    %1188 = vmatpush.bf16.msra.mxu0 %v977
    %1189 = vmatpush.bf16.msra.mxu0 %v976
    %1190 = vmatpush.bf16.msra.mxu0 %v975
    %1191 = vmatpush.bf16.msra.mxu0 %v974
    %1192 = vmatpush.bf16.msra.mxu0 %v973
    %1193 = vmatpush.bf16.msra.mxu0 %v972
    %1194 = vmatmul.bf16.gmra.mxu0 %v415
    %v1195 = vpop.f32.mrf.mxu0
    %v1196 = vadd.f32 %v1182, %v1195
    %v1197 = vpop.f32.mrf.mxu0
    %v1198 = vadd.f32 %v1184, %v1197
    %1199 = vdwg.mxu0
    %v1200 = vld [vmem:[%s13] sm:$0x1]
    %v1201 = vld [vmem:[%s15] sm:$0x1]
    %1202 = vadd.xlane.f32.xlu0 %v1196
    %v1203 = vpop.xlane.xlu0 %1202
    %1204 = vadd.xlane.f32.xlu0 %v1198
    %v1205 = vpop.xlane.xlu0 %1204
    %v1206 = vmul.f32 %v1196, %v1196
    %v1207 = vmul.f32 %v1198, %v1198
    %1208 = vadd.xlane.f32.xlu0 %v1206
    %v1209 = vpop.xlane.xlu0 %1208
    %1210 = vadd.xlane.f32.xlu0 %v1207
    %v1211 = vpop.xlane.xlu0 %1210
    %v1212 = vmul.f32 %v1203, 0.03125
    %v1213 = vmul.f32 %v1205, 0.03125
    %v1214 = vmul.f32 %v1209, 0.03125
    %v1215 = vmul.f32 %v1211, 0.03125
    %v1216 = vmul.f32 %v1212, %v1212
    %v1217 = vmul.f32 %v1213, %v1213
    %v1218 = vsub.f32 %v1214, %v1216
    %v1219 = vsub.f32 %v1215, %v1217
    %v1220 = vsub.f32 %v1196, %v1212
    %v1221 = vsub.f32 %v1198, %v1213
    %v1222 = vadd.f32 %v1218, 1e-05
    %v1223 = vadd.f32 %v1219, 1e-05
    %v1224 = vrsqrt.pop %v1222
    %v1225 = vmul.f32 %v1224, %v1222
    %v1226 = vmul.f32 %v1225, %v1224
    %v1227 = vmul.f32 0.5, %v1226
    %v1228 = vsub.f32 1.5, %v1227
    %v1229 = vmul.f32 %v1224, %v1228
    %vm1230 = vweird.f32 %v1222
    %vm1231 = vweird.f32 %v1224
    %vm1232 = vmor %vm1230, %vm1231
    %v1233 = vsel %vm1232, %v1224, %v1229
    %v1234 = vrsqrt.pop %v1223
    %v1235 = vmul.f32 %v1234, %v1223
    %v1236 = vmul.f32 %v1235, %v1234
    %v1237 = vmul.f32 0.5, %v1236
    %v1238 = vsub.f32 1.5, %v1237
    %v1239 = vmul.f32 %v1234, %v1238
    %vm1240 = vweird.f32 %v1223
    %vm1241 = vweird.f32 %v1234
    %vm1242 = vmor %vm1240, %vm1241
    %v1243 = vsel %vm1242, %v1234, %v1239
    %v1244 = vmul.f32 %v1220, %v1233
    %v1245 = vmul.f32 %v1221, %v1243
    %v1247 = vperm.slane %v1200, 0
    %v1249 = vmul.f32 %v1244, %v1247
    %v1250 = vmul.f32 %v1245, %v1247
    %v1252 = vperm.slane %v1201, 0
    %v1254 = vadd.f32 %v1249, %v1252
    %v1255 = vadd.f32 %v1250, %v1252
    %v1256 = vrot.slane %v1254, 4
    %v1257 = vmax.f32 %v1254, %v1256
    %v1258 = vrot.slane %v1257, 2
    %v1259 = vmax.f32 %v1257, %v1258
    %v1260 = vrot.slane %v1259, 1
    %v1261 = vmax.f32 %v1259, %v1260
    %v1262 = vrot.slane %v1255, 4
    %v1263 = vmax.f32 %v1255, %v1262
    %v1264 = vrot.slane %v1263, 2
    %v1265 = vmax.f32 %v1263, %v1264
    %v1266 = vrot.slane %v1265, 1
    %v1267 = vmax.f32 %v1265, %v1266
    %v1268 = vld [vmem:[#allocation2] sm:$0x3]
    %vm1271 = vcmask 1041409
    %v1272 = vsel %vm1271, %v1267, %v1261
    %v1274 = vmax.f32 %v1268, %v1272
    %1275 = vst [vmem:[#allocation2] sm:$0x3] %v1274
    // Predicated region
    $region198: #{erfppk_forward.1} parent=1 // pred_check
      %p1276 = pneg %p381
    $region199: #{erfppk_forward.1} parent=1 // pred_check_branch
      %1278 = sbr.rel (%p1276) target = $region201
    $region200: #{erfppk_forward.1} parent=1 // pred_region
      %v1279 = vld [vmem:[#allocation2] sm:$0x3]
      %v1280 = vld [vmem:[%s7] sm:$0x3]
      %v1281 = vpack.c.bf16 %v1280, %v1280
      %v1282 = vld [vmem:[#allocation10] sm:$0xf]
      %v1283 = vld [vmem:[#allocation10 + $0x4] sm:$0xf]
      %v1284 = vld [vmem:[#allocation10 + $0x8] sm:$0xf]
      %v1285 = vld [vmem:[#allocation10 + $0xc] sm:$0xf]
      %v1286 = vld [vmem:[#allocation10 + $0x10] sm:$0xf]
      %v1287 = vld [vmem:[#allocation10 + $0x14] sm:$0xf]
      %v1288 = vld [vmem:[#allocation10 + $0x18] sm:$0xf]
      %v1289 = vld [vmem:[#allocation10 + $0x1c] sm:$0xf]
      %v1290 = vld [vmem:[#allocation10 + $0x20] sm:$0xf]
      %v1291 = vld [vmem:[#allocation10 + $0x24] sm:$0xf]
      %v1292 = vld [vmem:[#allocation10 + $0x28] sm:$0xf]
      %v1293 = vld [vmem:[#allocation10 + $0x2c] sm:$0xf]
      %v1294 = vld [vmem:[#allocation10 + $0x30] sm:$0xf]
      %v1295 = vld [vmem:[#allocation10 + $0x34] sm:$0xf]
      %v1296 = vld [vmem:[#allocation10 + $0x38] sm:$0xf]
      %v1297 = vld [vmem:[#allocation10 + $0x3c] sm:$0xf]
      %v1298 = vld [vmem:[%s19] sm:$0x1]
      %v1300 = vperm.slane %v1298, 0
      %v1318 = vunpack.c.l.b16 %v1282
      %v1319 = vunpack.c.l.b16 %v1283
      %v1320 = vunpack.c.l.b16 %v1284
      %v1321 = vunpack.c.l.b16 %v1285
      %v1322 = vunpack.c.l.b16 %v1286
      %v1323 = vunpack.c.l.b16 %v1287
      %v1324 = vunpack.c.l.b16 %v1288
      %v1325 = vunpack.c.l.b16 %v1289
      %v1326 = vunpack.c.l.b16 %v1290
      %v1327 = vunpack.c.l.b16 %v1291
      %v1328 = vunpack.c.l.b16 %v1292
      %v1329 = vunpack.c.l.b16 %v1293
      %v1330 = vunpack.c.l.b16 %v1294
      %v1331 = vunpack.c.l.b16 %v1295
      %v1332 = vunpack.c.l.b16 %v1296
      %v1333 = vunpack.c.l.b16 %v1297
      %v1334 = vpack.c.b16 %v1319, %v1318
      %v1335 = vpack.c.b16 %v1321, %v1320
      %v1336 = vpack.c.b16 %v1323, %v1322
      %v1337 = vpack.c.b16 %v1325, %v1324
      %v1338 = vpack.c.b16 %v1327, %v1326
      %v1339 = vpack.c.b16 %v1329, %v1328
      %v1340 = vpack.c.b16 %v1331, %v1330
      %v1341 = vpack.c.b16 %v1333, %v1332
      %1350 = vmatpush.bf16.msra.mxu0 %v1341
      %1351 = vmatpush.bf16.msra.mxu0 %v1340
      %1352 = vmatpush.bf16.msra.mxu0 %v1339
      %1353 = vmatpush.bf16.msra.mxu0 %v1338
      %1354 = vmatpush.bf16.msra.mxu0 %v1337
      %1355 = vmatpush.bf16.msra.mxu0 %v1336
      %1356 = vmatpush.bf16.msra.mxu0 %v1335
      %1357 = vmatpush.bf16.msra.mxu0 %v1334
      %1358 = vmatmul.bf16.gmra.mxu0 %v1281
      %v1359 = vpop.f32.mrf.mxu0
      %v1360 = vadd.f32 %v1300, %v1359
      %v1361 = vpop.f32.mrf.mxu0
      %1362 = vdwg.mxu0
      %v1363 = vmax.f32 %v1360, 0.0
      %v1364 = vpack.c.bf16 %v1363, %v1363
      %v1365 = vld [vmem:[#allocation12] sm:$0xf]
      %v1366 = vld [vmem:[#allocation12 + $0x4] sm:$0xf]
      %v1367 = vld [vmem:[#allocation12 + $0x8] sm:$0xf]
      %v1368 = vld [vmem:[#allocation12 + $0xc] sm:$0xf]
      %v1369 = vld [vmem:[#allocation12 + $0x10] sm:$0xf]
      %v1370 = vld [vmem:[#allocation12 + $0x14] sm:$0xf]
      %v1371 = vld [vmem:[#allocation12 + $0x18] sm:$0xf]
      %v1372 = vld [vmem:[#allocation12 + $0x1c] sm:$0xf]
      %v1373 = vld [vmem:[#allocation12 + $0x20] sm:$0xf]
      %v1374 = vld [vmem:[#allocation12 + $0x24] sm:$0xf]
      %v1375 = vld [vmem:[#allocation12 + $0x28] sm:$0xf]
      %v1376 = vld [vmem:[#allocation12 + $0x2c] sm:$0xf]
      %v1377 = vld [vmem:[#allocation12 + $0x30] sm:$0xf]
      %v1378 = vld [vmem:[#allocation12 + $0x34] sm:$0xf]
      %v1379 = vld [vmem:[#allocation12 + $0x38] sm:$0xf]
      %v1380 = vld [vmem:[#allocation12 + $0x3c] sm:$0xf]
      %v1381 = vld [vmem:[%s23] sm:$0x1]
      %v1383 = vperm.slane %v1381, 0
      %v1401 = vunpack.c.l.b16 %v1365
      %v1402 = vunpack.c.l.b16 %v1366
      %v1403 = vunpack.c.l.b16 %v1367
      %v1404 = vunpack.c.l.b16 %v1368
      %v1405 = vunpack.c.l.b16 %v1369
      %v1406 = vunpack.c.l.b16 %v1370
      %v1407 = vunpack.c.l.b16 %v1371
      %v1408 = vunpack.c.l.b16 %v1372
      %v1409 = vunpack.c.l.b16 %v1373
      %v1410 = vunpack.c.l.b16 %v1374
      %v1411 = vunpack.c.l.b16 %v1375
      %v1412 = vunpack.c.l.b16 %v1376
      %v1413 = vunpack.c.l.b16 %v1377
      %v1414 = vunpack.c.l.b16 %v1378
      %v1415 = vunpack.c.l.b16 %v1379
      %v1416 = vunpack.c.l.b16 %v1380
      %v1417 = vpack.c.b16 %v1402, %v1401
      %v1418 = vpack.c.b16 %v1404, %v1403
      %v1419 = vpack.c.b16 %v1406, %v1405
      %v1420 = vpack.c.b16 %v1408, %v1407
      %v1421 = vpack.c.b16 %v1410, %v1409
      %v1422 = vpack.c.b16 %v1412, %v1411
      %v1423 = vpack.c.b16 %v1414, %v1413
      %v1424 = vpack.c.b16 %v1416, %v1415
      %1433 = vmatpush.bf16.msra.mxu0 %v1424
      %1434 = vmatpush.bf16.msra.mxu0 %v1423
      %1435 = vmatpush.bf16.msra.mxu0 %v1422
      %1436 = vmatpush.bf16.msra.mxu0 %v1421
      %1437 = vmatpush.bf16.msra.mxu0 %v1420
      %1438 = vmatpush.bf16.msra.mxu0 %v1419
      %1439 = vmatpush.bf16.msra.mxu0 %v1418
      %1440 = vmatpush.bf16.msra.mxu0 %v1417
      %1441 = vmatmul.bf16.gmra.mxu0 %v1364
      %v1442 = vpop.f32.mrf.mxu0
      %v1443 = vadd.f32 %v1383, %v1442
      %v1444 = vpop.f32.mrf.mxu0
      %1445 = vdwg.mxu0
      %v1446 = vld [vmem:[%s25] sm:$0x1]
      %v1447 = vld [vmem:[%s27] sm:$0x1]
      %vm1448 = vcmask 1041408
      %v1449 = vsel %vm1448, %v1443, 0.0
      %1450 = vadd.xlane.f32.xlu0 %v1449
      %v1451 = vpop.xlane.xlu0 %1450
      %v1452 = vmul.f32 %v1443, %v1443
      %v1453 = vsel %vm1448, %v1452, 0.0
      %1454 = vadd.xlane.f32.xlu0 %v1453
      %v1455 = vpop.xlane.xlu0 %1454
      %v1456 = vmul.f32 %v1451, 0.03125
      %v1457 = vmul.f32 %v1455, 0.03125
      %v1458 = vmul.f32 %v1456, %v1456
      %v1459 = vsub.f32 %v1457, %v1458
      %v1460 = vsub.f32 %v1443, %v1456
      %v1461 = vadd.f32 %v1459, 1e-05
      %v1462 = vrsqrt.pop %v1461
      %v1463 = vmul.f32 %v1462, %v1461
      %v1464 = vmul.f32 %v1463, %v1462
      %v1465 = vmul.f32 0.5, %v1464
      %v1466 = vsub.f32 1.5, %v1465
      %v1467 = vmul.f32 %v1462, %v1466
      %vm1468 = vweird.f32 %v1461
      %vm1469 = vweird.f32 %v1462
      %vm1470 = vmor %vm1468, %vm1469
      %v1471 = vsel %vm1470, %v1462, %v1467
      %v1472 = vmul.f32 %v1460, %v1471
      %v1474 = vperm.slane %v1446, 0
      %v1476 = vmul.f32 %v1472, %v1474
      %v1478 = vperm.slane %v1447, 0
      %v1480 = vadd.f32 %v1476, %v1478
      %v1481 = vld [vmem:[%s3] sm:$0xff]
      %v1482 = vld [vmem:[%s3 + $0x8] sm:$0xff]
      %1485 = vst [vmem:[#allocation1] ss:$4 sm:$0xff] %v1481
      %s1486 = scalar_lea.vmem [#allocation1], 32
      %1487 = vst [vmem:[%s1486] ss:$4 sm:$0xff] %v1482
      %v1488 = vld.sshfl [vmem:[#allocation1] sm:$0xff pattern:$0x73625140]
      %v1489 = vld.sshfl [vmem:[#allocation1 + $0x8] sm:$0xff pattern:$0x73625140]
      %v1490 = vld.sshfl [vmem:[#allocation1 + $0x10] sm:$0xff pattern:$0x73625140]
      %v1491 = vld.sshfl [vmem:[#allocation1 + $0x18] sm:$0xff pattern:$0x73625140]
      %v1492 = vld.sshfl [vmem:[#allocation1 + $0x20] sm:$0xff pattern:$0x73625140]
      %v1493 = vld.sshfl [vmem:[#allocation1 + $0x28] sm:$0xff pattern:$0x73625140]
      %v1494 = vld.sshfl [vmem:[#allocation1 + $0x30] sm:$0xff pattern:$0x73625140]
      %v1495 = vld.sshfl [vmem:[#allocation1 + $0x38] sm:$0xff pattern:$0x73625140]
      %v1504 = vpack.c.bf16 %v1488, %v1488
      %v1505 = vpack.c.bf16 %v1489, %v1489
      %v1506 = vpack.c.bf16 %v1490, %v1490
      %v1507 = vpack.c.bf16 %v1491, %v1491
      %v1508 = vpack.c.bf16 %v1492, %v1492
      %v1509 = vpack.c.bf16 %v1493, %v1493
      %v1510 = vpack.c.bf16 %v1494, %v1494
      %v1511 = vpack.c.bf16 %v1495, %v1495
      %v1512 = vld [vmem:[#allocation13] sm:$0xf]
      %v1513 = vld [vmem:[#allocation13 + $0x4] sm:$0xf]
      %v1514 = vld [vmem:[#allocation13 + $0x8] sm:$0xf]
      %v1515 = vld [vmem:[#allocation13 + $0xc] sm:$0xf]
      %v1516 = vld [vmem:[#allocation13 + $0x10] sm:$0xf]
      %v1517 = vld [vmem:[#allocation13 + $0x14] sm:$0xf]
      %v1518 = vld [vmem:[#allocation13 + $0x18] sm:$0xf]
      %v1519 = vld [vmem:[#allocation13 + $0x1c] sm:$0xf]
      %v1520 = vld [vmem:[#allocation13 + $0x20] sm:$0xf]
      %v1521 = vld [vmem:[#allocation13 + $0x24] sm:$0xf]
      %v1522 = vld [vmem:[#allocation13 + $0x28] sm:$0xf]
      %v1523 = vld [vmem:[#allocation13 + $0x2c] sm:$0xf]
      %v1524 = vld [vmem:[#allocation13 + $0x30] sm:$0xf]
      %v1525 = vld [vmem:[#allocation13 + $0x34] sm:$0xf]
      %v1526 = vld [vmem:[#allocation13 + $0x38] sm:$0xf]
      %v1527 = vld [vmem:[#allocation13 + $0x3c] sm:$0xf]
      %v1528 = vld [vmem:[#allocation13 + $0x40] sm:$0xf]
      %v1529 = vld [vmem:[#allocation13 + $0x44] sm:$0xf]
      %v1530 = vld [vmem:[#allocation13 + $0x48] sm:$0xf]
      %v1531 = vld [vmem:[#allocation13 + $0x4c] sm:$0xf]
      %v1532 = vld [vmem:[#allocation13 + $0x50] sm:$0xf]
      %v1533 = vld [vmem:[#allocation13 + $0x54] sm:$0xf]
      %v1534 = vld [vmem:[#allocation13 + $0x58] sm:$0xf]
      %v1535 = vld [vmem:[#allocation13 + $0x5c] sm:$0xf]
      %v1536 = vld [vmem:[#allocation13 + $0x60] sm:$0xf]
      %v1537 = vld [vmem:[#allocation13 + $0x64] sm:$0xf]
      %v1538 = vld [vmem:[#allocation13 + $0x68] sm:$0xf]
      %v1539 = vld [vmem:[#allocation13 + $0x6c] sm:$0xf]
      %v1540 = vld [vmem:[#allocation13 + $0x70] sm:$0xf]
      %v1541 = vld [vmem:[#allocation13 + $0x74] sm:$0xf]
      %v1542 = vld [vmem:[#allocation13 + $0x78] sm:$0xf]
      %v1543 = vld [vmem:[#allocation13 + $0x7c] sm:$0xf]
      %v1544 = vld [vmem:[#allocation13 + $0x80] sm:$0xf]
      %v1545 = vld [vmem:[#allocation13 + $0x84] sm:$0xf]
      %v1546 = vld [vmem:[#allocation13 + $0x88] sm:$0xf]
      %v1547 = vld [vmem:[#allocation13 + $0x8c] sm:$0xf]
      %v1548 = vld [vmem:[#allocation13 + $0x90] sm:$0xf]
      %v1549 = vld [vmem:[#allocation13 + $0x94] sm:$0xf]
      %v1550 = vld [vmem:[#allocation13 + $0x98] sm:$0xf]
      %v1551 = vld [vmem:[#allocation13 + $0x9c] sm:$0xf]
      %v1552 = vld [vmem:[#allocation13 + $0xa0] sm:$0xf]
      %v1553 = vld [vmem:[#allocation13 + $0xa4] sm:$0xf]
      %v1554 = vld [vmem:[#allocation13 + $0xa8] sm:$0xf]
      %v1555 = vld [vmem:[#allocation13 + $0xac] sm:$0xf]
      %v1556 = vld [vmem:[#allocation13 + $0xb0] sm:$0xf]
      %v1557 = vld [vmem:[#allocation13 + $0xb4] sm:$0xf]
      %v1558 = vld [vmem:[#allocation13 + $0xb8] sm:$0xf]
      %v1559 = vld [vmem:[#allocation13 + $0xbc] sm:$0xf]
      %v1560 = vld [vmem:[#allocation13 + $0xc0] sm:$0xf]
      %v1561 = vld [vmem:[#allocation13 + $0xc4] sm:$0xf]
      %v1562 = vld [vmem:[#allocation13 + $0xc8] sm:$0xf]
      %v1563 = vld [vmem:[#allocation13 + $0xcc] sm:$0xf]
      %v1564 = vld [vmem:[#allocation13 + $0xd0] sm:$0xf]
      %v1565 = vld [vmem:[#allocation13 + $0xd4] sm:$0xf]
      %v1566 = vld [vmem:[#allocation13 + $0xd8] sm:$0xf]
      %v1567 = vld [vmem:[#allocation13 + $0xdc] sm:$0xf]
      %v1568 = vld [vmem:[#allocation13 + $0xe0] sm:$0xf]
      %v1569 = vld [vmem:[#allocation13 + $0xe4] sm:$0xf]
      %v1570 = vld [vmem:[#allocation13 + $0xe8] sm:$0xf]
      %v1571 = vld [vmem:[#allocation13 + $0xec] sm:$0xf]
      %v1572 = vld [vmem:[#allocation13 + $0xf0] sm:$0xf]
      %v1573 = vld [vmem:[#allocation13 + $0xf4] sm:$0xf]
      %v1574 = vld [vmem:[#allocation13 + $0xf8] sm:$0xf]
      %v1575 = vld [vmem:[#allocation13 + $0xfc] sm:$0xf]
      %v1576 = vld [vmem:[#allocation13 + $0x100] sm:$0xf]
      %v1577 = vld [vmem:[#allocation13 + $0x104] sm:$0xf]
      %v1578 = vld [vmem:[#allocation13 + $0x108] sm:$0xf]
      %v1579 = vld [vmem:[#allocation13 + $0x10c] sm:$0xf]
      %v1580 = vld [vmem:[#allocation13 + $0x110] sm:$0xf]
      %v1581 = vld [vmem:[#allocation13 + $0x114] sm:$0xf]
      %v1582 = vld [vmem:[#allocation13 + $0x118] sm:$0xf]
      %v1583 = vld [vmem:[#allocation13 + $0x11c] sm:$0xf]
      %v1584 = vld [vmem:[#allocation13 + $0x120] sm:$0xf]
      %v1585 = vld [vmem:[#allocation13 + $0x124] sm:$0xf]
      %v1586 = vld [vmem:[#allocation13 + $0x128] sm:$0xf]
      %v1587 = vld [vmem:[#allocation13 + $0x12c] sm:$0xf]
      %v1588 = vld [vmem:[#allocation13 + $0x130] sm:$0xf]
      %v1589 = vld [vmem:[#allocation13 + $0x134] sm:$0xf]
      %v1590 = vld [vmem:[#allocation13 + $0x138] sm:$0xf]
      %v1591 = vld [vmem:[#allocation13 + $0x13c] sm:$0xf]
      %v1592 = vld [vmem:[#allocation13 + $0x140] sm:$0xf]
      %v1593 = vld [vmem:[#allocation13 + $0x144] sm:$0xf]
      %v1594 = vld [vmem:[#allocation13 + $0x148] sm:$0xf]
      %v1595 = vld [vmem:[#allocation13 + $0x14c] sm:$0xf]
      %v1596 = vld [vmem:[#allocation13 + $0x150] sm:$0xf]
      %v1597 = vld [vmem:[#allocation13 + $0x154] sm:$0xf]
      %v1598 = vld [vmem:[#allocation13 + $0x158] sm:$0xf]
      %v1599 = vld [vmem:[#allocation13 + $0x15c] sm:$0xf]
      %v1600 = vld [vmem:[#allocation13 + $0x160] sm:$0xf]
      %v1601 = vld [vmem:[#allocation13 + $0x164] sm:$0xf]
      %v1602 = vld [vmem:[#allocation13 + $0x168] sm:$0xf]
      %v1603 = vld [vmem:[#allocation13 + $0x16c] sm:$0xf]
      %v1604 = vld [vmem:[#allocation13 + $0x170] sm:$0xf]
      %v1605 = vld [vmem:[#allocation13 + $0x174] sm:$0xf]
      %v1606 = vld [vmem:[#allocation13 + $0x178] sm:$0xf]
      %v1607 = vld [vmem:[#allocation13 + $0x17c] sm:$0xf]
      %v1608 = vld [vmem:[#allocation13 + $0x180] sm:$0xf]
      %v1609 = vld [vmem:[#allocation13 + $0x184] sm:$0xf]
      %v1610 = vld [vmem:[#allocation13 + $0x188] sm:$0xf]
      %v1611 = vld [vmem:[#allocation13 + $0x18c] sm:$0xf]
      %v1612 = vld [vmem:[#allocation13 + $0x190] sm:$0xf]
      %v1613 = vld [vmem:[#allocation13 + $0x194] sm:$0xf]
      %v1614 = vld [vmem:[#allocation13 + $0x198] sm:$0xf]
      %v1615 = vld [vmem:[#allocation13 + $0x19c] sm:$0xf]
      %v1616 = vld [vmem:[#allocation13 + $0x1a0] sm:$0xf]
      %v1617 = vld [vmem:[#allocation13 + $0x1a4] sm:$0xf]
      %v1618 = vld [vmem:[#allocation13 + $0x1a8] sm:$0xf]
      %v1619 = vld [vmem:[#allocation13 + $0x1ac] sm:$0xf]
      %v1620 = vld [vmem:[#allocation13 + $0x1b0] sm:$0xf]
      %v1621 = vld [vmem:[#allocation13 + $0x1b4] sm:$0xf]
      %v1622 = vld [vmem:[#allocation13 + $0x1b8] sm:$0xf]
      %v1623 = vld [vmem:[#allocation13 + $0x1bc] sm:$0xf]
      %v1624 = vld [vmem:[#allocation13 + $0x1c0] sm:$0xf]
      %v1625 = vld [vmem:[#allocation13 + $0x1c4] sm:$0xf]
      %v1626 = vld [vmem:[#allocation13 + $0x1c8] sm:$0xf]
      %v1627 = vld [vmem:[#allocation13 + $0x1cc] sm:$0xf]
      %v1628 = vld [vmem:[#allocation13 + $0x1d0] sm:$0xf]
      %v1629 = vld [vmem:[#allocation13 + $0x1d4] sm:$0xf]
      %v1630 = vld [vmem:[#allocation13 + $0x1d8] sm:$0xf]
      %v1631 = vld [vmem:[#allocation13 + $0x1dc] sm:$0xf]
      %v1632 = vld [vmem:[#allocation13 + $0x1e0] sm:$0xf]
      %v1633 = vld [vmem:[#allocation13 + $0x1e4] sm:$0xf]
      %v1634 = vld [vmem:[#allocation13 + $0x1e8] sm:$0xf]
      %v1635 = vld [vmem:[#allocation13 + $0x1ec] sm:$0xf]
      %v1636 = vld [vmem:[#allocation13 + $0x1f0] sm:$0xf]
      %v1637 = vld [vmem:[#allocation13 + $0x1f4] sm:$0xf]
      %v1638 = vld [vmem:[#allocation13 + $0x1f8] sm:$0xf]
      %v1639 = vld [vmem:[#allocation13 + $0x1fc] sm:$0xf]
      %v1640 = vld [vmem:[%s31] sm:$0x1]
      %v1642 = vperm.slane %v1640, 0
      %v1772 = vunpack.c.l.b16 %v1512
      %v1773 = vunpack.c.l.b16 %v1513
      %v1774 = vunpack.c.l.b16 %v1514
      %v1775 = vunpack.c.l.b16 %v1515
      %v1776 = vunpack.c.l.b16 %v1516
      %v1777 = vunpack.c.l.b16 %v1517
      %v1778 = vunpack.c.l.b16 %v1518
      %v1779 = vunpack.c.l.b16 %v1519
      %v1780 = vunpack.c.l.b16 %v1520
      %v1781 = vunpack.c.l.b16 %v1521
      %v1782 = vunpack.c.l.b16 %v1522
      %v1783 = vunpack.c.l.b16 %v1523
      %v1784 = vunpack.c.l.b16 %v1524
      %v1785 = vunpack.c.l.b16 %v1525
      %v1786 = vunpack.c.l.b16 %v1526
      %v1787 = vunpack.c.l.b16 %v1527
      %v1788 = vunpack.c.l.b16 %v1528
      %v1789 = vunpack.c.l.b16 %v1529
      %v1790 = vunpack.c.l.b16 %v1530
      %v1791 = vunpack.c.l.b16 %v1531
      %v1792 = vunpack.c.l.b16 %v1532
      %v1793 = vunpack.c.l.b16 %v1533
      %v1794 = vunpack.c.l.b16 %v1534
      %v1795 = vunpack.c.l.b16 %v1535
      %v1796 = vunpack.c.l.b16 %v1536
      %v1797 = vunpack.c.l.b16 %v1537
      %v1798 = vunpack.c.l.b16 %v1538
      %v1799 = vunpack.c.l.b16 %v1539
      %v1800 = vunpack.c.l.b16 %v1540
      %v1801 = vunpack.c.l.b16 %v1541
      %v1802 = vunpack.c.l.b16 %v1542
      %v1803 = vunpack.c.l.b16 %v1543
      %v1804 = vunpack.c.l.b16 %v1544
      %v1805 = vunpack.c.l.b16 %v1545
      %v1806 = vunpack.c.l.b16 %v1546
      %v1807 = vunpack.c.l.b16 %v1547
      %v1808 = vunpack.c.l.b16 %v1548
      %v1809 = vunpack.c.l.b16 %v1549
      %v1810 = vunpack.c.l.b16 %v1550
      %v1811 = vunpack.c.l.b16 %v1551
      %v1812 = vunpack.c.l.b16 %v1552
      %v1813 = vunpack.c.l.b16 %v1553
      %v1814 = vunpack.c.l.b16 %v1554
      %v1815 = vunpack.c.l.b16 %v1555
      %v1816 = vunpack.c.l.b16 %v1556
      %v1817 = vunpack.c.l.b16 %v1557
      %v1818 = vunpack.c.l.b16 %v1558
      %v1819 = vunpack.c.l.b16 %v1559
      %v1820 = vunpack.c.l.b16 %v1560
      %v1821 = vunpack.c.l.b16 %v1561
      %v1822 = vunpack.c.l.b16 %v1562
      %v1823 = vunpack.c.l.b16 %v1563
      %v1824 = vunpack.c.l.b16 %v1564
      %v1825 = vunpack.c.l.b16 %v1565
      %v1826 = vunpack.c.l.b16 %v1566
      %v1827 = vunpack.c.l.b16 %v1567
      %v1828 = vunpack.c.l.b16 %v1568
      %v1829 = vunpack.c.l.b16 %v1569
      %v1830 = vunpack.c.l.b16 %v1570
      %v1831 = vunpack.c.l.b16 %v1571
      %v1832 = vunpack.c.l.b16 %v1572
      %v1833 = vunpack.c.l.b16 %v1573
      %v1834 = vunpack.c.l.b16 %v1574
      %v1835 = vunpack.c.l.b16 %v1575
      %v1836 = vunpack.c.l.b16 %v1576
      %v1837 = vunpack.c.l.b16 %v1577
      %v1838 = vunpack.c.l.b16 %v1578
      %v1839 = vunpack.c.l.b16 %v1579
      %v1840 = vunpack.c.l.b16 %v1580
      %v1841 = vunpack.c.l.b16 %v1581
      %v1842 = vunpack.c.l.b16 %v1582
      %v1843 = vunpack.c.l.b16 %v1583
      %v1844 = vunpack.c.l.b16 %v1584
      %v1845 = vunpack.c.l.b16 %v1585
      %v1846 = vunpack.c.l.b16 %v1586
      %v1847 = vunpack.c.l.b16 %v1587
      %v1848 = vunpack.c.l.b16 %v1588
      %v1849 = vunpack.c.l.b16 %v1589
      %v1850 = vunpack.c.l.b16 %v1590
      %v1851 = vunpack.c.l.b16 %v1591
      %v1852 = vunpack.c.l.b16 %v1592
      %v1853 = vunpack.c.l.b16 %v1593
      %v1854 = vunpack.c.l.b16 %v1594
      %v1855 = vunpack.c.l.b16 %v1595
      %v1856 = vunpack.c.l.b16 %v1596
      %v1857 = vunpack.c.l.b16 %v1597
      %v1858 = vunpack.c.l.b16 %v1598
      %v1859 = vunpack.c.l.b16 %v1599
      %v1860 = vunpack.c.l.b16 %v1600
      %v1861 = vunpack.c.l.b16 %v1601
      %v1862 = vunpack.c.l.b16 %v1602
      %v1863 = vunpack.c.l.b16 %v1603
      %v1864 = vunpack.c.l.b16 %v1604
      %v1865 = vunpack.c.l.b16 %v1605
      %v1866 = vunpack.c.l.b16 %v1606
      %v1867 = vunpack.c.l.b16 %v1607
      %v1868 = vunpack.c.l.b16 %v1608
      %v1869 = vunpack.c.l.b16 %v1609
      %v1870 = vunpack.c.l.b16 %v1610
      %v1871 = vunpack.c.l.b16 %v1611
      %v1872 = vunpack.c.l.b16 %v1612
      %v1873 = vunpack.c.l.b16 %v1613
      %v1874 = vunpack.c.l.b16 %v1614
      %v1875 = vunpack.c.l.b16 %v1615
      %v1876 = vunpack.c.l.b16 %v1616
      %v1877 = vunpack.c.l.b16 %v1617
      %v1878 = vunpack.c.l.b16 %v1618
      %v1879 = vunpack.c.l.b16 %v1619
      %v1880 = vunpack.c.l.b16 %v1620
      %v1881 = vunpack.c.l.b16 %v1621
      %v1882 = vunpack.c.l.b16 %v1622
      %v1883 = vunpack.c.l.b16 %v1623
      %v1884 = vunpack.c.l.b16 %v1624
      %v1885 = vunpack.c.l.b16 %v1625
      %v1886 = vunpack.c.l.b16 %v1626
      %v1887 = vunpack.c.l.b16 %v1627
      %v1888 = vunpack.c.l.b16 %v1628
      %v1889 = vunpack.c.l.b16 %v1629
      %v1890 = vunpack.c.l.b16 %v1630
      %v1891 = vunpack.c.l.b16 %v1631
      %v1892 = vunpack.c.l.b16 %v1632
      %v1893 = vunpack.c.l.b16 %v1633
      %v1894 = vunpack.c.l.b16 %v1634
      %v1895 = vunpack.c.l.b16 %v1635
      %v1896 = vunpack.c.l.b16 %v1636
      %v1897 = vunpack.c.l.b16 %v1637
      %v1898 = vunpack.c.l.b16 %v1638
      %v1899 = vunpack.c.l.b16 %v1639
      %v1900 = vpack.c.b16 %v1773, %v1772
      %v1901 = vpack.c.b16 %v1775, %v1774
      %v1902 = vpack.c.b16 %v1777, %v1776
      %v1903 = vpack.c.b16 %v1779, %v1778
      %v1904 = vpack.c.b16 %v1781, %v1780
      %v1905 = vpack.c.b16 %v1783, %v1782
      %v1906 = vpack.c.b16 %v1785, %v1784
      %v1907 = vpack.c.b16 %v1787, %v1786
      %v1908 = vpack.c.b16 %v1789, %v1788
      %v1909 = vpack.c.b16 %v1791, %v1790
      %v1910 = vpack.c.b16 %v1793, %v1792
      %v1911 = vpack.c.b16 %v1795, %v1794
      %v1912 = vpack.c.b16 %v1797, %v1796
      %v1913 = vpack.c.b16 %v1799, %v1798
      %v1914 = vpack.c.b16 %v1801, %v1800
      %v1915 = vpack.c.b16 %v1803, %v1802
      %v1916 = vpack.c.b16 %v1805, %v1804
      %v1917 = vpack.c.b16 %v1807, %v1806
      %v1918 = vpack.c.b16 %v1809, %v1808
      %v1919 = vpack.c.b16 %v1811, %v1810
      %v1920 = vpack.c.b16 %v1813, %v1812
      %v1921 = vpack.c.b16 %v1815, %v1814
      %v1922 = vpack.c.b16 %v1817, %v1816
      %v1923 = vpack.c.b16 %v1819, %v1818
      %v1924 = vpack.c.b16 %v1821, %v1820
      %v1925 = vpack.c.b16 %v1823, %v1822
      %v1926 = vpack.c.b16 %v1825, %v1824
      %v1927 = vpack.c.b16 %v1827, %v1826
      %v1928 = vpack.c.b16 %v1829, %v1828
      %v1929 = vpack.c.b16 %v1831, %v1830
      %v1930 = vpack.c.b16 %v1833, %v1832
      %v1931 = vpack.c.b16 %v1835, %v1834
      %v1932 = vpack.c.b16 %v1837, %v1836
      %v1933 = vpack.c.b16 %v1839, %v1838
      %v1934 = vpack.c.b16 %v1841, %v1840
      %v1935 = vpack.c.b16 %v1843, %v1842
      %v1936 = vpack.c.b16 %v1845, %v1844
      %v1937 = vpack.c.b16 %v1847, %v1846
      %v1938 = vpack.c.b16 %v1849, %v1848
      %v1939 = vpack.c.b16 %v1851, %v1850
      %v1940 = vpack.c.b16 %v1853, %v1852
      %v1941 = vpack.c.b16 %v1855, %v1854
      %v1942 = vpack.c.b16 %v1857, %v1856
      %v1943 = vpack.c.b16 %v1859, %v1858
      %v1944 = vpack.c.b16 %v1861, %v1860
      %v1945 = vpack.c.b16 %v1863, %v1862
      %v1946 = vpack.c.b16 %v1865, %v1864
      %v1947 = vpack.c.b16 %v1867, %v1866
      %v1948 = vpack.c.b16 %v1869, %v1868
      %v1949 = vpack.c.b16 %v1871, %v1870
      %v1950 = vpack.c.b16 %v1873, %v1872
      %v1951 = vpack.c.b16 %v1875, %v1874
      %v1952 = vpack.c.b16 %v1877, %v1876
      %v1953 = vpack.c.b16 %v1879, %v1878
      %v1954 = vpack.c.b16 %v1881, %v1880
      %v1955 = vpack.c.b16 %v1883, %v1882
      %v1956 = vpack.c.b16 %v1885, %v1884
      %v1957 = vpack.c.b16 %v1887, %v1886
      %v1958 = vpack.c.b16 %v1889, %v1888
      %v1959 = vpack.c.b16 %v1891, %v1890
      %v1960 = vpack.c.b16 %v1893, %v1892
      %v1961 = vpack.c.b16 %v1895, %v1894
      %v1962 = vpack.c.b16 %v1897, %v1896
      %v1963 = vpack.c.b16 %v1899, %v1898
      %2028 = vmatpush.bf16.msra.mxu0 %v1907
      %2029 = vmatpush.bf16.msra.mxu0 %v1906
      %2030 = vmatpush.bf16.msra.mxu0 %v1905
      %2031 = vmatpush.bf16.msra.mxu0 %v1904
      %2032 = vmatpush.bf16.msra.mxu0 %v1903
      %2033 = vmatpush.bf16.msra.mxu0 %v1902
      %2034 = vmatpush.bf16.msra.mxu0 %v1901
      %2035 = vmatpush.bf16.msra.mxu0 %v1900
      %2036 = vmatmul.bf16.gmra.mxu0 %v1504
      %v2037 = vpop.f32.mrf.mxu0
      %v2038 = vadd.f32 %v1642, %v2037
      %v2039 = vpop.f32.mrf.mxu0
      %2040 = vdwg.mxu0
      %2041 = vmatpush.bf16.msra.mxu0 %v1915
      %2042 = vmatpush.bf16.msra.mxu0 %v1914
      %2043 = vmatpush.bf16.msra.mxu0 %v1913
      %2044 = vmatpush.bf16.msra.mxu0 %v1912
      %2045 = vmatpush.bf16.msra.mxu0 %v1911
      %2046 = vmatpush.bf16.msra.mxu0 %v1910
      %2047 = vmatpush.bf16.msra.mxu0 %v1909
      %2048 = vmatpush.bf16.msra.mxu0 %v1908
      %2049 = vmatmul.bf16.gmra.mxu0 %v1505
      %v2050 = vpop.f32.mrf.mxu0
      %v2051 = vadd.f32 %v2038, %v2050
      %v2052 = vpop.f32.mrf.mxu0
      %2053 = vdwg.mxu0
      %2054 = vmatpush.bf16.msra.mxu0 %v1923
      %2055 = vmatpush.bf16.msra.mxu0 %v1922
      %2056 = vmatpush.bf16.msra.mxu0 %v1921
      %2057 = vmatpush.bf16.msra.mxu0 %v1920
      %2058 = vmatpush.bf16.msra.mxu0 %v1919
      %2059 = vmatpush.bf16.msra.mxu0 %v1918
      %2060 = vmatpush.bf16.msra.mxu0 %v1917
      %2061 = vmatpush.bf16.msra.mxu0 %v1916
      %2062 = vmatmul.bf16.gmra.mxu0 %v1506
      %v2063 = vpop.f32.mrf.mxu0
      %v2064 = vadd.f32 %v2051, %v2063
      %v2065 = vpop.f32.mrf.mxu0
      %2066 = vdwg.mxu0
      %2067 = vmatpush.bf16.msra.mxu0 %v1931
      %2068 = vmatpush.bf16.msra.mxu0 %v1930
      %2069 = vmatpush.bf16.msra.mxu0 %v1929
      %2070 = vmatpush.bf16.msra.mxu0 %v1928
      %2071 = vmatpush.bf16.msra.mxu0 %v1927
      %2072 = vmatpush.bf16.msra.mxu0 %v1926
      %2073 = vmatpush.bf16.msra.mxu0 %v1925
      %2074 = vmatpush.bf16.msra.mxu0 %v1924
      %2075 = vmatmul.bf16.gmra.mxu0 %v1507
      %v2076 = vpop.f32.mrf.mxu0
      %v2077 = vadd.f32 %v2064, %v2076
      %v2078 = vpop.f32.mrf.mxu0
      %2079 = vdwg.mxu0
      %2080 = vmatpush.bf16.msra.mxu0 %v1939
      %2081 = vmatpush.bf16.msra.mxu0 %v1938
      %2082 = vmatpush.bf16.msra.mxu0 %v1937
      %2083 = vmatpush.bf16.msra.mxu0 %v1936
      %2084 = vmatpush.bf16.msra.mxu0 %v1935
      %2085 = vmatpush.bf16.msra.mxu0 %v1934
      %2086 = vmatpush.bf16.msra.mxu0 %v1933
      %2087 = vmatpush.bf16.msra.mxu0 %v1932
      %2088 = vmatmul.bf16.gmra.mxu0 %v1508
      %v2089 = vpop.f32.mrf.mxu0
      %v2090 = vadd.f32 %v2077, %v2089
      %v2091 = vpop.f32.mrf.mxu0
      %2092 = vdwg.mxu0
      %2093 = vmatpush.bf16.msra.mxu0 %v1947
      %2094 = vmatpush.bf16.msra.mxu0 %v1946
      %2095 = vmatpush.bf16.msra.mxu0 %v1945
      %2096 = vmatpush.bf16.msra.mxu0 %v1944
      %2097 = vmatpush.bf16.msra.mxu0 %v1943
      %2098 = vmatpush.bf16.msra.mxu0 %v1942
      %2099 = vmatpush.bf16.msra.mxu0 %v1941
      %2100 = vmatpush.bf16.msra.mxu0 %v1940
      %2101 = vmatmul.bf16.gmra.mxu0 %v1509
      %v2102 = vpop.f32.mrf.mxu0
      %v2103 = vadd.f32 %v2090, %v2102
      %v2104 = vpop.f32.mrf.mxu0
      %2105 = vdwg.mxu0
      %2106 = vmatpush.bf16.msra.mxu0 %v1955
      %2107 = vmatpush.bf16.msra.mxu0 %v1954
      %2108 = vmatpush.bf16.msra.mxu0 %v1953
      %2109 = vmatpush.bf16.msra.mxu0 %v1952
      %2110 = vmatpush.bf16.msra.mxu0 %v1951
      %2111 = vmatpush.bf16.msra.mxu0 %v1950
      %2112 = vmatpush.bf16.msra.mxu0 %v1949
      %2113 = vmatpush.bf16.msra.mxu0 %v1948
      %2114 = vmatmul.bf16.gmra.mxu0 %v1510
      %v2115 = vpop.f32.mrf.mxu0
      %v2116 = vadd.f32 %v2103, %v2115
      %v2117 = vpop.f32.mrf.mxu0
      %2118 = vdwg.mxu0
      %2119 = vmatpush.bf16.msra.mxu0 %v1963
      %2120 = vmatpush.bf16.msra.mxu0 %v1962
      %2121 = vmatpush.bf16.msra.mxu0 %v1961
      %2122 = vmatpush.bf16.msra.mxu0 %v1960
      %2123 = vmatpush.bf16.msra.mxu0 %v1959
      %2124 = vmatpush.bf16.msra.mxu0 %v1958
      %2125 = vmatpush.bf16.msra.mxu0 %v1957
      %2126 = vmatpush.bf16.msra.mxu0 %v1956
      %2127 = vmatmul.bf16.gmra.mxu0 %v1511
      %v2128 = vpop.f32.mrf.mxu0
      %v2129 = vadd.f32 %v2116, %v2128
      %v2130 = vpop.f32.mrf.mxu0
      %2131 = vdwg.mxu0
      %v2132 = vld [vmem:[#allocation7] sm:$0xff]
      %v2133 = vld [vmem:[#allocation7 + $0x8] sm:$0xff]
      %2136 = vst [vmem:[#allocation1] ss:$4 sm:$0xff] %v2132
      %s2137 = scalar_lea.vmem [#allocation1], 32
      %2138 = vst [vmem:[%s2137] ss:$4 sm:$0xff] %v2133
      %v2139 = vld.sshfl [vmem:[#allocation1] sm:$0xff pattern:$0x73625140]
      %v2140 = vld.sshfl [vmem:[#allocation1 + $0x8] sm:$0xff pattern:$0x73625140]
      %v2141 = vld.sshfl [vmem:[#allocation1 + $0x10] sm:$0xff pattern:$0x73625140]
      %v2142 = vld.sshfl [vmem:[#allocation1 + $0x18] sm:$0xff pattern:$0x73625140]
      %v2143 = vld.sshfl [vmem:[#allocation1 + $0x20] sm:$0xff pattern:$0x73625140]
      %v2144 = vld.sshfl [vmem:[#allocation1 + $0x28] sm:$0xff pattern:$0x73625140]
      %v2145 = vld.sshfl [vmem:[#allocation1 + $0x30] sm:$0xff pattern:$0x73625140]
      %v2146 = vld.sshfl [vmem:[#allocation1 + $0x38] sm:$0xff pattern:$0x73625140]
      %v2155 = vpack.c.bf16 %v2139, %v2139
      %v2156 = vpack.c.bf16 %v2140, %v2140
      %v2157 = vpack.c.bf16 %v2141, %v2141
      %v2158 = vpack.c.bf16 %v2142, %v2142
      %v2159 = vpack.c.bf16 %v2143, %v2143
      %v2160 = vpack.c.bf16 %v2144, %v2144
      %v2161 = vpack.c.bf16 %v2145, %v2145
      %v2162 = vpack.c.bf16 %v2146, %v2146
      %v2163 = vld [vmem:[#allocation15] sm:$0xf]
      %v2164 = vld [vmem:[#allocation15 + $0x4] sm:$0xf]
      %v2165 = vld [vmem:[#allocation15 + $0x8] sm:$0xf]
      %v2166 = vld [vmem:[#allocation15 + $0xc] sm:$0xf]
      %v2167 = vld [vmem:[#allocation15 + $0x10] sm:$0xf]
      %v2168 = vld [vmem:[#allocation15 + $0x14] sm:$0xf]
      %v2169 = vld [vmem:[#allocation15 + $0x18] sm:$0xf]
      %v2170 = vld [vmem:[#allocation15 + $0x1c] sm:$0xf]
      %v2171 = vld [vmem:[#allocation15 + $0x20] sm:$0xf]
      %v2172 = vld [vmem:[#allocation15 + $0x24] sm:$0xf]
      %v2173 = vld [vmem:[#allocation15 + $0x28] sm:$0xf]
      %v2174 = vld [vmem:[#allocation15 + $0x2c] sm:$0xf]
      %v2175 = vld [vmem:[#allocation15 + $0x30] sm:$0xf]
      %v2176 = vld [vmem:[#allocation15 + $0x34] sm:$0xf]
      %v2177 = vld [vmem:[#allocation15 + $0x38] sm:$0xf]
      %v2178 = vld [vmem:[#allocation15 + $0x3c] sm:$0xf]
      %v2179 = vld [vmem:[#allocation15 + $0x40] sm:$0xf]
      %v2180 = vld [vmem:[#allocation15 + $0x44] sm:$0xf]
      %v2181 = vld [vmem:[#allocation15 + $0x48] sm:$0xf]
      %v2182 = vld [vmem:[#allocation15 + $0x4c] sm:$0xf]
      %v2183 = vld [vmem:[#allocation15 + $0x50] sm:$0xf]
      %v2184 = vld [vmem:[#allocation15 + $0x54] sm:$0xf]
      %v2185 = vld [vmem:[#allocation15 + $0x58] sm:$0xf]
      %v2186 = vld [vmem:[#allocation15 + $0x5c] sm:$0xf]
      %v2187 = vld [vmem:[#allocation15 + $0x60] sm:$0xf]
      %v2188 = vld [vmem:[#allocation15 + $0x64] sm:$0xf]
      %v2189 = vld [vmem:[#allocation15 + $0x68] sm:$0xf]
      %v2190 = vld [vmem:[#allocation15 + $0x6c] sm:$0xf]
      %v2191 = vld [vmem:[#allocation15 + $0x70] sm:$0xf]
      %v2192 = vld [vmem:[#allocation15 + $0x74] sm:$0xf]
      %v2193 = vld [vmem:[#allocation15 + $0x78] sm:$0xf]
      %v2194 = vld [vmem:[#allocation15 + $0x7c] sm:$0xf]
      %v2195 = vld [vmem:[#allocation15 + $0x80] sm:$0xf]
      %v2196 = vld [vmem:[#allocation15 + $0x84] sm:$0xf]
      %v2197 = vld [vmem:[#allocation15 + $0x88] sm:$0xf]
      %v2198 = vld [vmem:[#allocation15 + $0x8c] sm:$0xf]
      %v2199 = vld [vmem:[#allocation15 + $0x90] sm:$0xf]
      %v2200 = vld [vmem:[#allocation15 + $0x94] sm:$0xf]
      %v2201 = vld [vmem:[#allocation15 + $0x98] sm:$0xf]
      %v2202 = vld [vmem:[#allocation15 + $0x9c] sm:$0xf]
      %v2203 = vld [vmem:[#allocation15 + $0xa0] sm:$0xf]
      %v2204 = vld [vmem:[#allocation15 + $0xa4] sm:$0xf]
      %v2205 = vld [vmem:[#allocation15 + $0xa8] sm:$0xf]
      %v2206 = vld [vmem:[#allocation15 + $0xac] sm:$0xf]
      %v2207 = vld [vmem:[#allocation15 + $0xb0] sm:$0xf]
      %v2208 = vld [vmem:[#allocation15 + $0xb4] sm:$0xf]
      %v2209 = vld [vmem:[#allocation15 + $0xb8] sm:$0xf]
      %v2210 = vld [vmem:[#allocation15 + $0xbc] sm:$0xf]
      %v2211 = vld [vmem:[#allocation15 + $0xc0] sm:$0xf]
      %v2212 = vld [vmem:[#allocation15 + $0xc4] sm:$0xf]
      %v2213 = vld [vmem:[#allocation15 + $0xc8] sm:$0xf]
      %v2214 = vld [vmem:[#allocation15 + $0xcc] sm:$0xf]
      %v2215 = vld [vmem:[#allocation15 + $0xd0] sm:$0xf]
      %v2216 = vld [vmem:[#allocation15 + $0xd4] sm:$0xf]
      %v2217 = vld [vmem:[#allocation15 + $0xd8] sm:$0xf]
      %v2218 = vld [vmem:[#allocation15 + $0xdc] sm:$0xf]
      %v2219 = vld [vmem:[#allocation15 + $0xe0] sm:$0xf]
      %v2220 = vld [vmem:[#allocation15 + $0xe4] sm:$0xf]
      %v2221 = vld [vmem:[#allocation15 + $0xe8] sm:$0xf]
      %v2222 = vld [vmem:[#allocation15 + $0xec] sm:$0xf]
      %v2223 = vld [vmem:[#allocation15 + $0xf0] sm:$0xf]
      %v2224 = vld [vmem:[#allocation15 + $0xf4] sm:$0xf]
      %v2225 = vld [vmem:[#allocation15 + $0xf8] sm:$0xf]
      %v2226 = vld [vmem:[#allocation15 + $0xfc] sm:$0xf]
      %v2227 = vld [vmem:[#allocation15 + $0x100] sm:$0xf]
      %v2228 = vld [vmem:[#allocation15 + $0x104] sm:$0xf]
      %v2229 = vld [vmem:[#allocation15 + $0x108] sm:$0xf]
      %v2230 = vld [vmem:[#allocation15 + $0x10c] sm:$0xf]
      %v2231 = vld [vmem:[#allocation15 + $0x110] sm:$0xf]
      %v2232 = vld [vmem:[#allocation15 + $0x114] sm:$0xf]
      %v2233 = vld [vmem:[#allocation15 + $0x118] sm:$0xf]
      %v2234 = vld [vmem:[#allocation15 + $0x11c] sm:$0xf]
      %v2235 = vld [vmem:[#allocation15 + $0x120] sm:$0xf]
      %v2236 = vld [vmem:[#allocation15 + $0x124] sm:$0xf]
      %v2237 = vld [vmem:[#allocation15 + $0x128] sm:$0xf]
      %v2238 = vld [vmem:[#allocation15 + $0x12c] sm:$0xf]
      %v2239 = vld [vmem:[#allocation15 + $0x130] sm:$0xf]
      %v2240 = vld [vmem:[#allocation15 + $0x134] sm:$0xf]
      %v2241 = vld [vmem:[#allocation15 + $0x138] sm:$0xf]
      %v2242 = vld [vmem:[#allocation15 + $0x13c] sm:$0xf]
      %v2243 = vld [vmem:[#allocation15 + $0x140] sm:$0xf]
      %v2244 = vld [vmem:[#allocation15 + $0x144] sm:$0xf]
      %v2245 = vld [vmem:[#allocation15 + $0x148] sm:$0xf]
      %v2246 = vld [vmem:[#allocation15 + $0x14c] sm:$0xf]
      %v2247 = vld [vmem:[#allocation15 + $0x150] sm:$0xf]
      %v2248 = vld [vmem:[#allocation15 + $0x154] sm:$0xf]
      %v2249 = vld [vmem:[#allocation15 + $0x158] sm:$0xf]
      %v2250 = vld [vmem:[#allocation15 + $0x15c] sm:$0xf]
      %v2251 = vld [vmem:[#allocation15 + $0x160] sm:$0xf]
      %v2252 = vld [vmem:[#allocation15 + $0x164] sm:$0xf]
      %v2253 = vld [vmem:[#allocation15 + $0x168] sm:$0xf]
      %v2254 = vld [vmem:[#allocation15 + $0x16c] sm:$0xf]
      %v2255 = vld [vmem:[#allocation15 + $0x170] sm:$0xf]
      %v2256 = vld [vmem:[#allocation15 + $0x174] sm:$0xf]
      %v2257 = vld [vmem:[#allocation15 + $0x178] sm:$0xf]
      %v2258 = vld [vmem:[#allocation15 + $0x17c] sm:$0xf]
      %v2259 = vld [vmem:[#allocation15 + $0x180] sm:$0xf]
      %v2260 = vld [vmem:[#allocation15 + $0x184] sm:$0xf]
      %v2261 = vld [vmem:[#allocation15 + $0x188] sm:$0xf]
      %v2262 = vld [vmem:[#allocation15 + $0x18c] sm:$0xf]
      %v2263 = vld [vmem:[#allocation15 + $0x190] sm:$0xf]
      %v2264 = vld [vmem:[#allocation15 + $0x194] sm:$0xf]
      %v2265 = vld [vmem:[#allocation15 + $0x198] sm:$0xf]
      %v2266 = vld [vmem:[#allocation15 + $0x19c] sm:$0xf]
      %v2267 = vld [vmem:[#allocation15 + $0x1a0] sm:$0xf]
      %v2268 = vld [vmem:[#allocation15 + $0x1a4] sm:$0xf]
      %v2269 = vld [vmem:[#allocation15 + $0x1a8] sm:$0xf]
      %v2270 = vld [vmem:[#allocation15 + $0x1ac] sm:$0xf]
      %v2271 = vld [vmem:[#allocation15 + $0x1b0] sm:$0xf]
      %v2272 = vld [vmem:[#allocation15 + $0x1b4] sm:$0xf]
      %v2273 = vld [vmem:[#allocation15 + $0x1b8] sm:$0xf]
      %v2274 = vld [vmem:[#allocation15 + $0x1bc] sm:$0xf]
      %v2275 = vld [vmem:[#allocation15 + $0x1c0] sm:$0xf]
      %v2276 = vld [vmem:[#allocation15 + $0x1c4] sm:$0xf]
      %v2277 = vld [vmem:[#allocation15 + $0x1c8] sm:$0xf]
      %v2278 = vld [vmem:[#allocation15 + $0x1cc] sm:$0xf]
      %v2279 = vld [vmem:[#allocation15 + $0x1d0] sm:$0xf]
      %v2280 = vld [vmem:[#allocation15 + $0x1d4] sm:$0xf]
      %v2281 = vld [vmem:[#allocation15 + $0x1d8] sm:$0xf]
      %v2282 = vld [vmem:[#allocation15 + $0x1dc] sm:$0xf]
      %v2283 = vld [vmem:[#allocation15 + $0x1e0] sm:$0xf]
      %v2284 = vld [vmem:[#allocation15 + $0x1e4] sm:$0xf]
      %v2285 = vld [vmem:[#allocation15 + $0x1e8] sm:$0xf]
      %v2286 = vld [vmem:[#allocation15 + $0x1ec] sm:$0xf]
      %v2287 = vld [vmem:[#allocation15 + $0x1f0] sm:$0xf]
      %v2288 = vld [vmem:[#allocation15 + $0x1f4] sm:$0xf]
      %v2289 = vld [vmem:[#allocation15 + $0x1f8] sm:$0xf]
      %v2290 = vld [vmem:[#allocation15 + $0x1fc] sm:$0xf]
      %v2291 = vld [vmem:[#allocation16] sm:$0x1]
      %v2293 = vperm.slane %v2291, 0
      %v2423 = vunpack.c.l.b16 %v2163
      %v2424 = vunpack.c.l.b16 %v2164
      %v2425 = vunpack.c.l.b16 %v2165
      %v2426 = vunpack.c.l.b16 %v2166
      %v2427 = vunpack.c.l.b16 %v2167
      %v2428 = vunpack.c.l.b16 %v2168
      %v2429 = vunpack.c.l.b16 %v2169
      %v2430 = vunpack.c.l.b16 %v2170
      %v2431 = vunpack.c.l.b16 %v2171
      %v2432 = vunpack.c.l.b16 %v2172
      %v2433 = vunpack.c.l.b16 %v2173
      %v2434 = vunpack.c.l.b16 %v2174
      %v2435 = vunpack.c.l.b16 %v2175
      %v2436 = vunpack.c.l.b16 %v2176
      %v2437 = vunpack.c.l.b16 %v2177
      %v2438 = vunpack.c.l.b16 %v2178
      %v2439 = vunpack.c.l.b16 %v2179
      %v2440 = vunpack.c.l.b16 %v2180
      %v2441 = vunpack.c.l.b16 %v2181
      %v2442 = vunpack.c.l.b16 %v2182
      %v2443 = vunpack.c.l.b16 %v2183
      %v2444 = vunpack.c.l.b16 %v2184
      %v2445 = vunpack.c.l.b16 %v2185
      %v2446 = vunpack.c.l.b16 %v2186
      %v2447 = vunpack.c.l.b16 %v2187
      %v2448 = vunpack.c.l.b16 %v2188
      %v2449 = vunpack.c.l.b16 %v2189
      %v2450 = vunpack.c.l.b16 %v2190
      %v2451 = vunpack.c.l.b16 %v2191
      %v2452 = vunpack.c.l.b16 %v2192
      %v2453 = vunpack.c.l.b16 %v2193
      %v2454 = vunpack.c.l.b16 %v2194
      %v2455 = vunpack.c.l.b16 %v2195
      %v2456 = vunpack.c.l.b16 %v2196
      %v2457 = vunpack.c.l.b16 %v2197
      %v2458 = vunpack.c.l.b16 %v2198
      %v2459 = vunpack.c.l.b16 %v2199
      %v2460 = vunpack.c.l.b16 %v2200
      %v2461 = vunpack.c.l.b16 %v2201
      %v2462 = vunpack.c.l.b16 %v2202
      %v2463 = vunpack.c.l.b16 %v2203
      %v2464 = vunpack.c.l.b16 %v2204
      %v2465 = vunpack.c.l.b16 %v2205
      %v2466 = vunpack.c.l.b16 %v2206
      %v2467 = vunpack.c.l.b16 %v2207
      %v2468 = vunpack.c.l.b16 %v2208
      %v2469 = vunpack.c.l.b16 %v2209
      %v2470 = vunpack.c.l.b16 %v2210
      %v2471 = vunpack.c.l.b16 %v2211
      %v2472 = vunpack.c.l.b16 %v2212
      %v2473 = vunpack.c.l.b16 %v2213
      %v2474 = vunpack.c.l.b16 %v2214
      %v2475 = vunpack.c.l.b16 %v2215
      %v2476 = vunpack.c.l.b16 %v2216
      %v2477 = vunpack.c.l.b16 %v2217
      %v2478 = vunpack.c.l.b16 %v2218
      %v2479 = vunpack.c.l.b16 %v2219
      %v2480 = vunpack.c.l.b16 %v2220
      %v2481 = vunpack.c.l.b16 %v2221
      %v2482 = vunpack.c.l.b16 %v2222
      %v2483 = vunpack.c.l.b16 %v2223
      %v2484 = vunpack.c.l.b16 %v2224
      %v2485 = vunpack.c.l.b16 %v2225
      %v2486 = vunpack.c.l.b16 %v2226
      %v2487 = vunpack.c.l.b16 %v2227
      %v2488 = vunpack.c.l.b16 %v2228
      %v2489 = vunpack.c.l.b16 %v2229
      %v2490 = vunpack.c.l.b16 %v2230
      %v2491 = vunpack.c.l.b16 %v2231
      %v2492 = vunpack.c.l.b16 %v2232
      %v2493 = vunpack.c.l.b16 %v2233
      %v2494 = vunpack.c.l.b16 %v2234
      %v2495 = vunpack.c.l.b16 %v2235
      %v2496 = vunpack.c.l.b16 %v2236
      %v2497 = vunpack.c.l.b16 %v2237
      %v2498 = vunpack.c.l.b16 %v2238
      %v2499 = vunpack.c.l.b16 %v2239
      %v2500 = vunpack.c.l.b16 %v2240
      %v2501 = vunpack.c.l.b16 %v2241
      %v2502 = vunpack.c.l.b16 %v2242
      %v2503 = vunpack.c.l.b16 %v2243
      %v2504 = vunpack.c.l.b16 %v2244
      %v2505 = vunpack.c.l.b16 %v2245
      %v2506 = vunpack.c.l.b16 %v2246
      %v2507 = vunpack.c.l.b16 %v2247
      %v2508 = vunpack.c.l.b16 %v2248
      %v2509 = vunpack.c.l.b16 %v2249
      %v2510 = vunpack.c.l.b16 %v2250
      %v2511 = vunpack.c.l.b16 %v2251
      %v2512 = vunpack.c.l.b16 %v2252
      %v2513 = vunpack.c.l.b16 %v2253
      %v2514 = vunpack.c.l.b16 %v2254
      %v2515 = vunpack.c.l.b16 %v2255
      %v2516 = vunpack.c.l.b16 %v2256
      %v2517 = vunpack.c.l.b16 %v2257
      %v2518 = vunpack.c.l.b16 %v2258
      %v2519 = vunpack.c.l.b16 %v2259
      %v2520 = vunpack.c.l.b16 %v2260
      %v2521 = vunpack.c.l.b16 %v2261
      %v2522 = vunpack.c.l.b16 %v2262
      %v2523 = vunpack.c.l.b16 %v2263
      %v2524 = vunpack.c.l.b16 %v2264
      %v2525 = vunpack.c.l.b16 %v2265
      %v2526 = vunpack.c.l.b16 %v2266
      %v2527 = vunpack.c.l.b16 %v2267
      %v2528 = vunpack.c.l.b16 %v2268
      %v2529 = vunpack.c.l.b16 %v2269
      %v2530 = vunpack.c.l.b16 %v2270
      %v2531 = vunpack.c.l.b16 %v2271
      %v2532 = vunpack.c.l.b16 %v2272
      %v2533 = vunpack.c.l.b16 %v2273
      %v2534 = vunpack.c.l.b16 %v2274
      %v2535 = vunpack.c.l.b16 %v2275
      %v2536 = vunpack.c.l.b16 %v2276
      %v2537 = vunpack.c.l.b16 %v2277
      %v2538 = vunpack.c.l.b16 %v2278
      %v2539 = vunpack.c.l.b16 %v2279
      %v2540 = vunpack.c.l.b16 %v2280
      %v2541 = vunpack.c.l.b16 %v2281
      %v2542 = vunpack.c.l.b16 %v2282
      %v2543 = vunpack.c.l.b16 %v2283
      %v2544 = vunpack.c.l.b16 %v2284
      %v2545 = vunpack.c.l.b16 %v2285
      %v2546 = vunpack.c.l.b16 %v2286
      %v2547 = vunpack.c.l.b16 %v2287
      %v2548 = vunpack.c.l.b16 %v2288
      %v2549 = vunpack.c.l.b16 %v2289
      %v2550 = vunpack.c.l.b16 %v2290
      %v2551 = vpack.c.b16 %v2424, %v2423
      %v2552 = vpack.c.b16 %v2426, %v2425
      %v2553 = vpack.c.b16 %v2428, %v2427
      %v2554 = vpack.c.b16 %v2430, %v2429
      %v2555 = vpack.c.b16 %v2432, %v2431
      %v2556 = vpack.c.b16 %v2434, %v2433
      %v2557 = vpack.c.b16 %v2436, %v2435
      %v2558 = vpack.c.b16 %v2438, %v2437
      %v2559 = vpack.c.b16 %v2440, %v2439
      %v2560 = vpack.c.b16 %v2442, %v2441
      %v2561 = vpack.c.b16 %v2444, %v2443
      %v2562 = vpack.c.b16 %v2446, %v2445
      %v2563 = vpack.c.b16 %v2448, %v2447
      %v2564 = vpack.c.b16 %v2450, %v2449
      %v2565 = vpack.c.b16 %v2452, %v2451
      %v2566 = vpack.c.b16 %v2454, %v2453
      %v2567 = vpack.c.b16 %v2456, %v2455
      %v2568 = vpack.c.b16 %v2458, %v2457
      %v2569 = vpack.c.b16 %v2460, %v2459
      %v2570 = vpack.c.b16 %v2462, %v2461
      %v2571 = vpack.c.b16 %v2464, %v2463
      %v2572 = vpack.c.b16 %v2466, %v2465
      %v2573 = vpack.c.b16 %v2468, %v2467
      %v2574 = vpack.c.b16 %v2470, %v2469
      %v2575 = vpack.c.b16 %v2472, %v2471
      %v2576 = vpack.c.b16 %v2474, %v2473
      %v2577 = vpack.c.b16 %v2476, %v2475
      %v2578 = vpack.c.b16 %v2478, %v2477
      %v2579 = vpack.c.b16 %v2480, %v2479
      %v2580 = vpack.c.b16 %v2482, %v2481
      %v2581 = vpack.c.b16 %v2484, %v2483
      %v2582 = vpack.c.b16 %v2486, %v2485
      %v2583 = vpack.c.b16 %v2488, %v2487
      %v2584 = vpack.c.b16 %v2490, %v2489
      %v2585 = vpack.c.b16 %v2492, %v2491
      %v2586 = vpack.c.b16 %v2494, %v2493
      %v2587 = vpack.c.b16 %v2496, %v2495
      %v2588 = vpack.c.b16 %v2498, %v2497
      %v2589 = vpack.c.b16 %v2500, %v2499
      %v2590 = vpack.c.b16 %v2502, %v2501
      %v2591 = vpack.c.b16 %v2504, %v2503
      %v2592 = vpack.c.b16 %v2506, %v2505
      %v2593 = vpack.c.b16 %v2508, %v2507
      %v2594 = vpack.c.b16 %v2510, %v2509
      %v2595 = vpack.c.b16 %v2512, %v2511
      %v2596 = vpack.c.b16 %v2514, %v2513
      %v2597 = vpack.c.b16 %v2516, %v2515
      %v2598 = vpack.c.b16 %v2518, %v2517
      %v2599 = vpack.c.b16 %v2520, %v2519
      %v2600 = vpack.c.b16 %v2522, %v2521
      %v2601 = vpack.c.b16 %v2524, %v2523
      %v2602 = vpack.c.b16 %v2526, %v2525
      %v2603 = vpack.c.b16 %v2528, %v2527
      %v2604 = vpack.c.b16 %v2530, %v2529
      %v2605 = vpack.c.b16 %v2532, %v2531
      %v2606 = vpack.c.b16 %v2534, %v2533
      %v2607 = vpack.c.b16 %v2536, %v2535
      %v2608 = vpack.c.b16 %v2538, %v2537
      %v2609 = vpack.c.b16 %v2540, %v2539
      %v2610 = vpack.c.b16 %v2542, %v2541
      %v2611 = vpack.c.b16 %v2544, %v2543
      %v2612 = vpack.c.b16 %v2546, %v2545
      %v2613 = vpack.c.b16 %v2548, %v2547
      %v2614 = vpack.c.b16 %v2550, %v2549
      %2679 = vmatpush.bf16.msra.mxu0 %v2558
      %2680 = vmatpush.bf16.msra.mxu0 %v2557
      %2681 = vmatpush.bf16.msra.mxu0 %v2556
      %2682 = vmatpush.bf16.msra.mxu0 %v2555
      %2683 = vmatpush.bf16.msra.mxu0 %v2554
      %2684 = vmatpush.bf16.msra.mxu0 %v2553
      %2685 = vmatpush.bf16.msra.mxu0 %v2552
      %2686 = vmatpush.bf16.msra.mxu0 %v2551
      %2687 = vmatmul.bf16.gmra.mxu0 %v2155
      %v2688 = vpop.f32.mrf.mxu0
      %v2689 = vadd.f32 %v2293, %v2688
      %v2690 = vpop.f32.mrf.mxu0
      %2691 = vdwg.mxu0
      %2692 = vmatpush.bf16.msra.mxu0 %v2566
      %2693 = vmatpush.bf16.msra.mxu0 %v2565
      %2694 = vmatpush.bf16.msra.mxu0 %v2564
      %2695 = vmatpush.bf16.msra.mxu0 %v2563
      %2696 = vmatpush.bf16.msra.mxu0 %v2562
      %2697 = vmatpush.bf16.msra.mxu0 %v2561
      %2698 = vmatpush.bf16.msra.mxu0 %v2560
      %2699 = vmatpush.bf16.msra.mxu0 %v2559
      %2700 = vmatmul.bf16.gmra.mxu0 %v2156
      %v2701 = vpop.f32.mrf.mxu0
      %v2702 = vadd.f32 %v2689, %v2701
      %v2703 = vpop.f32.mrf.mxu0
      %2704 = vdwg.mxu0
      %2705 = vmatpush.bf16.msra.mxu0 %v2574
      %2706 = vmatpush.bf16.msra.mxu0 %v2573
      %2707 = vmatpush.bf16.msra.mxu0 %v2572
      %2708 = vmatpush.bf16.msra.mxu0 %v2571
      %2709 = vmatpush.bf16.msra.mxu0 %v2570
      %2710 = vmatpush.bf16.msra.mxu0 %v2569
      %2711 = vmatpush.bf16.msra.mxu0 %v2568
      %2712 = vmatpush.bf16.msra.mxu0 %v2567
      %2713 = vmatmul.bf16.gmra.mxu0 %v2157
      %v2714 = vpop.f32.mrf.mxu0
      %v2715 = vadd.f32 %v2702, %v2714
      %v2716 = vpop.f32.mrf.mxu0
      %2717 = vdwg.mxu0
      %2718 = vmatpush.bf16.msra.mxu0 %v2582
      %2719 = vmatpush.bf16.msra.mxu0 %v2581
      %2720 = vmatpush.bf16.msra.mxu0 %v2580
      %2721 = vmatpush.bf16.msra.mxu0 %v2579
      %2722 = vmatpush.bf16.msra.mxu0 %v2578
      %2723 = vmatpush.bf16.msra.mxu0 %v2577
      %2724 = vmatpush.bf16.msra.mxu0 %v2576
      %2725 = vmatpush.bf16.msra.mxu0 %v2575
      %2726 = vmatmul.bf16.gmra.mxu0 %v2158
      %v2727 = vpop.f32.mrf.mxu0
      %v2728 = vadd.f32 %v2715, %v2727
      %v2729 = vpop.f32.mrf.mxu0
      %2730 = vdwg.mxu0
      %2731 = vmatpush.bf16.msra.mxu0 %v2590
      %2732 = vmatpush.bf16.msra.mxu0 %v2589
      %2733 = vmatpush.bf16.msra.mxu0 %v2588
      %2734 = vmatpush.bf16.msra.mxu0 %v2587
      %2735 = vmatpush.bf16.msra.mxu0 %v2586
      %2736 = vmatpush.bf16.msra.mxu0 %v2585
      %2737 = vmatpush.bf16.msra.mxu0 %v2584
      %2738 = vmatpush.bf16.msra.mxu0 %v2583
      %2739 = vmatmul.bf16.gmra.mxu0 %v2159
      %v2740 = vpop.f32.mrf.mxu0
      %v2741 = vadd.f32 %v2728, %v2740
      %v2742 = vpop.f32.mrf.mxu0
      %2743 = vdwg.mxu0
      %2744 = vmatpush.bf16.msra.mxu0 %v2598
      %2745 = vmatpush.bf16.msra.mxu0 %v2597
      %2746 = vmatpush.bf16.msra.mxu0 %v2596
      %2747 = vmatpush.bf16.msra.mxu0 %v2595
      %2748 = vmatpush.bf16.msra.mxu0 %v2594
      %2749 = vmatpush.bf16.msra.mxu0 %v2593
      %2750 = vmatpush.bf16.msra.mxu0 %v2592
      %2751 = vmatpush.bf16.msra.mxu0 %v2591
      %2752 = vmatmul.bf16.gmra.mxu0 %v2160
      %v2753 = vpop.f32.mrf.mxu0
      %v2754 = vadd.f32 %v2741, %v2753
      %v2755 = vpop.f32.mrf.mxu0
      %2756 = vdwg.mxu0
      %2757 = vmatpush.bf16.msra.mxu0 %v2606
      %2758 = vmatpush.bf16.msra.mxu0 %v2605
      %2759 = vmatpush.bf16.msra.mxu0 %v2604
      %2760 = vmatpush.bf16.msra.mxu0 %v2603
      %2761 = vmatpush.bf16.msra.mxu0 %v2602
      %2762 = vmatpush.bf16.msra.mxu0 %v2601
      %2763 = vmatpush.bf16.msra.mxu0 %v2600
      %2764 = vmatpush.bf16.msra.mxu0 %v2599
      %2765 = vmatmul.bf16.gmra.mxu0 %v2161
      %v2766 = vpop.f32.mrf.mxu0
      %v2767 = vadd.f32 %v2754, %v2766
      %v2768 = vpop.f32.mrf.mxu0
      %2769 = vdwg.mxu0
      %2770 = vmatpush.bf16.msra.mxu0 %v2614
      %2771 = vmatpush.bf16.msra.mxu0 %v2613
      %2772 = vmatpush.bf16.msra.mxu0 %v2612
      %2773 = vmatpush.bf16.msra.mxu0 %v2611
      %2774 = vmatpush.bf16.msra.mxu0 %v2610
      %2775 = vmatpush.bf16.msra.mxu0 %v2609
      %2776 = vmatpush.bf16.msra.mxu0 %v2608
      %2777 = vmatpush.bf16.msra.mxu0 %v2607
      %2778 = vmatmul.bf16.gmra.mxu0 %v2162
      %v2779 = vpop.f32.mrf.mxu0
      %v2780 = vadd.f32 %v2767, %v2779
      %v2781 = vpop.f32.mrf.mxu0
      %2782 = vdwg.mxu0
      %v2783 = vadd.f32 %v2129, %v2780
      %v2784 = vld [vmem:[%s37] sm:$0x1]
      %v2785 = vld [vmem:[%s39] sm:$0x1]
      %v2786 = vsel %vm1448, %v2783, 0.0
      %2787 = vadd.xlane.f32.xlu0 %v2786
      %v2788 = vpop.xlane.xlu0 %2787
      %v2789 = vmul.f32 %v2783, %v2783
      %v2790 = vsel %vm1448, %v2789, 0.0
      %2791 = vadd.xlane.f32.xlu0 %v2790
      %v2792 = vpop.xlane.xlu0 %2791
      %v2793 = vmul.f32 %v2788, 0.03125
      %v2794 = vmul.f32 %v2792, 0.03125
      %v2795 = vmul.f32 %v2793, %v2793
      %v2796 = vsub.f32 %v2794, %v2795
      %v2797 = vsub.f32 %v2783, %v2793
      %v2798 = vadd.f32 %v2796, 1e-05
      %v2799 = vrsqrt.pop %v2798
      %v2800 = vmul.f32 %v2799, %v2798
      %v2801 = vmul.f32 %v2800, %v2799
      %v2802 = vmul.f32 0.5, %v2801
      %v2803 = vsub.f32 1.5, %v2802
      %v2804 = vmul.f32 %v2799, %v2803
      %vm2805 = vweird.f32 %v2798
      %vm2806 = vweird.f32 %v2799
      %vm2807 = vmor %vm2805, %vm2806
      %v2808 = vsel %vm2807, %v2799, %v2804
      %v2809 = vmul.f32 %v2797, %v2808
      %v2811 = vperm.slane %v2784, 0
      %v2813 = vmul.f32 %v2809, %v2811
      %v2815 = vperm.slane %v2785, 0
      %v2817 = vadd.f32 %v2813, %v2815
      %v2818 = vsub.f32 %v2129, %v2780
      %v2819 = vld [vmem:[#allocation18] sm:$0x1]
      %v2820 = vld [vmem:[#allocation19] sm:$0x1]
      %v2821 = vsel %vm1448, %v2818, 0.0
      %2822 = vadd.xlane.f32.xlu0 %v2821
      %v2823 = vpop.xlane.xlu0 %2822
      %v2824 = vmul.f32 %v2818, %v2818
      %v2825 = vsel %vm1448, %v2824, 0.0
      %2826 = vadd.xlane.f32.xlu0 %v2825
      %v2827 = vpop.xlane.xlu0 %2826
      %v2828 = vmul.f32 %v2823, 0.03125
      %v2829 = vmul.f32 %v2827, 0.03125
      %v2830 = vmul.f32 %v2828, %v2828
      %v2831 = vsub.f32 %v2829, %v2830
      %v2832 = vsub.f32 %v2818, %v2828
      %v2833 = vadd.f32 %v2831, 1e-05
      %v2834 = vrsqrt.pop %v2833
      %v2835 = vmul.f32 %v2834, %v2833
      %v2836 = vmul.f32 %v2835, %v2834
      %v2837 = vmul.f32 0.5, %v2836
      %v2838 = vsub.f32 1.5, %v2837
      %v2839 = vmul.f32 %v2834, %v2838
      %vm2840 = vweird.f32 %v2833
      %vm2841 = vweird.f32 %v2834
      %vm2842 = vmor %vm2840, %vm2841
      %v2843 = vsel %vm2842, %v2834, %v2839
      %v2844 = vmul.f32 %v2832, %v2843
      %v2846 = vperm.slane %v2819, 0
      %v2848 = vmul.f32 %v2844, %v2846
      %v2850 = vperm.slane %v2820, 0
      %v2852 = vadd.f32 %v2848, %v2850
      %v2853 = vlaneseq
      %v2854 = vand.u32 %v2853, 127
      %vm2855 = vcmp.lt.s32.totalorder %v2854, 32
      %v2856 = vsel %vm1448, %v1480, 0.0
      %2857 = vadd.xlane.f32.xlu0 %v2856
      %v2858 = vpop.xlane.xlu0 %2857
      %v2859 = vmul.f32 %v2858, 0.03125
      %v2860 = vsel %vm1448, %v1279, 0.0
      %2861 = vadd.xlane.f32.xlu0 %v2860
      %v2862 = vpop.xlane.xlu0 %2861
      %v2863 = vmul.f32 %v2862, 0.03125
      %v2864 = vsel %vm1448, %v2817, 0.0
      %2865 = vadd.xlane.f32.xlu0 %v2864
      %v2866 = vpop.xlane.xlu0 %2865
      %v2867 = vmul.f32 %v2866, 0.03125
      %v2868 = vsel %vm1448, %v2852, 0.0
      %2869 = vadd.xlane.f32.xlu0 %v2868
      %v2870 = vpop.xlane.xlu0 %2869
      %v2871 = vmul.f32 %v2870, 0.03125
      %v2872 = vsel %vm2855, %v1480, -inf
      %v2873 = vsel %vm1448, %v2872, -inf
      %2874 = vmax.xlane.f32.xlu0 %v2873
      %v2875 = vpop.xlane.xlu0 %2874
      %v2876 = vsel %vm2855, %v1279, -inf
      %v2877 = vsel %vm1448, %v2876, -inf
      %2878 = vmax.xlane.f32.xlu0 %v2877
      %v2879 = vpop.xlane.xlu0 %2878
      %v2880 = vsel %vm2855, %v2817, -inf
      %v2881 = vsel %vm1448, %v2880, -inf
      %2882 = vmax.xlane.f32.xlu0 %v2881
      %v2883 = vpop.xlane.xlu0 %2882
      %v2884 = vsel %vm2855, %v2852, -inf
      %v2885 = vsel %vm1448, %v2884, -inf
      %2886 = vmax.xlane.f32.xlu0 %v2885
      %v2887 = vpop.xlane.xlu0 %2886
      %s2888 = sld [smem:[#allocation27]]
      %v2889 = vstv %s2888
      %v2890 = vmul.f32 %v2859, %v2889
      %s2891 = sld [smem:[#allocation27 + $0x80]]
      %v2892 = vstv %s2891
      %v2893 = vmul.f32 %v2863, %v2892
      %v2894 = vadd.f32 %v2890, %v2893
      %s2895 = sld [smem:[#allocation27 + $0x100]]
      %v2896 = vstv %s2895
      %v2897 = vmul.f32 %v2867, %v2896
      %v2898 = vadd.f32 %v2894, %v2897
      %s2899 = sld [smem:[#allocation27 + $0x180]]
      %v2900 = vstv %s2899
      %v2901 = vmul.f32 %v2871, %v2900
      %v2902 = vadd.f32 %v2898, %v2901
      %s2903 = sld [smem:[#allocation28]]
      %v2904 = vstv %s2903
      %v2905 = vadd.f32 %v2902, %v2904
      %v2906 = vmax.f32 %v2905, 0.0
      %s2907 = sld [smem:[#allocation27 + $0x1]]
      %v2908 = vstv %s2907
      %v2909 = vmul.f32 %v2859, %v2908
      %s2910 = sld [smem:[#allocation27 + $0x81]]
      %v2911 = vstv %s2910
      %v2912 = vmul.f32 %v2863, %v2911
      %v2913 = vadd.f32 %v2909, %v2912
      %s2914 = sld [smem:[#allocation27 + $0x101]]
      %v2915 = vstv %s2914
      %v2916 = vmul.f32 %v2867, %v2915
      %v2917 = vadd.f32 %v2913, %v2916
      %s2918 = sld [smem:[#allocation27 + $0x181]]
      %v2919 = vstv %s2918
      %v2920 = vmul.f32 %v2871, %v2919
      %v2921 = vadd.f32 %v2917, %v2920
      %s2922 = sld [smem:[#allocation28 + $0x1]]
      %v2923 = vstv %s2922
      %v2924 = vadd.f32 %v2921, %v2923
      %v2925 = vmax.f32 %v2924, 0.0
      %s2926 = sld [smem:[#allocation29]]
      %v2927 = vstv %s2926
      %v2928 = vmul.f32 %v2906, %v2927
      %s2929 = sld [smem:[#allocation29 + $0x80]]
      %v2930 = vstv %s2929
      %v2931 = vmul.f32 %v2925, %v2930
      %v2932 = vadd.f32 %v2928, %v2931
      %s2933 = sld [smem:[#allocation31]]
      %v2934 = vstv %s2933
      %v2935 = vadd.f32 %v2932, %v2934
      %s2936 = sld [smem:[#allocation29 + $0x1]]
      %v2937 = vstv %s2936
      %v2938 = vmul.f32 %v2906, %v2937
      %s2939 = sld [smem:[#allocation29 + $0x81]]
      %v2940 = vstv %s2939
      %v2941 = vmul.f32 %v2925, %v2940
      %v2942 = vadd.f32 %v2938, %v2941
      %s2943 = sld [smem:[#allocation31 + $0x1]]
      %v2944 = vstv %s2943
      %v2945 = vadd.f32 %v2942, %v2944
      %s2946 = sld [smem:[#allocation29 + $0x2]]
      %v2947 = vstv %s2946
      %v2948 = vmul.f32 %v2906, %v2947
      %s2949 = sld [smem:[#allocation29 + $0x82]]
      %v2950 = vstv %s2949
      %v2951 = vmul.f32 %v2925, %v2950
      %v2952 = vadd.f32 %v2948, %v2951
      %s2953 = sld [smem:[#allocation31 + $0x2]]
      %v2954 = vstv %s2953
      %v2955 = vadd.f32 %v2952, %v2954
      %s2956 = sld [smem:[#allocation29 + $0x3]]
      %v2957 = vstv %s2956
      %v2958 = vmul.f32 %v2906, %v2957
      %s2959 = sld [smem:[#allocation29 + $0x83]]
      %v2960 = vstv %s2959
      %v2961 = vmul.f32 %v2925, %v2960
      %v2962 = vadd.f32 %v2958, %v2961
      %s2963 = sld [smem:[#allocation31 + $0x3]]
      %v2964 = vstv %s2963
      %v2965 = vadd.f32 %v2962, %v2964
      %v2966 = vmul.f32 %v2875, %v2889
      %v2967 = vmul.f32 %v2879, %v2892
      %v2968 = vadd.f32 %v2966, %v2967
      %v2969 = vmul.f32 %v2883, %v2896
      %v2970 = vadd.f32 %v2968, %v2969
      %v2971 = vmul.f32 %v2887, %v2900
      %v2972 = vadd.f32 %v2970, %v2971
      %v2973 = vadd.f32 %v2972, %v2904
      %v2974 = vmax.f32 %v2973, 0.0
      %v2975 = vmul.f32 %v2875, %v2908
      %v2976 = vmul.f32 %v2879, %v2911
      %v2977 = vadd.f32 %v2975, %v2976
      %v2978 = vmul.f32 %v2883, %v2915
      %v2979 = vadd.f32 %v2977, %v2978
      %v2980 = vmul.f32 %v2887, %v2919
      %v2981 = vadd.f32 %v2979, %v2980
      %v2982 = vadd.f32 %v2981, %v2923
      %v2983 = vmax.f32 %v2982, 0.0
      %v2984 = vmul.f32 %v2974, %v2927
      %v2985 = vmul.f32 %v2983, %v2930
      %v2986 = vadd.f32 %v2984, %v2985
      %v2987 = vadd.f32 %v2986, %v2934
      %v2988 = vmul.f32 %v2974, %v2937
      %v2989 = vmul.f32 %v2983, %v2940
      %v2990 = vadd.f32 %v2988, %v2989
      %v2991 = vadd.f32 %v2990, %v2944
      %v2992 = vmul.f32 %v2974, %v2947
      %v2993 = vmul.f32 %v2983, %v2950
      %v2994 = vadd.f32 %v2992, %v2993
      %v2995 = vadd.f32 %v2994, %v2954
      %v2996 = vmul.f32 %v2974, %v2957
      %v2997 = vmul.f32 %v2983, %v2960
      %v2998 = vadd.f32 %v2996, %v2997
      %v2999 = vadd.f32 %v2998, %v2964
      %v3000 = vadd.f32 %v2935, %v2987
      %v3001 = vxor.u32 %v3000, 2147483648
      %v3002 = vmul.f32 %v3001, 1.442695
      %v3003 = vpow.pop %v3002
      %v3004 = vadd.f32 %v3003, 1.0
      %v3005 = vrcp.pop %v3004
      %v3006 = vmul.f32 %v3004, %v3005
      %v3007 = vsub.f32 1.0, %v3006
      %v3008 = vmul.f32 %v3005, %v3007
      %v3009 = vadd.f32 %v3005, %v3008
      %vm3010 = vweird.f32 %v3004
      %vm3011 = vweird.f32 %v3005
      %vm3012 = vmor %vm3010, %vm3011
      %v3013 = vsel %vm3012, %v3005, %v3009
      %v3014 = vand.u32 2147483647, %v3004
      %vm3015 = vcmp.eq.f32.partialorder %v3014, 8.507059e+37
      %v3016 = vand.u32 %v3004, 2147483648
      %v3017 = vor.u32 1.1754944e-38, %v3016
      %v3018 = vsel %vm3015, %v3017, %v3013
      %v3019 = vmul.f32 1.0, %v3018
      %v3020 = vadd.f32 %v2945, %v2991
      %v3021 = vxor.u32 %v3020, 2147483648
      %v3022 = vmul.f32 %v3021, 1.442695
      %v3023 = vpow.pop %v3022
      %v3024 = vadd.f32 %v3023, 1.0
      %v3025 = vrcp.pop %v3024
      %v3026 = vmul.f32 %v3024, %v3025
      %v3027 = vsub.f32 1.0, %v3026
      %v3028 = vmul.f32 %v3025, %v3027
      %v3029 = vadd.f32 %v3025, %v3028
      %vm3030 = vweird.f32 %v3024
      %vm3031 = vweird.f32 %v3025
      %vm3032 = vmor %vm3030, %vm3031
      %v3033 = vsel %vm3032, %v3025, %v3029
      %v3034 = vand.u32 2147483647, %v3024
      %vm3035 = vcmp.eq.f32.partialorder %v3034, 8.507059e+37
      %v3036 = vand.u32 %v3024, 2147483648
      %v3037 = vor.u32 1.1754944e-38, %v3036
      %v3038 = vsel %vm3035, %v3037, %v3033
      %v3039 = vmul.f32 1.0, %v3038
      %v3040 = vadd.f32 %v2955, %v2995
      %v3041 = vxor.u32 %v3040, 2147483648
      %v3042 = vmul.f32 %v3041, 1.442695
      %v3043 = vpow.pop %v3042
      %v3044 = vadd.f32 %v3043, 1.0
      %v3045 = vrcp.pop %v3044
      %v3046 = vmul.f32 %v3044, %v3045
      %v3047 = vsub.f32 1.0, %v3046
      %v3048 = vmul.f32 %v3045, %v3047
      %v3049 = vadd.f32 %v3045, %v3048
      %vm3050 = vweird.f32 %v3044
      %vm3051 = vweird.f32 %v3045
      %vm3052 = vmor %vm3050, %vm3051
      %v3053 = vsel %vm3052, %v3045, %v3049
      %v3054 = vand.u32 2147483647, %v3044
      %vm3055 = vcmp.eq.f32.partialorder %v3054, 8.507059e+37
      %v3056 = vand.u32 %v3044, 2147483648
      %v3057 = vor.u32 1.1754944e-38, %v3056
      %v3058 = vsel %vm3055, %v3057, %v3053
      %v3059 = vmul.f32 1.0, %v3058
      %v3060 = vadd.f32 %v2965, %v2999
      %v3061 = vxor.u32 %v3060, 2147483648
      %v3062 = vmul.f32 %v3061, 1.442695
      %v3063 = vpow.pop %v3062
      %v3064 = vadd.f32 %v3063, 1.0
      %v3065 = vrcp.pop %v3064
      %v3066 = vmul.f32 %v3064, %v3065
      %v3067 = vsub.f32 1.0, %v3066
      %v3068 = vmul.f32 %v3065, %v3067
      %v3069 = vadd.f32 %v3065, %v3068
      %vm3070 = vweird.f32 %v3064
      %vm3071 = vweird.f32 %v3065
      %vm3072 = vmor %vm3070, %vm3071
      %v3073 = vsel %vm3072, %v3065, %v3069
      %v3074 = vand.u32 2147483647, %v3064
      %vm3075 = vcmp.eq.f32.partialorder %v3074, 8.507059e+37
      %v3076 = vand.u32 %v3064, 2147483648
      %v3077 = vor.u32 1.1754944e-38, %v3076
      %v3078 = vsel %vm3075, %v3077, %v3073
      %v3079 = vmul.f32 1.0, %v3078
      %v3080 = vmul.f32 %v1480, %v3019
      %v3081 = vmul.f32 %v1279, %v3039
      %v3082 = vmul.f32 %v2817, %v3059
      %v3083 = vmul.f32 %v2852, %v3079
      %v3084 = vpack.c.bf16 %v3080, %v3080
      %v3085 = vpack.c.bf16 %v3081, %v3081
      %v3086 = vpack.c.bf16 %v3082, %v3082
      %v3087 = vpack.c.bf16 %v3083, %v3083
      %v3088 = vld [vmem:[#allocation21] sm:$0xf]
      %v3089 = vld [vmem:[#allocation21 + $0x4] sm:$0xf]
      %v3090 = vld [vmem:[#allocation21 + $0x8] sm:$0xf]
      %v3091 = vld [vmem:[#allocation21 + $0xc] sm:$0xf]
      %v3092 = vld [vmem:[#allocation21 + $0x10] sm:$0xf]
      %v3093 = vld [vmem:[#allocation21 + $0x14] sm:$0xf]
      %v3094 = vld [vmem:[#allocation21 + $0x18] sm:$0xf]
      %v3095 = vld [vmem:[#allocation21 + $0x1c] sm:$0xf]
      %v3096 = vld [vmem:[#allocation21 + $0x20] sm:$0xf]
      %v3097 = vld [vmem:[#allocation21 + $0x24] sm:$0xf]
      %v3098 = vld [vmem:[#allocation21 + $0x28] sm:$0xf]
      %v3099 = vld [vmem:[#allocation21 + $0x2c] sm:$0xf]
      %v3100 = vld [vmem:[#allocation21 + $0x30] sm:$0xf]
      %v3101 = vld [vmem:[#allocation21 + $0x34] sm:$0xf]
      %v3102 = vld [vmem:[#allocation21 + $0x38] sm:$0xf]
      %v3103 = vld [vmem:[#allocation21 + $0x3c] sm:$0xf]
      %v3104 = vld [vmem:[#allocation21 + $0x40] sm:$0xf]
      %v3105 = vld [vmem:[#allocation21 + $0x44] sm:$0xf]
      %v3106 = vld [vmem:[#allocation21 + $0x48] sm:$0xf]
      %v3107 = vld [vmem:[#allocation21 + $0x4c] sm:$0xf]
      %v3108 = vld [vmem:[#allocation21 + $0x50] sm:$0xf]
      %v3109 = vld [vmem:[#allocation21 + $0x54] sm:$0xf]
      %v3110 = vld [vmem:[#allocation21 + $0x58] sm:$0xf]
      %v3111 = vld [vmem:[#allocation21 + $0x5c] sm:$0xf]
      %v3112 = vld [vmem:[#allocation21 + $0x60] sm:$0xf]
      %v3113 = vld [vmem:[#allocation21 + $0x64] sm:$0xf]
      %v3114 = vld [vmem:[#allocation21 + $0x68] sm:$0xf]
      %v3115 = vld [vmem:[#allocation21 + $0x6c] sm:$0xf]
      %v3116 = vld [vmem:[#allocation21 + $0x70] sm:$0xf]
      %v3117 = vld [vmem:[#allocation21 + $0x74] sm:$0xf]
      %v3118 = vld [vmem:[#allocation21 + $0x78] sm:$0xf]
      %v3119 = vld [vmem:[#allocation21 + $0x7c] sm:$0xf]
      %v3120 = vld [vmem:[#allocation21 + $0x80] sm:$0xf]
      %v3121 = vld [vmem:[#allocation21 + $0x84] sm:$0xf]
      %v3122 = vld [vmem:[#allocation21 + $0x88] sm:$0xf]
      %v3123 = vld [vmem:[#allocation21 + $0x8c] sm:$0xf]
      %v3124 = vld [vmem:[#allocation21 + $0x90] sm:$0xf]
      %v3125 = vld [vmem:[#allocation21 + $0x94] sm:$0xf]
      %v3126 = vld [vmem:[#allocation21 + $0x98] sm:$0xf]
      %v3127 = vld [vmem:[#allocation21 + $0x9c] sm:$0xf]
      %v3128 = vld [vmem:[#allocation21 + $0xa0] sm:$0xf]
      %v3129 = vld [vmem:[#allocation21 + $0xa4] sm:$0xf]
      %v3130 = vld [vmem:[#allocation21 + $0xa8] sm:$0xf]
      %v3131 = vld [vmem:[#allocation21 + $0xac] sm:$0xf]
      %v3132 = vld [vmem:[#allocation21 + $0xb0] sm:$0xf]
      %v3133 = vld [vmem:[#allocation21 + $0xb4] sm:$0xf]
      %v3134 = vld [vmem:[#allocation21 + $0xb8] sm:$0xf]
      %v3135 = vld [vmem:[#allocation21 + $0xbc] sm:$0xf]
      %v3136 = vld [vmem:[#allocation21 + $0xc0] sm:$0xf]
      %v3137 = vld [vmem:[#allocation21 + $0xc4] sm:$0xf]
      %v3138 = vld [vmem:[#allocation21 + $0xc8] sm:$0xf]
      %v3139 = vld [vmem:[#allocation21 + $0xcc] sm:$0xf]
      %v3140 = vld [vmem:[#allocation21 + $0xd0] sm:$0xf]
      %v3141 = vld [vmem:[#allocation21 + $0xd4] sm:$0xf]
      %v3142 = vld [vmem:[#allocation21 + $0xd8] sm:$0xf]
      %v3143 = vld [vmem:[#allocation21 + $0xdc] sm:$0xf]
      %v3144 = vld [vmem:[#allocation21 + $0xe0] sm:$0xf]
      %v3145 = vld [vmem:[#allocation21 + $0xe4] sm:$0xf]
      %v3146 = vld [vmem:[#allocation21 + $0xe8] sm:$0xf]
      %v3147 = vld [vmem:[#allocation21 + $0xec] sm:$0xf]
      %v3148 = vld [vmem:[#allocation21 + $0xf0] sm:$0xf]
      %v3149 = vld [vmem:[#allocation21 + $0xf4] sm:$0xf]
      %v3150 = vld [vmem:[#allocation21 + $0xf8] sm:$0xf]
      %v3151 = vld [vmem:[#allocation21 + $0xfc] sm:$0xf]
      %v3152 = vld [vmem:[#allocation22] sm:$0x1]
      %v3154 = vperm.slane %v3152, 0
      %v3220 = vunpack.c.l.b16 %v3088
      %v3221 = vunpack.c.l.b16 %v3089
      %v3222 = vunpack.c.l.b16 %v3090
      %v3223 = vunpack.c.l.b16 %v3091
      %v3224 = vunpack.c.l.b16 %v3092
      %v3225 = vunpack.c.l.b16 %v3093
      %v3226 = vunpack.c.l.b16 %v3094
      %v3227 = vunpack.c.l.b16 %v3095
      %v3228 = vunpack.c.l.b16 %v3096
      %v3229 = vunpack.c.l.b16 %v3097
      %v3230 = vunpack.c.l.b16 %v3098
      %v3231 = vunpack.c.l.b16 %v3099
      %v3232 = vunpack.c.l.b16 %v3100
      %v3233 = vunpack.c.l.b16 %v3101
      %v3234 = vunpack.c.l.b16 %v3102
      %v3235 = vunpack.c.l.b16 %v3103
      %v3236 = vunpack.c.l.b16 %v3104
      %v3237 = vunpack.c.l.b16 %v3105
      %v3238 = vunpack.c.l.b16 %v3106
      %v3239 = vunpack.c.l.b16 %v3107
      %v3240 = vunpack.c.l.b16 %v3108
      %v3241 = vunpack.c.l.b16 %v3109
      %v3242 = vunpack.c.l.b16 %v3110
      %v3243 = vunpack.c.l.b16 %v3111
      %v3244 = vunpack.c.l.b16 %v3112
      %v3245 = vunpack.c.l.b16 %v3113
      %v3246 = vunpack.c.l.b16 %v3114
      %v3247 = vunpack.c.l.b16 %v3115
      %v3248 = vunpack.c.l.b16 %v3116
      %v3249 = vunpack.c.l.b16 %v3117
      %v3250 = vunpack.c.l.b16 %v3118
      %v3251 = vunpack.c.l.b16 %v3119
      %v3252 = vunpack.c.l.b16 %v3120
      %v3253 = vunpack.c.l.b16 %v3121
      %v3254 = vunpack.c.l.b16 %v3122
      %v3255 = vunpack.c.l.b16 %v3123
      %v3256 = vunpack.c.l.b16 %v3124
      %v3257 = vunpack.c.l.b16 %v3125
      %v3258 = vunpack.c.l.b16 %v3126
      %v3259 = vunpack.c.l.b16 %v3127
      %v3260 = vunpack.c.l.b16 %v3128
      %v3261 = vunpack.c.l.b16 %v3129
      %v3262 = vunpack.c.l.b16 %v3130
      %v3263 = vunpack.c.l.b16 %v3131
      %v3264 = vunpack.c.l.b16 %v3132
      %v3265 = vunpack.c.l.b16 %v3133
      %v3266 = vunpack.c.l.b16 %v3134
      %v3267 = vunpack.c.l.b16 %v3135
      %v3268 = vunpack.c.l.b16 %v3136
      %v3269 = vunpack.c.l.b16 %v3137
      %v3270 = vunpack.c.l.b16 %v3138
      %v3271 = vunpack.c.l.b16 %v3139
      %v3272 = vunpack.c.l.b16 %v3140
      %v3273 = vunpack.c.l.b16 %v3141
      %v3274 = vunpack.c.l.b16 %v3142
      %v3275 = vunpack.c.l.b16 %v3143
      %v3276 = vunpack.c.l.b16 %v3144
      %v3277 = vunpack.c.l.b16 %v3145
      %v3278 = vunpack.c.l.b16 %v3146
      %v3279 = vunpack.c.l.b16 %v3147
      %v3280 = vunpack.c.l.b16 %v3148
      %v3281 = vunpack.c.l.b16 %v3149
      %v3282 = vunpack.c.l.b16 %v3150
      %v3283 = vunpack.c.l.b16 %v3151
      %v3284 = vpack.c.b16 %v3221, %v3220
      %v3285 = vpack.c.b16 %v3223, %v3222
      %v3286 = vpack.c.b16 %v3225, %v3224
      %v3287 = vpack.c.b16 %v3227, %v3226
      %v3288 = vpack.c.b16 %v3229, %v3228
      %v3289 = vpack.c.b16 %v3231, %v3230
      %v3290 = vpack.c.b16 %v3233, %v3232
      %v3291 = vpack.c.b16 %v3235, %v3234
      %v3292 = vpack.c.b16 %v3237, %v3236
      %v3293 = vpack.c.b16 %v3239, %v3238
      %v3294 = vpack.c.b16 %v3241, %v3240
      %v3295 = vpack.c.b16 %v3243, %v3242
      %v3296 = vpack.c.b16 %v3245, %v3244
      %v3297 = vpack.c.b16 %v3247, %v3246
      %v3298 = vpack.c.b16 %v3249, %v3248
      %v3299 = vpack.c.b16 %v3251, %v3250
      %v3300 = vpack.c.b16 %v3253, %v3252
      %v3301 = vpack.c.b16 %v3255, %v3254
      %v3302 = vpack.c.b16 %v3257, %v3256
      %v3303 = vpack.c.b16 %v3259, %v3258
      %v3304 = vpack.c.b16 %v3261, %v3260
      %v3305 = vpack.c.b16 %v3263, %v3262
      %v3306 = vpack.c.b16 %v3265, %v3264
      %v3307 = vpack.c.b16 %v3267, %v3266
      %v3308 = vpack.c.b16 %v3269, %v3268
      %v3309 = vpack.c.b16 %v3271, %v3270
      %v3310 = vpack.c.b16 %v3273, %v3272
      %v3311 = vpack.c.b16 %v3275, %v3274
      %v3312 = vpack.c.b16 %v3277, %v3276
      %v3313 = vpack.c.b16 %v3279, %v3278
      %v3314 = vpack.c.b16 %v3281, %v3280
      %v3315 = vpack.c.b16 %v3283, %v3282
      %3348 = vmatpush.bf16.msra.mxu0 %v3291
      %3349 = vmatpush.bf16.msra.mxu0 %v3290
      %3350 = vmatpush.bf16.msra.mxu0 %v3289
      %3351 = vmatpush.bf16.msra.mxu0 %v3288
      %3352 = vmatpush.bf16.msra.mxu0 %v3287
      %3353 = vmatpush.bf16.msra.mxu0 %v3286
      %3354 = vmatpush.bf16.msra.mxu0 %v3285
      %3355 = vmatpush.bf16.msra.mxu0 %v3284
      %3356 = vmatmul.bf16.gmra.mxu0 %v3084
      %v3357 = vpop.f32.mrf.mxu0
      %v3358 = vadd.f32 %v3154, %v3357
      %v3359 = vpop.f32.mrf.mxu0
      %3360 = vdwg.mxu0
      %3361 = vmatpush.bf16.msra.mxu0 %v3299
      %3362 = vmatpush.bf16.msra.mxu0 %v3298
      %3363 = vmatpush.bf16.msra.mxu0 %v3297
      %3364 = vmatpush.bf16.msra.mxu0 %v3296
      %3365 = vmatpush.bf16.msra.mxu0 %v3295
      %3366 = vmatpush.bf16.msra.mxu0 %v3294
      %3367 = vmatpush.bf16.msra.mxu0 %v3293
      %3368 = vmatpush.bf16.msra.mxu0 %v3292
      %3369 = vmatmul.bf16.gmra.mxu0 %v3085
      %v3370 = vpop.f32.mrf.mxu0
      %v3371 = vadd.f32 %v3358, %v3370
      %v3372 = vpop.f32.mrf.mxu0
      %3373 = vdwg.mxu0
      %3374 = vmatpush.bf16.msra.mxu0 %v3307
      %3375 = vmatpush.bf16.msra.mxu0 %v3306
      %3376 = vmatpush.bf16.msra.mxu0 %v3305
      %3377 = vmatpush.bf16.msra.mxu0 %v3304
      %3378 = vmatpush.bf16.msra.mxu0 %v3303
      %3379 = vmatpush.bf16.msra.mxu0 %v3302
      %3380 = vmatpush.bf16.msra.mxu0 %v3301
      %3381 = vmatpush.bf16.msra.mxu0 %v3300
      %3382 = vmatmul.bf16.gmra.mxu0 %v3086
      %v3383 = vpop.f32.mrf.mxu0
      %v3384 = vadd.f32 %v3371, %v3383
      %v3385 = vpop.f32.mrf.mxu0
      %3386 = vdwg.mxu0
      %3387 = vmatpush.bf16.msra.mxu0 %v3315
      %3388 = vmatpush.bf16.msra.mxu0 %v3314
      %3389 = vmatpush.bf16.msra.mxu0 %v3313
      %3390 = vmatpush.bf16.msra.mxu0 %v3312
      %3391 = vmatpush.bf16.msra.mxu0 %v3311
      %3392 = vmatpush.bf16.msra.mxu0 %v3310
      %3393 = vmatpush.bf16.msra.mxu0 %v3309
      %3394 = vmatpush.bf16.msra.mxu0 %v3308
      %3395 = vmatmul.bf16.gmra.mxu0 %v3087
      %v3396 = vpop.f32.mrf.mxu0
      %v3397 = vadd.f32 %v3384, %v3396
      %v3398 = vpop.f32.mrf.mxu0
      %3399 = vdwg.mxu0
      %v3400 = vmax.f32 %v3397, 0.0
      %v3401 = vpack.c.bf16 %v3400, %v3400
      %v3402 = vld [vmem:[#allocation24] sm:$0xf]
      %v3403 = vld [vmem:[#allocation24 + $0x4] sm:$0xf]
      %v3404 = vld [vmem:[#allocation24 + $0x8] sm:$0xf]
      %v3405 = vld [vmem:[#allocation24 + $0xc] sm:$0xf]
      %v3406 = vld [vmem:[#allocation24 + $0x10] sm:$0xf]
      %v3407 = vld [vmem:[#allocation24 + $0x14] sm:$0xf]
      %v3408 = vld [vmem:[#allocation24 + $0x18] sm:$0xf]
      %v3409 = vld [vmem:[#allocation24 + $0x1c] sm:$0xf]
      %v3410 = vld [vmem:[#allocation24 + $0x20] sm:$0xf]
      %v3411 = vld [vmem:[#allocation24 + $0x24] sm:$0xf]
      %v3412 = vld [vmem:[#allocation24 + $0x28] sm:$0xf]
      %v3413 = vld [vmem:[#allocation24 + $0x2c] sm:$0xf]
      %v3414 = vld [vmem:[#allocation24 + $0x30] sm:$0xf]
      %v3415 = vld [vmem:[#allocation24 + $0x34] sm:$0xf]
      %v3416 = vld [vmem:[#allocation24 + $0x38] sm:$0xf]
      %v3417 = vld [vmem:[#allocation24 + $0x3c] sm:$0xf]
      %v3418 = vld [vmem:[#allocation25] sm:$0x1]
      %v3420 = vperm.slane %v3418, 0
      %v3438 = vunpack.c.l.b16 %v3402
      %v3439 = vunpack.c.l.b16 %v3403
      %v3440 = vunpack.c.l.b16 %v3404
      %v3441 = vunpack.c.l.b16 %v3405
      %v3442 = vunpack.c.l.b16 %v3406
      %v3443 = vunpack.c.l.b16 %v3407
      %v3444 = vunpack.c.l.b16 %v3408
      %v3445 = vunpack.c.l.b16 %v3409
      %v3446 = vunpack.c.l.b16 %v3410
      %v3447 = vunpack.c.l.b16 %v3411
      %v3448 = vunpack.c.l.b16 %v3412
      %v3449 = vunpack.c.l.b16 %v3413
      %v3450 = vunpack.c.l.b16 %v3414
      %v3451 = vunpack.c.l.b16 %v3415
      %v3452 = vunpack.c.l.b16 %v3416
      %v3453 = vunpack.c.l.b16 %v3417
      %v3454 = vpack.c.b16 %v3439, %v3438
      %v3455 = vpack.c.b16 %v3441, %v3440
      %v3456 = vpack.c.b16 %v3443, %v3442
      %v3457 = vpack.c.b16 %v3445, %v3444
      %v3458 = vpack.c.b16 %v3447, %v3446
      %v3459 = vpack.c.b16 %v3449, %v3448
      %v3460 = vpack.c.b16 %v3451, %v3450
      %v3461 = vpack.c.b16 %v3453, %v3452
      %3470 = vmatpush.bf16.msra.mxu0 %v3461
      %3471 = vmatpush.bf16.msra.mxu0 %v3460
      %3472 = vmatpush.bf16.msra.mxu0 %v3459
      %3473 = vmatpush.bf16.msra.mxu0 %v3458
      %3474 = vmatpush.bf16.msra.mxu0 %v3457
      %3475 = vmatpush.bf16.msra.mxu0 %v3456
      %3476 = vmatpush.bf16.msra.mxu0 %v3455
      %3477 = vmatpush.bf16.msra.mxu0 %v3454
      %3478 = vmatmul.bf16.gmra.mxu0 %v3401
      %v3479 = vpop.f32.mrf.mxu0
      %v3480 = vadd.f32 %v3420, %v3479
      %v3481 = vpop.f32.mrf.mxu0
      %3482 = vdwg.mxu0
      %3483 = vst [vmem:[%s61] sm:$0x3] %v3480
    $region201: #{erfppk_forward.1} parent=1 // pred_fallthru
      _
    // Predicated region
    $region202: #{erfppk_forward.1} parent=1 // pred_check
      _
    $region203: #{erfppk_forward.1} parent=1 // pred_check_branch
      %3485 = sbr.rel (0) target = $region205
    $region204: #{erfppk_forward.1} parent=1 // pred_region
      _
    $region205: #{erfppk_forward.1} parent=1 // pred_fallthru
      _
    // Predicated region
    $region206: #{erfppk_forward.1} parent=1 // pred_check
      _
    $region207: #{erfppk_forward.1} parent=1 // pred_check_branch
      %3487 = sbr.rel (0) target = $region209
    $region208: #{erfppk_forward.1} parent=1 // pred_region
      _
    $region209: #{erfppk_forward.1} parent=1 // pred_fallthru
      _
    %3488 = vsyncpa [#allocation4], 1
    %3489 = vsyncpa [#allocation8], 1
    %3490 = vsyncpa [#allocation11], 1
    %3491 = vsyncpa [#allocation14], 1
    %3492 = vsyncpa [#allocation17], 1
    %3493 = vsyncpa [#allocation20], 1
    %3494 = vsyncpa [#allocation23], 1
    %3495 = vsyncpa [#allocation26], 1
    %3496 = vsyncpa [#allocation5], 1
    %3497 = vsyncpa [#allocation32], 1
    %3498 = vsyncpa [#allocation6], 1
    %3499 = vsyncpa [#allocation30], 1

</llo_original>
